<compile_context>
chip_gen: v6e
topology: v6e:2x2x1
jax: 0.10.0
libtpu: 0.0.40
codegen_flags: <defaults>
</compile_context>

<pallas_src>
import functools

import jax
import jax.numpy as jnp
from jax.experimental import pallas as pl
from jax.experimental.pallas import tpu as pltpu


def _bottleneck_kernel(x_ref, wa_ref, wb_ref, wc_ref,
                       ba_ref, bb_ref, bc_ref,
                       w1t_ref, b1_ref, w2_ref, b2_ref,
                       o_ref, pad_ref, *, nb, H, W, Ho, Wo, stride):
    """Fused bottleneck transform for a block of `nb` images.

    x_ref:   (nb, H, W, Cin)    bf16 input (NHWC, channels on lanes)
    wa_ref:  (Cin, w_b)         bf16 1x1 conv a  (BN-a scale folded in)
    wb_ref:  (9, w_b, w_b)      bf16 3x3 conv b, per-tap block-diag dense
    wc_ref:  (w_b, Cout)        bf16 1x1 conv c  (BN-c scale folded in)
    b*_ref:  (1, C) f32         folded BN biases for a, b, c
    w1t_ref: (w_se, w_b) f32    SE fc1 weight (transposed), b1_ref: (1, w_se)
    w2_ref:  (w_se, w_b) f32    SE fc2 weight,              b2_ref: (1, w_b)
    o_ref:   (nb, Ho, Wo, Cout) f32
    pad_ref: (nb, Hp, Wp, w_b)  f32 VMEM scratch (zero-padded stage-a output)
    """
    cin = x_ref.shape[-1]
    w_b = wa_ref.shape[-1]
    cout = o_ref.shape[-1]
    Hp = pad_ref.shape[1]
    Wp = pad_ref.shape[2]

    # ---- stage a: 1x1 conv (BN scale pre-folded) + bias + ReLU.
    #      One (nb*H*W, Cin) @ (Cin, w_b) MXU matmul (batch folded into M).
    xa = x_ref[...].reshape(nb * H * W, cin)
    u = jnp.dot(xa, wa_ref[...], preferred_element_type=jnp.float32)
    u = jnp.maximum(u + ba_ref[...], 0.0)

    # ---- build the zero-padded intermediate in VMEM.
    # Only the 1-px halo ring is zeroed (interior fully overwritten below).
    pad_ref[:, pl.ds(0, 1), :, :] = jnp.zeros((nb, 1, Wp, w_b), jnp.float32)
    pad_ref[:, pl.ds(1 + H, Hp - 1 - H), :, :] = jnp.zeros(
        (nb, Hp - 1 - H, Wp, w_b), jnp.float32)
    pad_ref[:, :, pl.ds(0, 1), :] = jnp.zeros((nb, Hp, 1, w_b), jnp.float32)
    pad_ref[:, :, pl.ds(W + 1, 1), :] = jnp.zeros((nb, Hp, 1, w_b), jnp.float32)
    pad_ref[:, pl.ds(1, H), pl.ds(1, W), :] = u.reshape(nb, H, W, w_b)

    # ---- stage b: 3x3 grouped conv (block-diag dense per tap), stride in-kernel.
    # Nine accumulating matmuls; strided pl.ds on H (leading) and W (sublane).
    acc = jnp.zeros((nb * Ho * Wo, w_b), jnp.float32)
    for t in range(9):
        dh, dw = t // 3, t % 3
        if stride == 1:
            p = pad_ref[:, pl.ds(dh, Ho), pl.ds(dw, Wo), :]
        else:
            p = pad_ref[:, pl.ds(dh, Ho, stride), pl.ds(dw, Wo, stride), :]
        p = p.reshape(nb * Ho * Wo, w_b).astype(jnp.bfloat16)
        acc = acc + jnp.dot(p, wb_ref[t], preferred_element_type=jnp.float32)
    v = jnp.maximum(acc + bb_ref[...], 0.0)

    # ---- SE: per-image global average pool + two tiny FCs (f32 epilogue).
    vb = v.reshape(nb, Ho * Wo, w_b)
    s = jnp.mean(vb, axis=1)                                            # (nb, w_b)
    z = jnp.sum(s[:, None, :] * w1t_ref[...][None], axis=2) + b1_ref[...]  # (nb, w_se)
    z = jnp.maximum(z, 0.0)
    tt = jnp.sum(z[:, :, None] * w2_ref[...][None], axis=1) + b2_ref[...]  # (nb, w_b)
    g = 1.0 / (1.0 + jnp.exp(-tt))                                      # sigmoid
    v = (vb * g[:, None, :]).reshape(nb * Ho * Wo, w_b)

    # ---- stage c: 1x1 conv (BN scale pre-folded) + bias (no ReLU).
    y = jnp.dot(v.astype(jnp.bfloat16), wc_ref[...],
                preferred_element_type=jnp.float32)
    y = y + bc_ref[...]
    o_ref[...] = y.reshape(nb, Ho, Wo, cout).astype(o_ref.dtype)


def fold_bn(gamma, beta, mean, var, eps=1e-5):
    scale = gamma / jnp.sqrt(var + eps)
    bias = beta - mean * scale
    return scale, bias


def _grouped_to_dense(wg, num_gs):
    """Grouped HWIO weight (3,3,gw,w_b) -> block-diagonal dense HWIO (3,3,w_b,w_b)."""
    kh, kw, gw, w_b = wg.shape
    wd = jnp.zeros((kh, kw, w_b, w_b), wg.dtype)
    for g in range(num_gs):
        wd = wd.at[:, :, g * gw:(g + 1) * gw, g * gw:(g + 1) * gw].set(
            wg[:, :, :, g * gw:(g + 1) * gw])
    return wd


def bottleneck_transform(x_nchw, params, stride, block_n=4):
    """Equivalent of BottleneckTransform.forward (inference-mode BN)."""
    N, w_in, H, W = x_nchw.shape
    w_b = params["wa"].shape[1]
    w_out = params["wc"].shape[1]
    w_se = params["w_se1"].shape[1]
    num_gs = params["num_gs"]

    Ho = (H - 1) // stride + 1
    Wo = (W - 1) // stride + 1
    Hp = max(H + 2, 2 + stride * Ho)          # scratch rows (covers odd-H cases)
    Wp = W + 2

    # Batch-block: largest divisor of N that is <= block_n.  Several images per
    # grid step (bigger matmul M, amortized step overhead); N//nb steps stay
    # "parallel" so v7x's two TensorCores can split them.
    nb = 1
    for cand in range(min(block_n, N), 0, -1):
        if N % cand == 0:
            nb = cand
            break

    x = jnp.transpose(x_nchw, (0, 2, 3, 1)).astype(jnp.bfloat16)   # NCHW -> NHWC, bf16

    sa, ba = fold_bn(params["ga"], params["ba"], params["ma"], params["va"])
    sb, bb = fold_bn(params["gb"], params["bb"], params["mb"], params["vb"])
    sc, bc = fold_bn(params["gc"], params["bc"], params["mc"], params["vc"])

    # One-time host-side fold of the BN scales into the conv weight columns
    # (before the bf16 cast); only bias-add + ReLU remain in-kernel.
    wa = (params["wa"] * sa[None, :]).astype(jnp.bfloat16)            # (w_in, w_b)
    wb = _grouped_to_dense(params["wb_g"] * sb[None, None, None, :], num_gs)
    wb = wb.reshape(9, w_b, w_b).astype(jnp.bfloat16)                 # per-tap dense
    wc = (params["wc"] * sc[None, :]).astype(jnp.bfloat16)            # (w_b, w_out)

    w1t = params["w_se1"].T                                           # (w_se, w_b)
    b1 = params["b_se1"].reshape(1, w_se)
    w2 = params["w_se2"]                                              # (w_se, w_b)
    b2 = params["b_se2"].reshape(1, w_b)

    row = lambda a: a.reshape(1, -1)
    const = lambda shp: pl.BlockSpec(shp, lambda n, _s=shp: (0,) * len(_s))

    kernel = functools.partial(_bottleneck_kernel, nb=nb,
                               H=H, W=W, Ho=Ho, Wo=Wo, stride=stride)

    out = pl.pallas_call(
        kernel,
        out_shape=jax.ShapeDtypeStruct((N, Ho, Wo, w_out), jnp.float32),
        grid=(N // nb,),
        in_specs=[
            pl.BlockSpec((nb, H, W, w_in), lambda n: (n, 0, 0, 0)),
            const((w_in, w_b)),                  # wa (BN scale folded)
            const((9, w_b, w_b)),                # wb per-tap block-diag dense
            const((w_b, w_out)),                 # wc (BN scale folded)
            const((1, w_b)),                     # ba
            const((1, w_b)),                     # bb
            const((1, w_out)),                   # bc
            const((w_se, w_b)),                  # SE fc1 weight (transposed)
            const((1, w_se)),                    # SE fc1 bias
            const((w_se, w_b)),                  # SE fc2 weight
            const((1, w_b)),                     # SE fc2 bias
        ],
        out_specs=pl.BlockSpec((nb, Ho, Wo, w_out), lambda n: (n, 0, 0, 0)),
        scratch_shapes=[pltpu.VMEM((nb, Hp, Wp, w_b), jnp.float32)],
        compiler_params=pltpu.CompilerParams(
            dimension_semantics=("parallel",)),
    )(x, wa, wb, wc, row(ba), row(bb), row(bc), w1t, b1, w2, b2)

    return jnp.transpose(out, (0, 3, 1, 2))     # NHWC -> NCHW


def init_params(key, w_in, w_out, bm, gw, se_r):
    w_b = int(round(w_out * bm))
    num_gs = w_b // gw
    w_se = int(round(w_in * se_r))
    ks = jax.random.split(key, 20)

    def bn(k1, k2, k3, k4, c):
        return (1.0 + 0.1 * jax.random.normal(k1, (c,), jnp.float32),
                0.1 * jax.random.normal(k2, (c,), jnp.float32),
                0.1 * jax.random.normal(k3, (c,), jnp.float32),
                jnp.abs(1.0 + 0.1 * jax.random.normal(k4, (c,), jnp.float32)))

    ga, ba, ma, va = bn(ks[0], ks[1], ks[2], ks[3], w_b)
    gb, bb, mb, vb = bn(ks[4], ks[5], ks[6], ks[7], w_b)
    gc, bc, mc, vc = bn(ks[8], ks[9], ks[10], ks[11], w_out)
    return {
        "wa": 0.2 * jax.random.normal(ks[12], (w_in, w_b), jnp.float32),
        "wb_g": 0.1 * jax.random.normal(ks[13], (3, 3, gw, w_b), jnp.float32),
        "wc": 0.1 * jax.random.normal(ks[14], (w_b, w_out), jnp.float32),
        "w_se1": 0.2 * jax.random.normal(ks[15], (w_b, w_se), jnp.float32),
        "b_se1": 0.1 * jax.random.normal(ks[16], (w_se,), jnp.float32),
        "w_se2": 0.2 * jax.random.normal(ks[17], (w_se, w_b), jnp.float32),
        "b_se2": 0.1 * jax.random.normal(ks[18], (w_b,), jnp.float32),
        "ga": ga, "ba": ba, "ma": ma, "va": va,
        "gb": gb, "bb": bb, "mb": mb, "vb": vb,
        "gc": gc, "bc": bc, "mc": mc, "vc": vc,
        "num_gs": num_gs,
    }


def _reference(x_nchw, params, stride):
    """Pure-JAX reference (lax.conv, same folded-BN / bf16-matmul recipe)."""
    x = jnp.transpose(x_nchw, (0, 2, 3, 1))
    dn = ("NHWC", "HWIO", "NHWC")
    num_gs = params["num_gs"]

    sa, ba = fold_bn(params["ga"], params["ba"], params["ma"], params["va"])
    sb, bb = fold_bn(params["gb"], params["bb"], params["mb"], params["vb"])
    sc, bc = fold_bn(params["gc"], params["bc"], params["mc"], params["vc"])

    wa = (params["wa"] * sa[None, :])[None, None].astype(jnp.bfloat16)
    wbg = (params["wb_g"] * sb[None, None, None, :]).astype(jnp.bfloat16)
    wc = (params["wc"] * sc[None, :])[None, None].astype(jnp.bfloat16)

    u = jax.lax.conv_general_dilated(x.astype(jnp.bfloat16), wa, (1, 1),
                                     [(0, 0), (0, 0)], dimension_numbers=dn,
                                     preferred_element_type=jnp.float32)
    u = jnp.maximum(u + ba, 0.0)
    v = jax.lax.conv_general_dilated(u.astype(jnp.bfloat16), wbg, (stride, stride),
                                     [(1, 1), (1, 1)], dimension_numbers=dn,
                                     feature_group_count=num_gs,
                                     preferred_element_type=jnp.float32)
    v = jnp.maximum(v + bb, 0.0)
    # SE
    s = jnp.mean(v, axis=(1, 2))                                          # (N, w_b)
    z = jnp.maximum(jnp.dot(s, params["w_se1"]) + params["b_se1"], 0.0)   # (N, w_se)
    t = jnp.dot(z, params["w_se2"]) + params["b_se2"]                     # (N, w_b)
    g = 1.0 / (1.0 + jnp.exp(-t))
    v = v * g[:, None, None, :]
    y = jax.lax.conv_general_dilated(v.astype(jnp.bfloat16), wc, (1, 1),
                                     [(0, 0), (0, 0)], dimension_numbers=dn,
                                     preferred_element_type=jnp.float32)
    y = y + bc
    return jnp.transpose(y, (0, 3, 1, 2))


if __name__ == "__main__":
    key = jax.random.PRNGKey(0)
    k_x, k_p = jax.random.split(key)

    # BottleneckTransform(w_in=8, w_out=16, stride=2, bm=1.0, gw=4, se_r=0.25)
    #   -> w_b = 16, num_gs = 4, w_se = 2
    N, w_in, H, W = 8, 8, 16, 16
    w_out, stride, bm, gw, se_r = 16, 2, 1.0, 4, 0.25

    params = init_params(k_p, w_in, w_out, bm, gw, se_r)
    x = jax.random.normal(k_x, (N, w_in, H, W), jnp.float32)    # NCHW like PyTorch

    out = jax.block_until_ready(bottleneck_transform(x, params, stride))
    ref = jax.block_until_ready(_reference(x, params, stride))

    Ho = (H - 1) // stride + 1
    Wo = (W - 1) // stride + 1
    assert out.shape == (N, w_out, Ho, Wo), out.shape
    max_err = float(jnp.max(jnp.abs(out - ref)))
    assert jnp.allclose(out, ref, atol=1e-2, rtol=1e-2), max_err

    print("KERNEL_OK")
</pallas_src>

<mosaic_0001>
module attributes {stable_mosaic.version = 11 : i64} {
  func.func @_bottleneck_kernel(%arg0: i32, %arg1: memref<4x16x16x8xbf16, #tpu.memory_space<vmem>>, %arg2: memref<8x16xbf16, #tpu.memory_space<vmem>>, %arg3: memref<9x16x16xbf16, #tpu.memory_space<vmem>>, %arg4: memref<16x16xbf16, #tpu.memory_space<vmem>>, %arg5: memref<1x16xf32, #tpu.memory_space<vmem>>, %arg6: memref<1x16xf32, #tpu.memory_space<vmem>>, %arg7: memref<1x16xf32, #tpu.memory_space<vmem>>, %arg8: memref<2x16xf32, #tpu.memory_space<vmem>>, %arg9: memref<1x2xf32, #tpu.memory_space<vmem>>, %arg10: memref<2x16xf32, #tpu.memory_space<vmem>>, %arg11: memref<1x16xf32, #tpu.memory_space<vmem>>, %arg12: memref<4x8x8x16xf32, #tpu.memory_space<vmem>>, %arg13: memref<4x18x18x16xf32, #tpu.memory_space<vmem>>) attributes {dimension_semantics = [#tpu.dimension_semantics<parallel>], iteration_bounds = array<i64: 2>, scalar_prefetch = 0 : i64, scratch_operands = 1 : i64, tpu.core_type = #tpu.core_type<tc>, window_params = [{transform_indices = @transform_0, window_bounds = array<i64: 4, 16, 16, 8>}, {pipeline_mode = #tpu.pipeline_mode<synchronous>, transform_indices = @transform_1, window_bounds = array<i64: 8, 16>}, {pipeline_mode = #tpu.pipeline_mode<synchronous>, transform_indices = @transform_2, window_bounds = array<i64: 9, 16, 16>}, {pipeline_mode = #tpu.pipeline_mode<synchronous>, transform_indices = @transform_3, window_bounds = array<i64: 16, 16>}, {pipeline_mode = #tpu.pipeline_mode<synchronous>, transform_indices = @transform_4, window_bounds = array<i64: 1, 16>}, {pipeline_mode = #tpu.pipeline_mode<synchronous>, transform_indices = @transform_5, window_bounds = array<i64: 1, 16>}, {pipeline_mode = #tpu.pipeline_mode<synchronous>, transform_indices = @transform_6, window_bounds = array<i64: 1, 16>}, {pipeline_mode = #tpu.pipeline_mode<synchronous>, transform_indices = @transform_7, window_bounds = array<i64: 2, 16>}, {pipeline_mode = #tpu.pipeline_mode<synchronous>, transform_indices = @transform_8, window_bounds = array<i64: 1, 2>}, {pipeline_mode = #tpu.pipeline_mode<synchronous>, transform_indices = @transform_9, window_bounds = array<i64: 2, 16>}, {pipeline_mode = #tpu.pipeline_mode<synchronous>, transform_indices = @transform_10, window_bounds = array<i64: 1, 16>}, {transform_indices = @transform_11, window_bounds = array<i64: 4, 8, 8, 16>}]} {
    %c0 = arith.constant 0 : index
    %c0_0 = arith.constant 0 : index
    %c0_1 = arith.constant 0 : index
    %c0_2 = arith.constant 0 : index
    %0 = vector.load %arg1[%c0, %c0_0, %c0_1, %c0_2] : memref<4x16x16x8xbf16, #tpu.memory_space<vmem>>, vector<4x16x16x8xbf16>
    %1 = vector.shape_cast %0 : vector<4x16x16x8xbf16> to vector<1024x8xbf16>
    %c0_3 = arith.constant 0 : index
    %c0_4 = arith.constant 0 : index
    %2 = vector.load %arg2[%c0_3, %c0_4] : memref<8x16xbf16, #tpu.memory_space<vmem>>, vector<8x16xbf16>
    %cst = arith.constant dense<0.000000e+00> : vector<1024x16xf32>
    %3 = tpu.matmul %1, %2, %cst {dimension_numbers = #tpu.dot_dimension_numbers<[1], [0], [0], [1], [0, 0, 1, 1], [], []>} : vector<1024x8xbf16>, vector<8x16xbf16>, vector<1024x16xf32> -> vector<1024x16xf32>
    %c0_5 = arith.constant 0 : index
    %c0_6 = arith.constant 0 : index
    %4 = vector.load %arg5[%c0_5, %c0_6] : memref<1x16xf32, #tpu.memory_space<vmem>>, vector<1x16xf32>
    %5 = vector.broadcast %4 : vector<1x16xf32> to vector<1024x16xf32>
    %6 = arith.addf %3, %5 : vector<1024x16xf32>
    %cst_7 = arith.constant 0.000000e+00 : f32
    %7 = vector.broadcast %cst_7 : f32 to vector<1024x16xf32>
    %8 = arith.maximumf %6, %7 : vector<1024x16xf32>
    %cst_8 = arith.constant 0.000000e+00 : f32
    %9 = vector.broadcast %cst_8 : f32 to vector<4x1x18x16xf32>
    %c0_9 = arith.constant 0 : index
    %c0_10 = arith.constant 0 : index
    %c0_11 = arith.constant 0 : index
    %c0_12 = arith.constant 0 : index
    %10 = vector.load %arg13[%c0_9, %c0_10, %c0_11, %c0_12] : memref<4x18x18x16xf32, #tpu.memory_space<vmem>>, vector<4x1x18x16xf32>
    tpu.vector_store %arg13[%c0_9, %c0_10, %c0_11, %c0_12], %9 {strides = array<i32>} : memref<4x18x18x16xf32, #tpu.memory_space<vmem>>, vector<4x1x18x16xf32>,
    %cst_13 = arith.constant 0.000000e+00 : f32
    %11 = vector.broadcast %cst_13 : f32 to vector<4x1x18x16xf32>
    %c0_14 = arith.constant 0 : index
    %c17 = arith.constant 17 : index
    %c0_15 = arith.constant 0 : index
    %c0_16 = arith.constant 0 : index
    %12 = vector.load %arg13[%c0_14, %c17, %c0_15, %c0_16] : memref<4x18x18x16xf32, #tpu.memory_space<vmem>>, vector<4x1x18x16xf32>
    tpu.vector_store %arg13[%c0_14, %c17, %c0_15, %c0_16], %11 {strides = array<i32>} : memref<4x18x18x16xf32, #tpu.memory_space<vmem>>, vector<4x1x18x16xf32>,
    %cst_17 = arith.constant 0.000000e+00 : f32
    %13 = vector.broadcast %cst_17 : f32 to vector<4x18x1x16xf32>
    %c0_18 = arith.constant 0 : index
    %c0_19 = arith.constant 0 : index
    %c0_20 = arith.constant 0 : index
    %c0_21 = arith.constant 0 : index
    %14 = vector.load %arg13[%c0_18, %c0_19, %c0_20, %c0_21] : memref<4x18x18x16xf32, #tpu.memory_space<vmem>>, vector<4x18x1x16xf32>
    tpu.vector_store %arg13[%c0_18, %c0_19, %c0_20, %c0_21], %13 {strides = array<i32>} : memref<4x18x18x16xf32, #tpu.memory_space<vmem>>, vector<4x18x1x16xf32>,
    %cst_22 = arith.constant 0.000000e+00 : f32
    %15 = vector.broadcast %cst_22 : f32 to vector<4x18x1x16xf32>
    %c0_23 = arith.constant 0 : index
    %c0_24 = arith.constant 0 : index
    %c17_25 = arith.constant 17 : index
    %c0_26 = arith.constant 0 : index
    %16 = vector.load %arg13[%c0_23, %c0_24, %c17_25, %c0_26] : memref<4x18x18x16xf32, #tpu.memory_space<vmem>>, vector<4x18x1x16xf32>
    tpu.vector_store %arg13[%c0_23, %c0_24, %c17_25, %c0_26], %15 {strides = array<i32>} : memref<4x18x18x16xf32, #tpu.memory_space<vmem>>, vector<4x18x1x16xf32>,
    %17 = vector.shape_cast %8 : vector<1024x16xf32> to vector<4x16x16x16xf32>
    %c0_27 = arith.constant 0 : index
    %c1 = arith.constant 1 : index
    %c1_28 = arith.constant 1 : index
    %c0_29 = arith.constant 0 : index
    %18 = vector.load %arg13[%c0_27, %c1, %c1_28, %c0_29] : memref<4x18x18x16xf32, #tpu.memory_space<vmem>>, vector<4x16x16x16xf32>
    tpu.vector_store %arg13[%c0_27, %c1, %c1_28, %c0_29], %17 {strides = array<i32>} : memref<4x18x18x16xf32, #tpu.memory_space<vmem>>, vector<4x16x16x16xf32>,
    %cst_30 = arith.constant 0.000000e+00 : f32
    %19 = vector.broadcast %cst_30 : f32 to vector<256x16xf32>
    %c0_31 = arith.constant 0 : index
    %c0_32 = arith.constant 0 : index
    %c0_33 = arith.constant 0 : index
    %c0_34 = arith.constant 0 : index
    %20 = tpu.strided_load %arg13[%c0_31, %c0_32, %c0_33, %c0_34] {strides = array<i32: 1, 2, 2, 1>} : memref<4x18x18x16xf32, #tpu.memory_space<vmem>>, vector<4x8x8x16xf32>
    %21 = vector.shape_cast %20 : vector<4x8x8x16xf32> to vector<256x16xf32>
    %22 = arith.truncf %21 : vector<256x16xf32> to vector<256x16xbf16>
    %c0_35 = arith.constant 0 : index
    %c0_36 = arith.constant 0 : index
    %c0_37 = arith.constant 0 : index
    %23 = vector.load %arg3[%c0_35, %c0_36, %c0_37] : memref<9x16x16xbf16, #tpu.memory_space<vmem>>, vector<1x16x16xbf16>
    %24 = vector.shape_cast %23 : vector<1x16x16xbf16> to vector<16x16xbf16>
    %cst_38 = arith.constant dense<0.000000e+00> : vector<256x16xf32>
    %25 = tpu.matmul %22, %24, %cst_38 {dimension_numbers = #tpu.dot_dimension_numbers<[1], [0], [0], [1], [0, 0, 1, 1], [], []>} : vector<256x16xbf16>, vector<16x16xbf16>, vector<256x16xf32> -> vector<256x16xf32>
    %26 = arith.addf %19, %25 : vector<256x16xf32>
    %c0_39 = arith.constant 0 : index
    %c0_40 = arith.constant 0 : index
    %c1_41 = arith.constant 1 : index
    %c0_42 = arith.constant 0 : index
    %27 = tpu.strided_load %arg13[%c0_39, %c0_40, %c1_41, %c0_42] {strides = array<i32: 1, 2, 2, 1>} : memref<4x18x18x16xf32, #tpu.memory_space<vmem>>, vector<4x8x8x16xf32>
    %28 = vector.shape_cast %27 : vector<4x8x8x16xf32> to vector<256x16xf32>
    %29 = arith.truncf %28 : vector<256x16xf32> to vector<256x16xbf16>
    %c1_43 = arith.constant 1 : index
    %c0_44 = arith.constant 0 : index
    %c0_45 = arith.constant 0 : index
    %30 = vector.load %arg3[%c1_43, %c0_44, %c0_45] : memref<9x16x16xbf16, #tpu.memory_space<vmem>>, vector<1x16x16xbf16>
    %31 = vector.shape_cast %30 : vector<1x16x16xbf16> to vector<16x16xbf16>
    %cst_46 = arith.constant dense<0.000000e+00> : vector<256x16xf32>
    %32 = tpu.matmul %29, %31, %cst_46 {dimension_numbers = #tpu.dot_dimension_numbers<[1], [0], [0], [1], [0, 0, 1, 1], [], []>} : vector<256x16xbf16>, vector<16x16xbf16>, vector<256x16xf32> -> vector<256x16xf32>
    %33 = arith.addf %26, %32 : vector<256x16xf32>
    %c0_47 = arith.constant 0 : index
    %c0_48 = arith.constant 0 : index
    %c2 = arith.constant 2 : index
    %c0_49 = arith.constant 0 : index
    %34 = tpu.strided_load %arg13[%c0_47, %c0_48, %c2, %c0_49] {strides = array<i32: 1, 2, 2, 1>} : memref<4x18x18x16xf32, #tpu.memory_space<vmem>>, vector<4x8x8x16xf32>
    %35 = vector.shape_cast %34 : vector<4x8x8x16xf32> to vector<256x16xf32>
    %36 = arith.truncf %35 : vector<256x16xf32> to vector<256x16xbf16>
    %c2_50 = arith.constant 2 : index
    %c0_51 = arith.constant 0 : index
    %c0_52 = arith.constant 0 : index
    %37 = vector.load %arg3[%c2_50, %c0_51, %c0_52] : memref<9x16x16xbf16, #tpu.memory_space<vmem>>, vector<1x16x16xbf16>
    %38 = vector.shape_cast %37 : vector<1x16x16xbf16> to vector<16x16xbf16>
    %cst_53 = arith.constant dense<0.000000e+00> : vector<256x16xf32>
    %39 = tpu.matmul %36, %38, %cst_53 {dimension_numbers = #tpu.dot_dimension_numbers<[1], [0], [0], [1], [0, 0, 1, 1], [], []>} : vector<256x16xbf16>, vector<16x16xbf16>, vector<256x16xf32> -> vector<256x16xf32>
    %40 = arith.addf %33, %39 : vector<256x16xf32>
    %c0_54 = arith.constant 0 : index
    %c1_55 = arith.constant 1 : index
    %c0_56 = arith.constant 0 : index
    %c0_57 = arith.constant 0 : index
    %41 = tpu.strided_load %arg13[%c0_54, %c1_55, %c0_56, %c0_57] {strides = array<i32: 1, 2, 2, 1>} : memref<4x18x18x16xf32, #tpu.memory_space<vmem>>, vector<4x8x8x16xf32>
    %42 = vector.shape_cast %41 : vector<4x8x8x16xf32> to vector<256x16xf32>
    %43 = arith.truncf %42 : vector<256x16xf32> to vector<256x16xbf16>
    %c3 = arith.constant 3 : index
    %c0_58 = arith.constant 0 : index
    %c0_59 = arith.constant 0 : index
    %44 = vector.load %arg3[%c3, %c0_58, %c0_59] : memref<9x16x16xbf16, #tpu.memory_space<vmem>>, vector<1x16x16xbf16>
    %45 = vector.shape_cast %44 : vector<1x16x16xbf16> to vector<16x16xbf16>
    %cst_60 = arith.constant dense<0.000000e+00> : vector<256x16xf32>
    %46 = tpu.matmul %43, %45, %cst_60 {dimension_numbers = #tpu.dot_dimension_numbers<[1], [0], [0], [1], [0, 0, 1, 1], [], []>} : vector<256x16xbf16>, vector<16x16xbf16>, vector<256x16xf32> -> vector<256x16xf32>
    %47 = arith.addf %40, %46 : vector<256x16xf32>
    %c0_61 = arith.constant 0 : index
    %c1_62 = arith.constant 1 : index
    %c1_63 = arith.constant 1 : index
    %c0_64 = arith.constant 0 : index
    %48 = tpu.strided_load %arg13[%c0_61, %c1_62, %c1_63, %c0_64] {strides = array<i32: 1, 2, 2, 1>} : memref<4x18x18x16xf32, #tpu.memory_space<vmem>>, vector<4x8x8x16xf32>
    %49 = vector.shape_cast %48 : vector<4x8x8x16xf32> to vector<256x16xf32>
    %50 = arith.truncf %49 : vector<256x16xf32> to vector<256x16xbf16>
    %c4 = arith.constant 4 : index
    %c0_65 = arith.constant 0 : index
    %c0_66 = arith.constant 0 : index
    %51 = vector.load %arg3[%c4, %c0_65, %c0_66] : memref<9x16x16xbf16, #tpu.memory_space<vmem>>, vector<1x16x16xbf16>
    %52 = vector.shape_cast %51 : vector<1x16x16xbf16> to vector<16x16xbf16>
    %cst_67 = arith.constant dense<0.000000e+00> : vector<256x16xf32>
    %53 = tpu.matmul %50, %52, %cst_67 {dimension_numbers = #tpu.dot_dimension_numbers<[1], [0], [0], [1], [0, 0, 1, 1], [], []>} : vector<256x16xbf16>, vector<16x16xbf16>, vector<256x16xf32> -> vector<256x16xf32>
    %54 = arith.addf %47, %53 : vector<256x16xf32>
    %c0_68 = arith.constant 0 : index
    %c1_69 = arith.constant 1 : index
    %c2_70 = arith.constant 2 : index
    %c0_71 = arith.constant 0 : index
    %55 = tpu.strided_load %arg13[%c0_68, %c1_69, %c2_70, %c0_71] {strides = array<i32: 1, 2, 2, 1>} : memref<4x18x18x16xf32, #tpu.memory_space<vmem>>, vector<4x8x8x16xf32>
    %56 = vector.shape_cast %55 : vector<4x8x8x16xf32> to vector<256x16xf32>
    %57 = arith.truncf %56 : vector<256x16xf32> to vector<256x16xbf16>
    %c5 = arith.constant 5 : index
    %c0_72 = arith.constant 0 : index
    %c0_73 = arith.constant 0 : index
    %58 = vector.load %arg3[%c5, %c0_72, %c0_73] : memref<9x16x16xbf16, #tpu.memory_space<vmem>>, vector<1x16x16xbf16>
    %59 = vector.shape_cast %58 : vector<1x16x16xbf16> to vector<16x16xbf16>
    %cst_74 = arith.constant dense<0.000000e+00> : vector<256x16xf32>
    %60 = tpu.matmul %57, %59, %cst_74 {dimension_numbers = #tpu.dot_dimension_numbers<[1], [0], [0], [1], [0, 0, 1, 1], [], []>} : vector<256x16xbf16>, vector<16x16xbf16>, vector<256x16xf32> -> vector<256x16xf32>
    %61 = arith.addf %54, %60 : vector<256x16xf32>
    %c0_75 = arith.constant 0 : index
    %c2_76 = arith.constant 2 : index
    %c0_77 = arith.constant 0 : index
    %c0_78 = arith.constant 0 : index
    %62 = tpu.strided_load %arg13[%c0_75, %c2_76, %c0_77, %c0_78] {strides = array<i32: 1, 2, 2, 1>} : memref<4x18x18x16xf32, #tpu.memory_space<vmem>>, vector<4x8x8x16xf32>
    %63 = vector.shape_cast %62 : vector<4x8x8x16xf32> to vector<256x16xf32>
    %64 = arith.truncf %63 : vector<256x16xf32> to vector<256x16xbf16>
    %c6 = arith.constant 6 : index
    %c0_79 = arith.constant 0 : index
    %c0_80 = arith.constant 0 : index
    %65 = vector.load %arg3[%c6, %c0_79, %c0_80] : memref<9x16x16xbf16, #tpu.memory_space<vmem>>, vector<1x16x16xbf16>
    %66 = vector.shape_cast %65 : vector<1x16x16xbf16> to vector<16x16xbf16>
    %cst_81 = arith.constant dense<0.000000e+00> : vector<256x16xf32>
    %67 = tpu.matmul %64, %66, %cst_81 {dimension_numbers = #tpu.dot_dimension_numbers<[1], [0], [0], [1], [0, 0, 1, 1], [], []>} : vector<256x16xbf16>, vector<16x16xbf16>, vector<256x16xf32> -> vector<256x16xf32>
    %68 = arith.addf %61, %67 : vector<256x16xf32>
    %c0_82 = arith.constant 0 : index
    %c2_83 = arith.constant 2 : index
    %c1_84 = arith.constant 1 : index
    %c0_85 = arith.constant 0 : index
    %69 = tpu.strided_load %arg13[%c0_82, %c2_83, %c1_84, %c0_85] {strides = array<i32: 1, 2, 2, 1>} : memref<4x18x18x16xf32, #tpu.memory_space<vmem>>, vector<4x8x8x16xf32>
    %70 = vector.shape_cast %69 : vector<4x8x8x16xf32> to vector<256x16xf32>
    %71 = arith.truncf %70 : vector<256x16xf32> to vector<256x16xbf16>
    %c7 = arith.constant 7 : index
    %c0_86 = arith.constant 0 : index
    %c0_87 = arith.constant 0 : index
    %72 = vector.load %arg3[%c7, %c0_86, %c0_87] : memref<9x16x16xbf16, #tpu.memory_space<vmem>>, vector<1x16x16xbf16>
    %73 = vector.shape_cast %72 : vector<1x16x16xbf16> to vector<16x16xbf16>
    %cst_88 = arith.constant dense<0.000000e+00> : vector<256x16xf32>
    %74 = tpu.matmul %71, %73, %cst_88 {dimension_numbers = #tpu.dot_dimension_numbers<[1], [0], [0], [1], [0, 0, 1, 1], [], []>} : vector<256x16xbf16>, vector<16x16xbf16>, vector<256x16xf32> -> vector<256x16xf32>
    %75 = arith.addf %68, %74 : vector<256x16xf32>
    %c0_89 = arith.constant 0 : index
    %c2_90 = arith.constant 2 : index
    %c2_91 = arith.constant 2 : index
    %c0_92 = arith.constant 0 : index
    %76 = tpu.strided_load %arg13[%c0_89, %c2_90, %c2_91, %c0_92] {strides = array<i32: 1, 2, 2, 1>} : memref<4x18x18x16xf32, #tpu.memory_space<vmem>>, vector<4x8x8x16xf32>
    %77 = vector.shape_cast %76 : vector<4x8x8x16xf32> to vector<256x16xf32>
    %78 = arith.truncf %77 : vector<256x16xf32> to vector<256x16xbf16>
    %c8 = arith.constant 8 : index
    %c0_93 = arith.constant 0 : index
    %c0_94 = arith.constant 0 : index
    %79 = vector.load %arg3[%c8, %c0_93, %c0_94] : memref<9x16x16xbf16, #tpu.memory_space<vmem>>, vector<1x16x16xbf16>
    %80 = vector.shape_cast %79 : vector<1x16x16xbf16> to vector<16x16xbf16>
    %cst_95 = arith.constant dense<0.000000e+00> : vector<256x16xf32>
    %81 = tpu.matmul %78, %80, %cst_95 {dimension_numbers = #tpu.dot_dimension_numbers<[1], [0], [0], [1], [0, 0, 1, 1], [], []>} : vector<256x16xbf16>, vector<16x16xbf16>, vector<256x16xf32> -> vector<256x16xf32>
    %82 = arith.addf %75, %81 : vector<256x16xf32>
    %c0_96 = arith.constant 0 : index
    %c0_97 = arith.constant 0 : index
    %83 = vector.load %arg6[%c0_96, %c0_97] : memref<1x16xf32, #tpu.memory_space<vmem>>, vector<1x16xf32>
    %84 = vector.broadcast %83 : vector<1x16xf32> to vector<256x16xf32>
    %85 = arith.addf %82, %84 : vector<256x16xf32>
    %cst_98 = arith.constant 0.000000e+00 : f32
    %86 = vector.broadcast %cst_98 : f32 to vector<256x16xf32>
    %87 = arith.maximumf %85, %86 : vector<256x16xf32>
    %88 = vector.shape_cast %87 : vector<256x16xf32> to vector<4x64x16xf32>
    %cst_99 = arith.constant dense<0.000000e+00> : vector<4x16xf32>
    %89 = vector.multi_reduction <add>, %88, %cst_99 [1] : vector<4x64x16xf32> to vector<4x16xf32>
    %cst_100 = arith.constant 6.400000e+01 : f32
    %90 = vector.broadcast %cst_100 : f32 to vector<4x16xf32>
    %91 = arith.divf %89, %90 : vector<4x16xf32>
    %92 = vector.shape_cast %91 : vector<4x16xf32> to vector<4x1x16xf32>
    %c0_101 = arith.constant 0 : index
    %c0_102 = arith.constant 0 : index
    %93 = vector.load %arg8[%c0_101, %c0_102] : memref<2x16xf32, #tpu.memory_space<vmem>>, vector<2x16xf32>
    %94 = vector.shape_cast %93 : vector<2x16xf32> to vector<1x2x16xf32>
    %95 = vector.broadcast %92 : vector<4x1x16xf32> to vector<4x2x16xf32>
    %96 = vector.broadcast %94 : vector<1x2x16xf32> to vector<4x2x16xf32>
    %97 = arith.mulf %95, %96 : vector<4x2x16xf32>
    %cst_103 = arith.constant dense<0.000000e+00> : vector<4x2xf32>
    %98 = vector.multi_reduction <add>, %97, %cst_103 [2] : vector<4x2x16xf32> to vector<4x2xf32>
    %c0_104 = arith.constant 0 : index
    %c0_105 = arith.constant 0 : index
    %99 = vector.load %arg9[%c0_104, %c0_105] : memref<1x2xf32, #tpu.memory_space<vmem>>, vector<1x2xf32>
    %100 = vector.broadcast %99 : vector<1x2xf32> to vector<4x2xf32>
    %101 = arith.addf %98, %100 : vector<4x2xf32>
    %cst_106 = arith.constant 0.000000e+00 : f32
    %102 = vector.broadcast %cst_106 : f32 to vector<4x2xf32>
    %103 = arith.maximumf %101, %102 : vector<4x2xf32>
    %104 = vector.shape_cast %103 : vector<4x2xf32> to vector<4x2x1xf32>
    %c0_107 = arith.constant 0 : index
    %c0_108 = arith.constant 0 : index
    %105 = vector.load %arg10[%c0_107, %c0_108] : memref<2x16xf32, #tpu.memory_space<vmem>>, vector<2x16xf32>
    %106 = vector.shape_cast %105 : vector<2x16xf32> to vector<1x2x16xf32>
    %107 = vector.broadcast %104 : vector<4x2x1xf32> to vector<4x2x16xf32>
    %108 = vector.broadcast %106 : vector<1x2x16xf32> to vector<4x2x16xf32>
    %109 = arith.mulf %107, %108 : vector<4x2x16xf32>
    %cst_109 = arith.constant dense<0.000000e+00> : vector<4x16xf32>
    %110 = vector.multi_reduction <add>, %109, %cst_109 [1] : vector<4x2x16xf32> to vector<4x16xf32>
    %c0_110 = arith.constant 0 : index
    %c0_111 = arith.constant 0 : index
    %111 = vector.load %arg11[%c0_110, %c0_111] : memref<1x16xf32, #tpu.memory_space<vmem>>, vector<1x16xf32>
    %112 = vector.broadcast %111 : vector<1x16xf32> to vector<4x16xf32>
    %113 = arith.addf %110, %112 : vector<4x16xf32>
    %cst_112 = arith.constant 0.000000e+00 : f32
    %114 = vector.broadcast %cst_112 : f32 to vector<4x16xf32>
    %115 = arith.subf %114, %113 : vector<4x16xf32>
    %116 = math.exp %115 : vector<4x16xf32>
    %cst_113 = arith.constant 1.000000e+00 : f32
    %117 = vector.broadcast %cst_113 : f32 to vector<4x16xf32>
    %118 = arith.addf %117, %116 : vector<4x16xf32>
    %cst_114 = arith.constant 1.000000e+00 : f32
    %119 = vector.broadcast %cst_114 : f32 to vector<4x16xf32>
    %120 = arith.divf %119, %118 : vector<4x16xf32>
    %121 = vector.shape_cast %120 : vector<4x16xf32> to vector<4x1x16xf32>
    %122 = vector.broadcast %121 : vector<4x1x16xf32> to vector<4x64x16xf32>
    %123 = arith.mulf %88, %122 : vector<4x64x16xf32>
    %124 = vector.shape_cast %123 : vector<4x64x16xf32> to vector<256x16xf32>
    %125 = arith.truncf %124 : vector<256x16xf32> to vector<256x16xbf16>
    %c0_115 = arith.constant 0 : index
    %c0_116 = arith.constant 0 : index
    %126 = vector.load %arg4[%c0_115, %c0_116] : memref<16x16xbf16, #tpu.memory_space<vmem>>, vector<16x16xbf16>
    %cst_117 = arith.constant dense<0.000000e+00> : vector<256x16xf32>
    %127 = tpu.matmul %125, %126, %cst_117 {dimension_numbers = #tpu.dot_dimension_numbers<[1], [0], [0], [1], [0, 0, 1, 1], [], []>} : vector<256x16xbf16>, vector<16x16xbf16>, vector<256x16xf32> -> vector<256x16xf32>
    %c0_118 = arith.constant 0 : index
    %c0_119 = arith.constant 0 : index
    %128 = vector.load %arg7[%c0_118, %c0_119] : memref<1x16xf32, #tpu.memory_space<vmem>>, vector<1x16xf32>
    %129 = vector.broadcast %128 : vector<1x16xf32> to vector<256x16xf32>
    %130 = arith.addf %127, %129 : vector<256x16xf32>
    %131 = vector.shape_cast %130 : vector<256x16xf32> to vector<4x8x8x16xf32>
    %c0_120 = arith.constant 0 : index
    %c0_121 = arith.constant 0 : index
    %c0_122 = arith.constant 0 : index
    %c0_123 = arith.constant 0 : index
    %132 = vector.load %arg12[%c0_120, %c0_121, %c0_122, %c0_123] : memref<4x8x8x16xf32, #tpu.memory_space<vmem>>, vector<4x8x8x16xf32>
    tpu.vector_store %arg12[%c0_120, %c0_121, %c0_122, %c0_123], %131 {strides = array<i32>} : memref<4x8x8x16xf32, #tpu.memory_space<vmem>>, vector<4x8x8x16xf32>,
    return
  }
  func.func @transform_0(%arg0: i32) -> (i32, i32, i32, i32) {
    %c0_i32 = arith.constant 0 : i32
    %c0_i32_0 = arith.constant 0 : i32
    %c0_i32_1 = arith.constant 0 : i32
    %c0_i32_2 = arith.constant 0 : i32
    return %arg0, %c0_i32, %c0_i32_0, %c0_i32_1 : i32, i32, i32, i32
  }
  func.func @transform_1(%arg0: i32) -> (i32, i32) {
    %c0_i32 = arith.constant 0 : i32
    %c0_i32_0 = arith.constant 0 : i32
    %c0_i32_1 = arith.constant 0 : i32
    return %c0_i32, %c0_i32_0 : i32, i32
  }
  func.func @transform_2(%arg0: i32) -> (i32, i32, i32) {
    %c0_i32 = arith.constant 0 : i32
    %c0_i32_0 = arith.constant 0 : i32
    %c0_i32_1 = arith.constant 0 : i32
    %c0_i32_2 = arith.constant 0 : i32
    return %c0_i32, %c0_i32_0, %c0_i32_1 : i32, i32, i32
  }
  func.func @transform_3(%arg0: i32) -> (i32, i32) {
    %c0_i32 = arith.constant 0 : i32
    %c0_i32_0 = arith.constant 0 : i32
    %c0_i32_1 = arith.constant 0 : i32
    return %c0_i32, %c0_i32_0 : i32, i32
  }
  func.func @transform_4(%arg0: i32) -> (i32, i32) {
    %c0_i32 = arith.constant 0 : i32
    %c0_i32_0 = arith.constant 0 : i32
    %c0_i32_1 = arith.constant 0 : i32
    return %c0_i32, %c0_i32_0 : i32, i32
  }
  func.func @transform_5(%arg0: i32) -> (i32, i32) {
    %c0_i32 = arith.constant 0 : i32
    %c0_i32_0 = arith.constant 0 : i32
    %c0_i32_1 = arith.constant 0 : i32
    return %c0_i32, %c0_i32_0 : i32, i32
  }
  func.func @transform_6(%arg0: i32) -> (i32, i32) {
    %c0_i32 = arith.constant 0 : i32
    %c0_i32_0 = arith.constant 0 : i32
    %c0_i32_1 = arith.constant 0 : i32
    return %c0_i32, %c0_i32_0 : i32, i32
  }
  func.func @transform_7(%arg0: i32) -> (i32, i32) {
    %c0_i32 = arith.constant 0 : i32
    %c0_i32_0 = arith.constant 0 : i32
    %c0_i32_1 = arith.constant 0 : i32
    return %c0_i32, %c0_i32_0 : i32, i32
  }
  func.func @transform_8(%arg0: i32) -> (i32, i32) {
    %c0_i32 = arith.constant 0 : i32
    %c0_i32_0 = arith.constant 0 : i32
    %c0_i32_1 = arith.constant 0 : i32
    return %c0_i32, %c0_i32_0 : i32, i32
  }
  func.func @transform_9(%arg0: i32) -> (i32, i32) {
    %c0_i32 = arith.constant 0 : i32
    %c0_i32_0 = arith.constant 0 : i32
    %c0_i32_1 = arith.constant 0 : i32
    return %c0_i32, %c0_i32_0 : i32, i32
  }
  func.func @transform_10(%arg0: i32) -> (i32, i32) {
    %c0_i32 = arith.constant 0 : i32
    %c0_i32_0 = arith.constant 0 : i32
    %c0_i32_1 = arith.constant 0 : i32
    return %c0_i32, %c0_i32_0 : i32, i32
  }
  func.func @transform_11(%arg0: i32) -> (i32, i32, i32, i32) {
    %c0_i32 = arith.constant 0 : i32
    %c0_i32_0 = arith.constant 0 : i32
    %c0_i32_1 = arith.constant 0 : i32
    %c0_i32_2 = arith.constant 0 : i32
    return %arg0, %c0_i32, %c0_i32_0, %c0_i32_1 : i32, i32, i32, i32
  }
}

</mosaic_0001>

<llo_original>
// kernel: tpu_custom_call.1
$region0: #{tpu_custom_call.1}
  #allocation0 [shape = 'u32[]', space=smem, size = 0x4, offset = 0x4, fixed_abs, tag = 'smem constant byte address 0x4 - core index']
  #allocation1 [shape = 'u32[144,128]{1,0:T(1,128)}', space=vmem, size = 0x12000, scoped, tag = 'internal scratch']
  #allocation2 [shape = 'f32[4,18,18,16]{3,2,1,0:T(8,128)}', space=vmem, size = 0xd8000, scoped, tag = 'scratch operand']
  %s0 = inlined_call_operand.vmem [shape: bf16[8,16,16,8], index: 0, kind: input, shape index: {}]
  %s1 = inlined_call_operand.vmem [shape: bf16[8,16], index: 1, kind: input, shape index: {}]
  %s2 = inlined_call_operand.vmem [shape: bf16[9,16,16], index: 2, kind: input, shape index: {}]
  %s3 = inlined_call_operand.vmem [shape: bf16[16,16], index: 3, kind: input, shape index: {}]
  %s4 = inlined_call_operand.vmem [shape: f32[1,16], index: 4, kind: input, shape index: {}]
  %s5 = inlined_call_operand.vmem [shape: f32[1,16], index: 5, kind: input, shape index: {}]
  %s6 = inlined_call_operand.vmem [shape: f32[1,16], index: 6, kind: input, shape index: {}]
  %s7 = inlined_call_operand.vmem [shape: f32[2,16], index: 7, kind: input, shape index: {}]
  %s8 = inlined_call_operand.vmem [shape: f32[1,2], index: 8, kind: input, shape index: {}]
  %s9 = inlined_call_operand.vmem [shape: f32[2,16], index: 9, kind: input, shape index: {}]
  %s10 = inlined_call_operand.vmem [shape: f32[1,16], index: 10, kind: input, shape index: {}]
  %s11 = inlined_call_operand.hbm [shape: f32[8,8,8,16], index: 11, kind: output, shape index: {}]
  %s12 = sld [smem:[#allocation0]]
  $region77: #{tpu_custom_call.1} parent=0
    _
  %s14 = ssub.s32 1, %s12
  %s15 = scalar_select 0, %s14, %s12
  $region1: #{tpu_custom_call.1} parent=0
    #allocation3 [shape = 'u8[262144]{0}', space=vmem, size = 0x40000, scoped, tag = 'output window, operand 0']
    #allocation4 [shape = 's32[2]{0}', space=sflag, size = 0x8, scoped, tag = 'scoped memory for tpu_custom_call.1']
    %16 = vsyncpa [#allocation4], 0
    %s17 = scalar_lea.sflag [#allocation4], 1
    %18 = vsyncpa %s17, 0
    loop: start=0, step=1, limit=4
    $region2: #{tpu_custom_call.1} parent=1 // loop_pre_header
      _
    $region3: #{tpu_custom_call.1} parent=1 // loop_header
      %s20 = sphi 0, %s24
      %p21 = scmp.ge.s32.totalorder %s20, 4
      %s30 = sphi 0, %s32
      %s33 = sphi 0, %s30
      %s34 = sphi 0, %s33
      %s50 = sphi 0, %s34
      %s54 = sphi 0, %s54
      %s56 = sphi 0, %s54
      %s57 = sphi 0, %s56
      %s71 = sphi 0, %s57
      %s75 = sphi 0, %s75
      %s77 = sphi 0, %s75
      %s78 = sphi 0, %s77
      %s92 = sphi 0, %s78
      %s96 = sphi 0, %s96
      %s98 = sphi 0, %s96
      %s99 = sphi 0, %s98
      %s113 = sphi 0, %s99
      %s117 = sphi 0, %s117
      %s119 = sphi 0, %s117
      %s120 = sphi 0, %s119
      %s134 = sphi 0, %s120
      %s138 = sphi 0, %s138
      %s140 = sphi 0, %s138
      %s141 = sphi 0, %s140
      %s155 = sphi 0, %s141
      %s159 = sphi 0, %s159
      %s161 = sphi 0, %s159
      %s162 = sphi 0, %s161
      %s176 = sphi 0, %s162
      %s180 = sphi 0, %s180
      %s182 = sphi 0, %s180
      %s183 = sphi 0, %s182
      %s197 = sphi 0, %s183
      %s201 = sphi 0, %s201
      %s203 = sphi 0, %s201
      %s204 = sphi 0, %s203
      %s218 = sphi 0, %s204
      %s222 = sphi 0, %s222
      %s224 = sphi 0, %s222
      %s225 = sphi 0, %s224
      %s239 = sphi 0, %s225
      %s243 = sphi 0, %s243
      %s245 = sphi 0, %s243
      %s246 = sphi 0, %s245
      %s260 = sphi 0, %s246
      %s266 = sphi 0, %s268
      %s269 = sphi 0, %s266
      %s270 = sphi 0, %s269
      %s286 = sphi 0, %s270
    $region4: #{tpu_custom_call.1} parent=1 // loop_header_branch
      %23 = sbr.rel (%p21) target = $region8
    $region5: #{tpu_custom_call.1} parent=1 // loop_body
      %s25 = ssub.s32 %s20, 1
      %s26 = ssub.s32 %s20, 2
      %s27 = sadd.s32 %s20, 1
      %s28 = ssub.s32 %s20, %s27
      %p29 = scmp.eq.s32.totalorder %s28, 0
      %s31 = sadd.s32 %s30, 1
      %s32 = scalar_select %p29, %s30, %s31
      %p35 = pneg %p29
      %p36 = scmp.eq.s32.totalorder %s20, 1
      %p37 = por %p35, %p36
      %p38 = scmp.ne.s32.totalorder %s30, %s33
      %p39 = scmp.eq.s32.totalorder %s20, 0
      %p40 = por %p38, %p39
      %p41 = scmp.ne.s32.totalorder %s30, %s33
      %p42 = scmp.eq.s32.totalorder %s25, 1
      %p43 = por %p41, %p42
      %p44 = scmp.ne.s32.totalorder %s33, %s34
      %p45 = scmp.eq.s32.totalorder %s25, 0
      %p46 = por %p44, %p45
      %p47 = scmp.ne.s32.totalorder %s33, %s34
      %p48 = scmp.eq.s32.totalorder %s26, 1
      %p49 = por %p47, %p48
      %p51 = scmp.ne.s32.totalorder %s34, %s50
      %p52 = scmp.eq.s32.totalorder %s26, 0
      %p53 = por %p51, %p52
      %s55 = sadd.s32 %s54, 1
      %p58 = scmp.eq.s32.totalorder %s20, 1
      %p59 = scmp.ne.s32.totalorder %s54, %s56
      %p60 = scmp.eq.s32.totalorder %s20, 0
      %p61 = por %p59, %p60
      %p62 = scmp.ne.s32.totalorder %s54, %s56
      %p63 = scmp.eq.s32.totalorder %s25, 1
      %p64 = por %p62, %p63
      %p65 = scmp.ne.s32.totalorder %s56, %s57
      %p66 = scmp.eq.s32.totalorder %s25, 0
      %p67 = por %p65, %p66
      %p68 = scmp.ne.s32.totalorder %s56, %s57
      %p69 = scmp.eq.s32.totalorder %s26, 1
      %p70 = por %p68, %p69
      %p72 = scmp.ne.s32.totalorder %s57, %s71
      %p73 = scmp.eq.s32.totalorder %s26, 0
      %p74 = por %p72, %p73
      %s76 = sadd.s32 %s75, 1
      %p79 = scmp.eq.s32.totalorder %s20, 1
      %p80 = scmp.ne.s32.totalorder %s75, %s77
      %p81 = scmp.eq.s32.totalorder %s20, 0
      %p82 = por %p80, %p81
      %p83 = scmp.ne.s32.totalorder %s75, %s77
      %p84 = scmp.eq.s32.totalorder %s25, 1
      %p85 = por %p83, %p84
      %p86 = scmp.ne.s32.totalorder %s77, %s78
      %p87 = scmp.eq.s32.totalorder %s25, 0
      %p88 = por %p86, %p87
      %p89 = scmp.ne.s32.totalorder %s77, %s78
      %p90 = scmp.eq.s32.totalorder %s26, 1
      %p91 = por %p89, %p90
      %p93 = scmp.ne.s32.totalorder %s78, %s92
      %p94 = scmp.eq.s32.totalorder %s26, 0
      %p95 = por %p93, %p94
      %s97 = sadd.s32 %s96, 1
      %p100 = scmp.eq.s32.totalorder %s20, 1
      %p101 = scmp.ne.s32.totalorder %s96, %s98
      %p102 = scmp.eq.s32.totalorder %s20, 0
      %p103 = por %p101, %p102
      %p104 = scmp.ne.s32.totalorder %s96, %s98
      %p105 = scmp.eq.s32.totalorder %s25, 1
      %p106 = por %p104, %p105
      %p107 = scmp.ne.s32.totalorder %s98, %s99
      %p108 = scmp.eq.s32.totalorder %s25, 0
      %p109 = por %p107, %p108
      %p110 = scmp.ne.s32.totalorder %s98, %s99
      %p111 = scmp.eq.s32.totalorder %s26, 1
      %p112 = por %p110, %p111
      %p114 = scmp.ne.s32.totalorder %s99, %s113
      %p115 = scmp.eq.s32.totalorder %s26, 0
      %p116 = por %p114, %p115
      %s118 = sadd.s32 %s117, 1
      %p121 = scmp.eq.s32.totalorder %s20, 1
      %p122 = scmp.ne.s32.totalorder %s117, %s119
      %p123 = scmp.eq.s32.totalorder %s20, 0
      %p124 = por %p122, %p123
      %p125 = scmp.ne.s32.totalorder %s117, %s119
      %p126 = scmp.eq.s32.totalorder %s25, 1
      %p127 = por %p125, %p126
      %p128 = scmp.ne.s32.totalorder %s119, %s120
      %p129 = scmp.eq.s32.totalorder %s25, 0
      %p130 = por %p128, %p129
      %p131 = scmp.ne.s32.totalorder %s119, %s120
      %p132 = scmp.eq.s32.totalorder %s26, 1
      %p133 = por %p131, %p132
      %p135 = scmp.ne.s32.totalorder %s120, %s134
      %p136 = scmp.eq.s32.totalorder %s26, 0
      %p137 = por %p135, %p136
      %s139 = sadd.s32 %s138, 1
      %p142 = scmp.eq.s32.totalorder %s20, 1
      %p143 = scmp.ne.s32.totalorder %s138, %s140
      %p144 = scmp.eq.s32.totalorder %s20, 0
      %p145 = por %p143, %p144
      %p146 = scmp.ne.s32.totalorder %s138, %s140
      %p147 = scmp.eq.s32.totalorder %s25, 1
      %p148 = por %p146, %p147
      %p149 = scmp.ne.s32.totalorder %s140, %s141
      %p150 = scmp.eq.s32.totalorder %s25, 0
      %p151 = por %p149, %p150
      %p152 = scmp.ne.s32.totalorder %s140, %s141
      %p153 = scmp.eq.s32.totalorder %s26, 1
      %p154 = por %p152, %p153
      %p156 = scmp.ne.s32.totalorder %s141, %s155
      %p157 = scmp.eq.s32.totalorder %s26, 0
      %p158 = por %p156, %p157
      %s160 = sadd.s32 %s159, 1
      %p163 = scmp.eq.s32.totalorder %s20, 1
      %p164 = scmp.ne.s32.totalorder %s159, %s161
      %p165 = scmp.eq.s32.totalorder %s20, 0
      %p166 = por %p164, %p165
      %p167 = scmp.ne.s32.totalorder %s159, %s161
      %p168 = scmp.eq.s32.totalorder %s25, 1
      %p169 = por %p167, %p168
      %p170 = scmp.ne.s32.totalorder %s161, %s162
      %p171 = scmp.eq.s32.totalorder %s25, 0
      %p172 = por %p170, %p171
      %p173 = scmp.ne.s32.totalorder %s161, %s162
      %p174 = scmp.eq.s32.totalorder %s26, 1
      %p175 = por %p173, %p174
      %p177 = scmp.ne.s32.totalorder %s162, %s176
      %p178 = scmp.eq.s32.totalorder %s26, 0
      %p179 = por %p177, %p178
      %s181 = sadd.s32 %s180, 1
      %p184 = scmp.eq.s32.totalorder %s20, 1
      %p185 = scmp.ne.s32.totalorder %s180, %s182
      %p186 = scmp.eq.s32.totalorder %s20, 0
      %p187 = por %p185, %p186
      %p188 = scmp.ne.s32.totalorder %s180, %s182
      %p189 = scmp.eq.s32.totalorder %s25, 1
      %p190 = por %p188, %p189
      %p191 = scmp.ne.s32.totalorder %s182, %s183
      %p192 = scmp.eq.s32.totalorder %s25, 0
      %p193 = por %p191, %p192
      %p194 = scmp.ne.s32.totalorder %s182, %s183
      %p195 = scmp.eq.s32.totalorder %s26, 1
      %p196 = por %p194, %p195
      %p198 = scmp.ne.s32.totalorder %s183, %s197
      %p199 = scmp.eq.s32.totalorder %s26, 0
      %p200 = por %p198, %p199
      %s202 = sadd.s32 %s201, 1
      %p205 = scmp.eq.s32.totalorder %s20, 1
      %p206 = scmp.ne.s32.totalorder %s201, %s203
      %p207 = scmp.eq.s32.totalorder %s20, 0
      %p208 = por %p206, %p207
      %p209 = scmp.ne.s32.totalorder %s201, %s203
      %p210 = scmp.eq.s32.totalorder %s25, 1
      %p211 = por %p209, %p210
      %p212 = scmp.ne.s32.totalorder %s203, %s204
      %p213 = scmp.eq.s32.totalorder %s25, 0
      %p214 = por %p212, %p213
      %p215 = scmp.ne.s32.totalorder %s203, %s204
      %p216 = scmp.eq.s32.totalorder %s26, 1
      %p217 = por %p215, %p216
      %p219 = scmp.ne.s32.totalorder %s204, %s218
      %p220 = scmp.eq.s32.totalorder %s26, 0
      %p221 = por %p219, %p220
      %s223 = sadd.s32 %s222, 1
      %p226 = scmp.eq.s32.totalorder %s20, 1
      %p227 = scmp.ne.s32.totalorder %s222, %s224
      %p228 = scmp.eq.s32.totalorder %s20, 0
      %p229 = por %p227, %p228
      %p230 = scmp.ne.s32.totalorder %s222, %s224
      %p231 = scmp.eq.s32.totalorder %s25, 1
      %p232 = por %p230, %p231
      %p233 = scmp.ne.s32.totalorder %s224, %s225
      %p234 = scmp.eq.s32.totalorder %s25, 0
      %p235 = por %p233, %p234
      %p236 = scmp.ne.s32.totalorder %s224, %s225
      %p237 = scmp.eq.s32.totalorder %s26, 1
      %p238 = por %p236, %p237
      %p240 = scmp.ne.s32.totalorder %s225, %s239
      %p241 = scmp.eq.s32.totalorder %s26, 0
      %p242 = por %p240, %p241
      %s244 = sadd.s32 %s243, 1
      %p247 = scmp.eq.s32.totalorder %s20, 1
      %p248 = scmp.ne.s32.totalorder %s243, %s245
      %p249 = scmp.eq.s32.totalorder %s20, 0
      %p250 = por %p248, %p249
      %p251 = scmp.ne.s32.totalorder %s243, %s245
      %p252 = scmp.eq.s32.totalorder %s25, 1
      %p253 = por %p251, %p252
      %p254 = scmp.ne.s32.totalorder %s245, %s246
      %p255 = scmp.eq.s32.totalorder %s25, 0
      %p256 = por %p254, %p255
      %p257 = scmp.ne.s32.totalorder %s245, %s246
      %p258 = scmp.eq.s32.totalorder %s26, 1
      %p259 = por %p257, %p258
      %p261 = scmp.ne.s32.totalorder %s246, %s260
      %p262 = scmp.eq.s32.totalorder %s26, 0
      %p263 = por %p261, %p262
      %s264 = ssub.s32 %s20, %s27
      %p265 = scmp.eq.s32.totalorder %s264, 0
      %s267 = sadd.s32 %s266, 1
      %s268 = scalar_select %p265, %s266, %s267
      %p271 = pneg %p265
      %p272 = scmp.eq.s32.totalorder %s20, 1
      %p273 = por %p271, %p272
      %p274 = scmp.ne.s32.totalorder %s266, %s269
      %p275 = scmp.eq.s32.totalorder %s20, 0
      %p276 = por %p274, %p275
      %p277 = scmp.ne.s32.totalorder %s266, %s269
      %p278 = scmp.eq.s32.totalorder %s25, 1
      %p279 = por %p277, %p278
      %p280 = scmp.ne.s32.totalorder %s269, %s270
      %p281 = scmp.eq.s32.totalorder %s25, 0
      %p282 = por %p280, %p281
      %p283 = scmp.ne.s32.totalorder %s269, %s270
      %p284 = scmp.eq.s32.totalorder %s26, 1
      %p285 = por %p283, %p284
      %p287 = scmp.ne.s32.totalorder %s270, %s286
      %p288 = scmp.eq.s32.totalorder %s26, 0
      %p289 = por %p287, %p288
      %p290 = scmp.le.s32.totalorder 1, %s20
      %p291 = scmp.lt.s32.totalorder %s20, 3
      %p292 = pnand %p290, %p291
      %p293 = pneg %p292
      // Predicated region
      $region9: #{tpu_custom_call.1} parent=5 // pred_check
        _
      $region10: #{tpu_custom_call.1} parent=5 // pred_check_branch
        %295 = sbr.rel (%p292) target = $region12
      $region11: #{tpu_custom_call.1} parent=5 // pred_region
        %s296 = ssub.s32 %s20, 1
        // Predicated region
        $region13: #{tpu_custom_call.1} parent=11 // pred_check
          %p297 = pneg %p67
        $region14: #{tpu_custom_call.1} parent=11 // pred_check_branch
          %299 = sbr.rel (%p297) target = $region16
        $region15: #{tpu_custom_call.1} parent=11 // pred_region
          _
        $region16: #{tpu_custom_call.1} parent=11 // pred_fallthru
          _
        // Predicated region
        $region17: #{tpu_custom_call.1} parent=11 // pred_check
          %p300 = pneg %p88
        $region18: #{tpu_custom_call.1} parent=11 // pred_check_branch
          %302 = sbr.rel (%p300) target = $region20
        $region19: #{tpu_custom_call.1} parent=11 // pred_region
          _
        $region20: #{tpu_custom_call.1} parent=11 // pred_fallthru
          _
        // Predicated region
        $region21: #{tpu_custom_call.1} parent=11 // pred_check
          %p303 = pneg %p109
        $region22: #{tpu_custom_call.1} parent=11 // pred_check_branch
          %305 = sbr.rel (%p303) target = $region24
        $region23: #{tpu_custom_call.1} parent=11 // pred_region
          _
        $region24: #{tpu_custom_call.1} parent=11 // pred_fallthru
          _
        // Predicated region
        $region25: #{tpu_custom_call.1} parent=11 // pred_check
          %p306 = pneg %p130
        $region26: #{tpu_custom_call.1} parent=11 // pred_check_branch
          %308 = sbr.rel (%p306) target = $region28
        $region27: #{tpu_custom_call.1} parent=11 // pred_region
          _
        $region28: #{tpu_custom_call.1} parent=11 // pred_fallthru
          _
        // Predicated region
        $region29: #{tpu_custom_call.1} parent=11 // pred_check
          %p309 = pneg %p151
        $region30: #{tpu_custom_call.1} parent=11 // pred_check_branch
          %311 = sbr.rel (%p309) target = $region32
        $region31: #{tpu_custom_call.1} parent=11 // pred_region
          _
        $region32: #{tpu_custom_call.1} parent=11 // pred_fallthru
          _
        // Predicated region
        $region33: #{tpu_custom_call.1} parent=11 // pred_check
          %p312 = pneg %p172
        $region34: #{tpu_custom_call.1} parent=11 // pred_check_branch
          %314 = sbr.rel (%p312) target = $region36
        $region35: #{tpu_custom_call.1} parent=11 // pred_region
          _
        $region36: #{tpu_custom_call.1} parent=11 // pred_fallthru
          _
        // Predicated region
        $region37: #{tpu_custom_call.1} parent=11 // pred_check
          %p315 = pneg %p193
        $region38: #{tpu_custom_call.1} parent=11 // pred_check_branch
          %317 = sbr.rel (%p315) target = $region40
        $region39: #{tpu_custom_call.1} parent=11 // pred_region
          _
        $region40: #{tpu_custom_call.1} parent=11 // pred_fallthru
          _
        // Predicated region
        $region41: #{tpu_custom_call.1} parent=11 // pred_check
          %p318 = pneg %p214
        $region42: #{tpu_custom_call.1} parent=11 // pred_check_branch
          %320 = sbr.rel (%p318) target = $region44
        $region43: #{tpu_custom_call.1} parent=11 // pred_region
          _
        $region44: #{tpu_custom_call.1} parent=11 // pred_fallthru
          _
        // Predicated region
        $region45: #{tpu_custom_call.1} parent=11 // pred_check
          %p321 = pneg %p235
        $region46: #{tpu_custom_call.1} parent=11 // pred_check_branch
          %323 = sbr.rel (%p321) target = $region48
        $region47: #{tpu_custom_call.1} parent=11 // pred_region
          _
        $region48: #{tpu_custom_call.1} parent=11 // pred_fallthru
          _
        // Predicated region
        $region49: #{tpu_custom_call.1} parent=11 // pred_check
          %p324 = pneg %p256
        $region50: #{tpu_custom_call.1} parent=11 // pred_check_branch
          %326 = sbr.rel (%p324) target = $region52
        $region51: #{tpu_custom_call.1} parent=11 // pred_region
          _
        $region52: #{tpu_custom_call.1} parent=11 // pred_fallthru
          _
      $region12: #{tpu_custom_call.1} parent=5 // pred_fallthru
        _
      %p327 = scmp.lt.s32.totalorder %s20, 2
      // Predicated region
      $region53: #{tpu_custom_call.1} parent=5 // pred_check
        %p328 = pneg %p327
      $region54: #{tpu_custom_call.1} parent=5 // pred_check_branch
        %330 = sbr.rel (%p328) target = $region56
      $region55: #{tpu_custom_call.1} parent=5 // pred_region
        // Predicated region
        $region57: #{tpu_custom_call.1} parent=55 // pred_check
          %p331 = pneg %p40
        $region58: #{tpu_custom_call.1} parent=55 // pred_check_branch
          %333 = sbr.rel (%p331) target = $region60
        $region59: #{tpu_custom_call.1} parent=55 // pred_region
          %s334 = smul.u32 4, %s20
          %p335 = scmp.lt.s32.totalorder %s334, 7
          %s336 = scalar_select %p335, %s334, 7
          %s337 = smul.addr %s336, 32
          %s338 = smul.addr %s337, 4
          %s339 = scalar_lea.vmem %s0, %s338
          %s340 = smul.u32 4, %s20
        $region60: #{tpu_custom_call.1} parent=55 // pred_fallthru
          _
      $region56: #{tpu_custom_call.1} parent=5 // pred_fallthru
        _
      %p341 = scmp.le.s32.totalorder 1, %s20
      %p342 = scmp.lt.s32.totalorder %s20, 3
      %p343 = pnand %p341, %p342
      %p344 = pneg %p343
      // Predicated region
      $region61: #{tpu_custom_call.1} parent=5 // pred_check
        _
      $region62: #{tpu_custom_call.1} parent=5 // pred_check_branch
        %346 = sbr.rel (%p343) target = $region64
      $region63: #{tpu_custom_call.1} parent=5 // pred_region
        %s347 = ssub.s32 %s20, 1
        %s348 = smul.u32 4, %s25
        %p349 = scmp.lt.s32.totalorder %s348, 7
        %s350 = scalar_select %p349, %s348, 7
        %s351 = smul.addr %s350, 32
        %s352 = smul.addr %s351, 4
        %s353 = scalar_lea.vmem %s0, %s352
        %p354 = pneg %p46
        %p355 = pneg %p43
        %p356 = pneg %p67
        %p357 = pneg %p64
        %p358 = pneg %p88
        %p359 = pneg %p85
        %p360 = pneg %p109
        %p361 = pneg %p106
        %p362 = pneg %p130
        %p363 = pneg %p127
        %p364 = pneg %p151
        %p365 = pneg %p148
        %p366 = pneg %p172
        %p367 = pneg %p169
        %p368 = pneg %p193
        %p369 = pneg %p190
        %p370 = pneg %p214
        %p371 = pneg %p211
        %p372 = pneg %p235
        %p373 = pneg %p232
        %p374 = pneg %p256
        %p375 = pneg %p253
        %p376 = pneg %p282
        %p377 = pneg %p279
        %s378 = sand.u32 %s269, 1
        %s379 = scalar_lea.sflag [#allocation4], %s378
        %s380 = sand.u32 %s269, 1
        %s381 = smul.addr %s380, 256
        %s382 = scalar_lea.vmem [#allocation3], %s381
        %s383 = smul.u32 4, %s25
        %p384 = scmp.lt.s32.totalorder %s383, 7
        %s385 = scalar_select %p384, %s383, 7
        %s386 = smul.addr %s385, 32
        %s387 = smul.addr %s386, 4
        %s388 = scalar_lea.vmem %s0, %s387
        %s389 = smul.u32 4, %s25
        %s390 = smul.u32 4, %s25
        %v392 = vld [vmem:[%s388] sm:$0xf]
        %v393 = vld [vmem:[%s388 + $0x4] sm:$0xf]
        %v394 = vld [vmem:[%s388 + $0x8] sm:$0xf]
        %v395 = vld [vmem:[%s388 + $0xc] sm:$0xf]
        %v396 = vld [vmem:[%s388 + $0x10] sm:$0xf]
        %v397 = vld [vmem:[%s388 + $0x14] sm:$0xf]
        %v398 = vld [vmem:[%s388 + $0x18] sm:$0xf]
        %v399 = vld [vmem:[%s388 + $0x1c] sm:$0xf]
        %v400 = vld [vmem:[%s388 + $0x20] sm:$0xf]
        %v401 = vld [vmem:[%s388 + $0x24] sm:$0xf]
        %v402 = vld [vmem:[%s388 + $0x28] sm:$0xf]
        %v403 = vld [vmem:[%s388 + $0x2c] sm:$0xf]
        %v404 = vld [vmem:[%s388 + $0x30] sm:$0xf]
        %v405 = vld [vmem:[%s388 + $0x34] sm:$0xf]
        %v406 = vld [vmem:[%s388 + $0x38] sm:$0xf]
        %v407 = vld [vmem:[%s388 + $0x3c] sm:$0xf]
        %v408 = vld [vmem:[%s388 + $0x40] sm:$0xf]
        %v409 = vld [vmem:[%s388 + $0x44] sm:$0xf]
        %v410 = vld [vmem:[%s388 + $0x48] sm:$0xf]
        %v411 = vld [vmem:[%s388 + $0x4c] sm:$0xf]
        %v412 = vld [vmem:[%s388 + $0x50] sm:$0xf]
        %v413 = vld [vmem:[%s388 + $0x54] sm:$0xf]
        %v414 = vld [vmem:[%s388 + $0x58] sm:$0xf]
        %v415 = vld [vmem:[%s388 + $0x5c] sm:$0xf]
        %v416 = vld [vmem:[%s388 + $0x60] sm:$0xf]
        %v417 = vld [vmem:[%s388 + $0x64] sm:$0xf]
        %v418 = vld [vmem:[%s388 + $0x68] sm:$0xf]
        %v419 = vld [vmem:[%s388 + $0x6c] sm:$0xf]
        %v420 = vld [vmem:[%s388 + $0x70] sm:$0xf]
        %v421 = vld [vmem:[%s388 + $0x74] sm:$0xf]
        %v422 = vld [vmem:[%s388 + $0x78] sm:$0xf]
        %v423 = vld [vmem:[%s388 + $0x7c] sm:$0xf]
        %v424 = vld [vmem:[%s388 + $0x80] sm:$0xf]
        %v425 = vld [vmem:[%s388 + $0x84] sm:$0xf]
        %v426 = vld [vmem:[%s388 + $0x88] sm:$0xf]
        %v427 = vld [vmem:[%s388 + $0x8c] sm:$0xf]
        %v428 = vld [vmem:[%s388 + $0x90] sm:$0xf]
        %v429 = vld [vmem:[%s388 + $0x94] sm:$0xf]
        %v430 = vld [vmem:[%s388 + $0x98] sm:$0xf]
        %v431 = vld [vmem:[%s388 + $0x9c] sm:$0xf]
        %v432 = vld [vmem:[%s388 + $0xa0] sm:$0xf]
        %v433 = vld [vmem:[%s388 + $0xa4] sm:$0xf]
        %v434 = vld [vmem:[%s388 + $0xa8] sm:$0xf]
        %v435 = vld [vmem:[%s388 + $0xac] sm:$0xf]
        %v436 = vld [vmem:[%s388 + $0xb0] sm:$0xf]
        %v437 = vld [vmem:[%s388 + $0xb4] sm:$0xf]
        %v438 = vld [vmem:[%s388 + $0xb8] sm:$0xf]
        %v439 = vld [vmem:[%s388 + $0xbc] sm:$0xf]
        %v440 = vld [vmem:[%s388 + $0xc0] sm:$0xf]
        %v441 = vld [vmem:[%s388 + $0xc4] sm:$0xf]
        %v442 = vld [vmem:[%s388 + $0xc8] sm:$0xf]
        %v443 = vld [vmem:[%s388 + $0xcc] sm:$0xf]
        %v444 = vld [vmem:[%s388 + $0xd0] sm:$0xf]
        %v445 = vld [vmem:[%s388 + $0xd4] sm:$0xf]
        %v446 = vld [vmem:[%s388 + $0xd8] sm:$0xf]
        %v447 = vld [vmem:[%s388 + $0xdc] sm:$0xf]
        %v448 = vld [vmem:[%s388 + $0xe0] sm:$0xf]
        %v449 = vld [vmem:[%s388 + $0xe4] sm:$0xf]
        %v450 = vld [vmem:[%s388 + $0xe8] sm:$0xf]
        %v451 = vld [vmem:[%s388 + $0xec] sm:$0xf]
        %v452 = vld [vmem:[%s388 + $0xf0] sm:$0xf]
        %v453 = vld [vmem:[%s388 + $0xf4] sm:$0xf]
        %v454 = vld [vmem:[%s388 + $0xf8] sm:$0xf]
        %v455 = vld [vmem:[%s388 + $0xfc] sm:$0xf]
        %v456 = vld [vmem:[%s388 + $0x100] sm:$0xf]
        %v457 = vld [vmem:[%s388 + $0x104] sm:$0xf]
        %v458 = vld [vmem:[%s388 + $0x108] sm:$0xf]
        %v459 = vld [vmem:[%s388 + $0x10c] sm:$0xf]
        %v460 = vld [vmem:[%s388 + $0x110] sm:$0xf]
        %v461 = vld [vmem:[%s388 + $0x114] sm:$0xf]
        %v462 = vld [vmem:[%s388 + $0x118] sm:$0xf]
        %v463 = vld [vmem:[%s388 + $0x11c] sm:$0xf]
        %v464 = vld [vmem:[%s388 + $0x120] sm:$0xf]
        %v465 = vld [vmem:[%s388 + $0x124] sm:$0xf]
        %v466 = vld [vmem:[%s388 + $0x128] sm:$0xf]
        %v467 = vld [vmem:[%s388 + $0x12c] sm:$0xf]
        %v468 = vld [vmem:[%s388 + $0x130] sm:$0xf]
        %v469 = vld [vmem:[%s388 + $0x134] sm:$0xf]
        %v470 = vld [vmem:[%s388 + $0x138] sm:$0xf]
        %v471 = vld [vmem:[%s388 + $0x13c] sm:$0xf]
        %v472 = vld [vmem:[%s388 + $0x140] sm:$0xf]
        %v473 = vld [vmem:[%s388 + $0x144] sm:$0xf]
        %v474 = vld [vmem:[%s388 + $0x148] sm:$0xf]
        %v475 = vld [vmem:[%s388 + $0x14c] sm:$0xf]
        %v476 = vld [vmem:[%s388 + $0x150] sm:$0xf]
        %v477 = vld [vmem:[%s388 + $0x154] sm:$0xf]
        %v478 = vld [vmem:[%s388 + $0x158] sm:$0xf]
        %v479 = vld [vmem:[%s388 + $0x15c] sm:$0xf]
        %v480 = vld [vmem:[%s388 + $0x160] sm:$0xf]
        %v481 = vld [vmem:[%s388 + $0x164] sm:$0xf]
        %v482 = vld [vmem:[%s388 + $0x168] sm:$0xf]
        %v483 = vld [vmem:[%s388 + $0x16c] sm:$0xf]
        %v484 = vld [vmem:[%s388 + $0x170] sm:$0xf]
        %v485 = vld [vmem:[%s388 + $0x174] sm:$0xf]
        %v486 = vld [vmem:[%s388 + $0x178] sm:$0xf]
        %v487 = vld [vmem:[%s388 + $0x17c] sm:$0xf]
        %v488 = vld [vmem:[%s388 + $0x180] sm:$0xf]
        %v489 = vld [vmem:[%s388 + $0x184] sm:$0xf]
        %v490 = vld [vmem:[%s388 + $0x188] sm:$0xf]
        %v491 = vld [vmem:[%s388 + $0x18c] sm:$0xf]
        %v492 = vld [vmem:[%s388 + $0x190] sm:$0xf]
        %v493 = vld [vmem:[%s388 + $0x194] sm:$0xf]
        %v494 = vld [vmem:[%s388 + $0x198] sm:$0xf]
        %v495 = vld [vmem:[%s388 + $0x19c] sm:$0xf]
        %v496 = vld [vmem:[%s388 + $0x1a0] sm:$0xf]
        %v497 = vld [vmem:[%s388 + $0x1a4] sm:$0xf]
        %v498 = vld [vmem:[%s388 + $0x1a8] sm:$0xf]
        %v499 = vld [vmem:[%s388 + $0x1ac] sm:$0xf]
        %v500 = vld [vmem:[%s388 + $0x1b0] sm:$0xf]
        %v501 = vld [vmem:[%s388 + $0x1b4] sm:$0xf]
        %v502 = vld [vmem:[%s388 + $0x1b8] sm:$0xf]
        %v503 = vld [vmem:[%s388 + $0x1bc] sm:$0xf]
        %v504 = vld [vmem:[%s388 + $0x1c0] sm:$0xf]
        %v505 = vld [vmem:[%s388 + $0x1c4] sm:$0xf]
        %v506 = vld [vmem:[%s388 + $0x1c8] sm:$0xf]
        %v507 = vld [vmem:[%s388 + $0x1cc] sm:$0xf]
        %v508 = vld [vmem:[%s388 + $0x1d0] sm:$0xf]
        %v509 = vld [vmem:[%s388 + $0x1d4] sm:$0xf]
        %v510 = vld [vmem:[%s388 + $0x1d8] sm:$0xf]
        %v511 = vld [vmem:[%s388 + $0x1dc] sm:$0xf]
        %v512 = vld [vmem:[%s388 + $0x1e0] sm:$0xf]
        %v513 = vld [vmem:[%s388 + $0x1e4] sm:$0xf]
        %v514 = vld [vmem:[%s388 + $0x1e8] sm:$0xf]
        %v515 = vld [vmem:[%s388 + $0x1ec] sm:$0xf]
        %v516 = vld [vmem:[%s388 + $0x1f0] sm:$0xf]
        %v517 = vld [vmem:[%s388 + $0x1f4] sm:$0xf]
        %v518 = vld [vmem:[%s388 + $0x1f8] sm:$0xf]
        %v519 = vld [vmem:[%s388 + $0x1fc] sm:$0xf]
        %v520 = vld [vmem:[%s1] sm:$0xf]
        %v521 = vld [vmem:[%s4] sm:$0x1]
        %v523 = vlaneseq
        %v524 = vshrl.u32 %v523, 7
        %v525 = vsub.s32 0, %v524
        %v526 = vrot.slane %v521, %v525
        %v656 = vunpack.c.l.b16 %v392
        %v657 = vunpack.c.l.b16 %v393
        %v658 = vunpack.c.l.b16 %v394
        %v659 = vunpack.c.l.b16 %v395
        %v660 = vunpack.c.l.b16 %v396
        %v661 = vunpack.c.l.b16 %v397
        %v662 = vunpack.c.l.b16 %v398
        %v663 = vunpack.c.l.b16 %v399
        %v664 = vunpack.c.l.b16 %v400
        %v665 = vunpack.c.l.b16 %v401
        %v666 = vunpack.c.l.b16 %v402
        %v667 = vunpack.c.l.b16 %v403
        %v668 = vunpack.c.l.b16 %v404
        %v669 = vunpack.c.l.b16 %v405
        %v670 = vunpack.c.l.b16 %v406
        %v671 = vunpack.c.l.b16 %v407
        %v672 = vunpack.c.l.b16 %v408
        %v673 = vunpack.c.l.b16 %v409
        %v674 = vunpack.c.l.b16 %v410
        %v675 = vunpack.c.l.b16 %v411
        %v676 = vunpack.c.l.b16 %v412
        %v677 = vunpack.c.l.b16 %v413
        %v678 = vunpack.c.l.b16 %v414
        %v679 = vunpack.c.l.b16 %v415
        %v680 = vunpack.c.l.b16 %v416
        %v681 = vunpack.c.l.b16 %v417
        %v682 = vunpack.c.l.b16 %v418
        %v683 = vunpack.c.l.b16 %v419
        %v684 = vunpack.c.l.b16 %v420
        %v685 = vunpack.c.l.b16 %v421
        %v686 = vunpack.c.l.b16 %v422
        %v687 = vunpack.c.l.b16 %v423
        %v688 = vunpack.c.l.b16 %v424
        %v689 = vunpack.c.l.b16 %v425
        %v690 = vunpack.c.l.b16 %v426
        %v691 = vunpack.c.l.b16 %v427
        %v692 = vunpack.c.l.b16 %v428
        %v693 = vunpack.c.l.b16 %v429
        %v694 = vunpack.c.l.b16 %v430
        %v695 = vunpack.c.l.b16 %v431
        %v696 = vunpack.c.l.b16 %v432
        %v697 = vunpack.c.l.b16 %v433
        %v698 = vunpack.c.l.b16 %v434
        %v699 = vunpack.c.l.b16 %v435
        %v700 = vunpack.c.l.b16 %v436
        %v701 = vunpack.c.l.b16 %v437
        %v702 = vunpack.c.l.b16 %v438
        %v703 = vunpack.c.l.b16 %v439
        %v704 = vunpack.c.l.b16 %v440
        %v705 = vunpack.c.l.b16 %v441
        %v706 = vunpack.c.l.b16 %v442
        %v707 = vunpack.c.l.b16 %v443
        %v708 = vunpack.c.l.b16 %v444
        %v709 = vunpack.c.l.b16 %v445
        %v710 = vunpack.c.l.b16 %v446
        %v711 = vunpack.c.l.b16 %v447
        %v712 = vunpack.c.l.b16 %v448
        %v713 = vunpack.c.l.b16 %v449
        %v714 = vunpack.c.l.b16 %v450
        %v715 = vunpack.c.l.b16 %v451
        %v716 = vunpack.c.l.b16 %v452
        %v717 = vunpack.c.l.b16 %v453
        %v718 = vunpack.c.l.b16 %v454
        %v719 = vunpack.c.l.b16 %v455
        %v720 = vunpack.c.l.b16 %v456
        %v721 = vunpack.c.l.b16 %v457
        %v722 = vunpack.c.l.b16 %v458
        %v723 = vunpack.c.l.b16 %v459
        %v724 = vunpack.c.l.b16 %v460
        %v725 = vunpack.c.l.b16 %v461
        %v726 = vunpack.c.l.b16 %v462
        %v727 = vunpack.c.l.b16 %v463
        %v728 = vunpack.c.l.b16 %v464
        %v729 = vunpack.c.l.b16 %v465
        %v730 = vunpack.c.l.b16 %v466
        %v731 = vunpack.c.l.b16 %v467
        %v732 = vunpack.c.l.b16 %v468
        %v733 = vunpack.c.l.b16 %v469
        %v734 = vunpack.c.l.b16 %v470
        %v735 = vunpack.c.l.b16 %v471
        %v736 = vunpack.c.l.b16 %v472
        %v737 = vunpack.c.l.b16 %v473
        %v738 = vunpack.c.l.b16 %v474
        %v739 = vunpack.c.l.b16 %v475
        %v740 = vunpack.c.l.b16 %v476
        %v741 = vunpack.c.l.b16 %v477
        %v742 = vunpack.c.l.b16 %v478
        %v743 = vunpack.c.l.b16 %v479
        %v744 = vunpack.c.l.b16 %v480
        %v745 = vunpack.c.l.b16 %v481
        %v746 = vunpack.c.l.b16 %v482
        %v747 = vunpack.c.l.b16 %v483
        %v748 = vunpack.c.l.b16 %v484
        %v749 = vunpack.c.l.b16 %v485
        %v750 = vunpack.c.l.b16 %v486
        %v751 = vunpack.c.l.b16 %v487
        %v752 = vunpack.c.l.b16 %v488
        %v753 = vunpack.c.l.b16 %v489
        %v754 = vunpack.c.l.b16 %v490
        %v755 = vunpack.c.l.b16 %v491
        %v756 = vunpack.c.l.b16 %v492
        %v757 = vunpack.c.l.b16 %v493
        %v758 = vunpack.c.l.b16 %v494
        %v759 = vunpack.c.l.b16 %v495
        %v760 = vunpack.c.l.b16 %v496
        %v761 = vunpack.c.l.b16 %v497
        %v762 = vunpack.c.l.b16 %v498
        %v763 = vunpack.c.l.b16 %v499
        %v764 = vunpack.c.l.b16 %v500
        %v765 = vunpack.c.l.b16 %v501
        %v766 = vunpack.c.l.b16 %v502
        %v767 = vunpack.c.l.b16 %v503
        %v768 = vunpack.c.l.b16 %v504
        %v769 = vunpack.c.l.b16 %v505
        %v770 = vunpack.c.l.b16 %v506
        %v771 = vunpack.c.l.b16 %v507
        %v772 = vunpack.c.l.b16 %v508
        %v773 = vunpack.c.l.b16 %v509
        %v774 = vunpack.c.l.b16 %v510
        %v775 = vunpack.c.l.b16 %v511
        %v776 = vunpack.c.l.b16 %v512
        %v777 = vunpack.c.l.b16 %v513
        %v778 = vunpack.c.l.b16 %v514
        %v779 = vunpack.c.l.b16 %v515
        %v780 = vunpack.c.l.b16 %v516
        %v781 = vunpack.c.l.b16 %v517
        %v782 = vunpack.c.l.b16 %v518
        %v783 = vunpack.c.l.b16 %v519
        %v784 = vpack.c.b16 %v657, %v656
        %v785 = vpack.c.b16 %v659, %v658
        %v786 = vpack.c.b16 %v661, %v660
        %v787 = vpack.c.b16 %v663, %v662
        %v788 = vpack.c.b16 %v665, %v664
        %v789 = vpack.c.b16 %v667, %v666
        %v790 = vpack.c.b16 %v669, %v668
        %v791 = vpack.c.b16 %v671, %v670
        %v792 = vpack.c.b16 %v673, %v672
        %v793 = vpack.c.b16 %v675, %v674
        %v794 = vpack.c.b16 %v677, %v676
        %v795 = vpack.c.b16 %v679, %v678
        %v796 = vpack.c.b16 %v681, %v680
        %v797 = vpack.c.b16 %v683, %v682
        %v798 = vpack.c.b16 %v685, %v684
        %v799 = vpack.c.b16 %v687, %v686
        %v800 = vpack.c.b16 %v689, %v688
        %v801 = vpack.c.b16 %v691, %v690
        %v802 = vpack.c.b16 %v693, %v692
        %v803 = vpack.c.b16 %v695, %v694
        %v804 = vpack.c.b16 %v697, %v696
        %v805 = vpack.c.b16 %v699, %v698
        %v806 = vpack.c.b16 %v701, %v700
        %v807 = vpack.c.b16 %v703, %v702
        %v808 = vpack.c.b16 %v705, %v704
        %v809 = vpack.c.b16 %v707, %v706
        %v810 = vpack.c.b16 %v709, %v708
        %v811 = vpack.c.b16 %v711, %v710
        %v812 = vpack.c.b16 %v713, %v712
        %v813 = vpack.c.b16 %v715, %v714
        %v814 = vpack.c.b16 %v717, %v716
        %v815 = vpack.c.b16 %v719, %v718
        %v816 = vpack.c.b16 %v721, %v720
        %v817 = vpack.c.b16 %v723, %v722
        %v818 = vpack.c.b16 %v725, %v724
        %v819 = vpack.c.b16 %v727, %v726
        %v820 = vpack.c.b16 %v729, %v728
        %v821 = vpack.c.b16 %v731, %v730
        %v822 = vpack.c.b16 %v733, %v732
        %v823 = vpack.c.b16 %v735, %v734
        %v824 = vpack.c.b16 %v737, %v736
        %v825 = vpack.c.b16 %v739, %v738
        %v826 = vpack.c.b16 %v741, %v740
        %v827 = vpack.c.b16 %v743, %v742
        %v828 = vpack.c.b16 %v745, %v744
        %v829 = vpack.c.b16 %v747, %v746
        %v830 = vpack.c.b16 %v749, %v748
        %v831 = vpack.c.b16 %v751, %v750
        %v832 = vpack.c.b16 %v753, %v752
        %v833 = vpack.c.b16 %v755, %v754
        %v834 = vpack.c.b16 %v757, %v756
        %v835 = vpack.c.b16 %v759, %v758
        %v836 = vpack.c.b16 %v761, %v760
        %v837 = vpack.c.b16 %v763, %v762
        %v838 = vpack.c.b16 %v765, %v764
        %v839 = vpack.c.b16 %v767, %v766
        %v840 = vpack.c.b16 %v769, %v768
        %v841 = vpack.c.b16 %v771, %v770
        %v842 = vpack.c.b16 %v773, %v772
        %v843 = vpack.c.b16 %v775, %v774
        %v844 = vpack.c.b16 %v777, %v776
        %v845 = vpack.c.b16 %v779, %v778
        %v846 = vpack.c.b16 %v781, %v780
        %v847 = vpack.c.b16 %v783, %v782
        %vm848 = vcmask 64512
        %v850 = vsel %vm848, %v784, 0
        %v853 = vsel %vm848, %v785, 0
        %v856 = vsel %vm848, %v786, 0
        %v859 = vsel %vm848, %v787, 0
        %v862 = vsel %vm848, %v788, 0
        %v865 = vsel %vm848, %v789, 0
        %v868 = vsel %vm848, %v790, 0
        %v871 = vsel %vm848, %v791, 0
        %v874 = vsel %vm848, %v792, 0
        %v877 = vsel %vm848, %v793, 0
        %v880 = vsel %vm848, %v794, 0
        %v883 = vsel %vm848, %v795, 0
        %v886 = vsel %vm848, %v796, 0
        %v889 = vsel %vm848, %v797, 0
        %v892 = vsel %vm848, %v798, 0
        %v895 = vsel %vm848, %v799, 0
        %v898 = vsel %vm848, %v800, 0
        %v901 = vsel %vm848, %v801, 0
        %v904 = vsel %vm848, %v802, 0
        %v907 = vsel %vm848, %v803, 0
        %v910 = vsel %vm848, %v804, 0
        %v913 = vsel %vm848, %v805, 0
        %v916 = vsel %vm848, %v806, 0
        %v919 = vsel %vm848, %v807, 0
        %v922 = vsel %vm848, %v808, 0
        %v925 = vsel %vm848, %v809, 0
        %v928 = vsel %vm848, %v810, 0
        %v931 = vsel %vm848, %v811, 0
        %v934 = vsel %vm848, %v812, 0
        %v937 = vsel %vm848, %v813, 0
        %v940 = vsel %vm848, %v814, 0
        %v943 = vsel %vm848, %v815, 0
        %v946 = vsel %vm848, %v816, 0
        %v949 = vsel %vm848, %v817, 0
        %v952 = vsel %vm848, %v818, 0
        %v955 = vsel %vm848, %v819, 0
        %v958 = vsel %vm848, %v820, 0
        %v961 = vsel %vm848, %v821, 0
        %v964 = vsel %vm848, %v822, 0
        %v967 = vsel %vm848, %v823, 0
        %v970 = vsel %vm848, %v824, 0
        %v973 = vsel %vm848, %v825, 0
        %v976 = vsel %vm848, %v826, 0
        %v979 = vsel %vm848, %v827, 0
        %v982 = vsel %vm848, %v828, 0
        %v985 = vsel %vm848, %v829, 0
        %v988 = vsel %vm848, %v830, 0
        %v991 = vsel %vm848, %v831, 0
        %v994 = vsel %vm848, %v832, 0
        %v997 = vsel %vm848, %v833, 0
        %v1000 = vsel %vm848, %v834, 0
        %v1003 = vsel %vm848, %v835, 0
        %v1006 = vsel %vm848, %v836, 0
        %v1009 = vsel %vm848, %v837, 0
        %v1012 = vsel %vm848, %v838, 0
        %v1015 = vsel %vm848, %v839, 0
        %v1018 = vsel %vm848, %v840, 0
        %v1021 = vsel %vm848, %v841, 0
        %v1024 = vsel %vm848, %v842, 0
        %v1027 = vsel %vm848, %v843, 0
        %v1030 = vsel %vm848, %v844, 0
        %v1033 = vsel %vm848, %v845, 0
        %v1036 = vsel %vm848, %v846, 0
        %v1039 = vsel %vm848, %v847, 0
        %vm1041 = vcmask 1043456
        %v1043 = vsel %vm1041, %v520, 0
        %1045 = vmatprep.subr.bf16.mxu0 0
        %1046 = vmatpush1.bf16.msra.mxu0 0
        %1047 = vmatprep.subr.bf16.mxu0 0
        %1048 = vmatpush1.bf16.msra.mxu0 0
        %1049 = vmatprep.subr.bf16.mxu0 0
        %1050 = vmatpush1.bf16.msra.mxu0 0
        %1051 = vmatprep.subr.bf16.mxu0 0
        %1052 = vmatpush1.bf16.msra.mxu0 0
        %1053 = vmatprep.subr.bf16.mxu0 0
        %1054 = vmatpush1.bf16.msra.mxu0 0
        %1055 = vmatprep.subr.bf16.mxu0 0
        %1056 = vmatpush1.bf16.msra.mxu0 0
        %1057 = vmatprep.subr.bf16.mxu0 0
        %1058 = vmatpush1.bf16.msra.mxu0 0
        %1059 = vmatprep.subr.bf16.mxu0 0
        %1060 = vmatpush1.bf16.msra.mxu0 %v1043
        %1061 = vmatprep.subr.bf16.mxu0 0
        %1062 = vmatpush2.bf16.msra.mxu0 0
        %1063 = vmatprep.subr.bf16.mxu0 0
        %1064 = vmatpush2.bf16.msra.mxu0 0
        %1065 = vmatprep.subr.bf16.mxu0 0
        %1066 = vmatpush2.bf16.msra.mxu0 0
        %1067 = vmatprep.subr.bf16.mxu0 0
        %1068 = vmatpush2.bf16.msra.mxu0 0
        %1069 = vmatprep.subr.bf16.mxu0 0
        %1070 = vmatpush2.bf16.msra.mxu0 0
        %1071 = vmatprep.subr.bf16.mxu0 0
        %1072 = vmatpush2.bf16.msra.mxu0 0
        %1073 = vmatprep.subr.bf16.mxu0 0
        %1074 = vmatpush2.bf16.msra.mxu0 0
        %1075 = vmatprep.subr.bf16.mxu0 0
        %1076 = vmatpush2.bf16.msra.mxu0 0
        %1077 = vmatprep.mubr.bf16.mxu0 0
        %1078 = vmatmul.mubr.bf16.gmra.mxu0 %v850
        %v1079 = vpop.f32.mrf.mxu0
        %v1080 = vadd.f32 %v526, %v1079
        %v1081 = vpop.f32.mrf.mxu0
        %v1082 = vpop.f32.mrf.mxu0
        %v1083 = vadd.f32 %v526, %v1082
        %v1084 = vpop.f32.mrf.mxu0
        %1085 = vmatprep.mubr.bf16.mxu0 0
        %1086 = vmatmul.mubr.bf16.gmra.mxu0 %v853
        %v1087 = vpop.f32.mrf.mxu0
        %v1088 = vadd.f32 %v526, %v1087
        %v1089 = vpop.f32.mrf.mxu0
        %v1090 = vpop.f32.mrf.mxu0
        %v1091 = vadd.f32 %v526, %v1090
        %v1092 = vpop.f32.mrf.mxu0
        %1093 = vmatprep.mubr.bf16.mxu0 0
        %1094 = vmatmul.mubr.bf16.gmra.mxu0 %v856
        %v1095 = vpop.f32.mrf.mxu0
        %v1096 = vadd.f32 %v526, %v1095
        %v1097 = vpop.f32.mrf.mxu0
        %v1098 = vpop.f32.mrf.mxu0
        %v1099 = vadd.f32 %v526, %v1098
        %v1100 = vpop.f32.mrf.mxu0
        %1101 = vmatprep.mubr.bf16.mxu0 0
        %1102 = vmatmul.mubr.bf16.gmra.mxu0 %v859
        %v1103 = vpop.f32.mrf.mxu0
        %v1104 = vadd.f32 %v526, %v1103
        %v1105 = vpop.f32.mrf.mxu0
        %v1106 = vpop.f32.mrf.mxu0
        %v1107 = vadd.f32 %v526, %v1106
        %v1108 = vpop.f32.mrf.mxu0
        %1109 = vmatprep.mubr.bf16.mxu0 0
        %1110 = vmatmul.mubr.bf16.gmra.mxu0 %v862
        %v1111 = vpop.f32.mrf.mxu0
        %v1112 = vadd.f32 %v526, %v1111
        %v1113 = vpop.f32.mrf.mxu0
        %v1114 = vpop.f32.mrf.mxu0
        %v1115 = vadd.f32 %v526, %v1114
        %v1116 = vpop.f32.mrf.mxu0
        %1117 = vmatprep.mubr.bf16.mxu0 0
        %1118 = vmatmul.mubr.bf16.gmra.mxu0 %v865
        %v1119 = vpop.f32.mrf.mxu0
        %v1120 = vadd.f32 %v526, %v1119
        %v1121 = vpop.f32.mrf.mxu0
        %v1122 = vpop.f32.mrf.mxu0
        %v1123 = vadd.f32 %v526, %v1122
        %v1124 = vpop.f32.mrf.mxu0
        %1125 = vmatprep.mubr.bf16.mxu0 0
        %1126 = vmatmul.mubr.bf16.gmra.mxu0 %v868
        %v1127 = vpop.f32.mrf.mxu0
        %v1128 = vadd.f32 %v526, %v1127
        %v1129 = vpop.f32.mrf.mxu0
        %v1130 = vpop.f32.mrf.mxu0
        %v1131 = vadd.f32 %v526, %v1130
        %v1132 = vpop.f32.mrf.mxu0
        %1133 = vmatprep.mubr.bf16.mxu0 0
        %1134 = vmatmul.mubr.bf16.gmra.mxu0 %v871
        %v1135 = vpop.f32.mrf.mxu0
        %v1136 = vadd.f32 %v526, %v1135
        %v1137 = vpop.f32.mrf.mxu0
        %v1138 = vpop.f32.mrf.mxu0
        %v1139 = vadd.f32 %v526, %v1138
        %v1140 = vpop.f32.mrf.mxu0
        %1141 = vmatprep.mubr.bf16.mxu0 0
        %1142 = vmatmul.mubr.bf16.gmra.mxu0 %v874
        %v1143 = vpop.f32.mrf.mxu0
        %v1144 = vadd.f32 %v526, %v1143
        %v1145 = vpop.f32.mrf.mxu0
        %v1146 = vpop.f32.mrf.mxu0
        %v1147 = vadd.f32 %v526, %v1146
        %v1148 = vpop.f32.mrf.mxu0
        %1149 = vmatprep.mubr.bf16.mxu0 0
        %1150 = vmatmul.mubr.bf16.gmra.mxu0 %v877
        %v1151 = vpop.f32.mrf.mxu0
        %v1152 = vadd.f32 %v526, %v1151
        %v1153 = vpop.f32.mrf.mxu0
        %v1154 = vpop.f32.mrf.mxu0
        %v1155 = vadd.f32 %v526, %v1154
        %v1156 = vpop.f32.mrf.mxu0
        %1157 = vmatprep.mubr.bf16.mxu0 0
        %1158 = vmatmul.mubr.bf16.gmra.mxu0 %v880
        %v1159 = vpop.f32.mrf.mxu0
        %v1160 = vadd.f32 %v526, %v1159
        %v1161 = vpop.f32.mrf.mxu0
        %v1162 = vpop.f32.mrf.mxu0
        %v1163 = vadd.f32 %v526, %v1162
        %v1164 = vpop.f32.mrf.mxu0
        %1165 = vmatprep.mubr.bf16.mxu0 0
        %1166 = vmatmul.mubr.bf16.gmra.mxu0 %v883
        %v1167 = vpop.f32.mrf.mxu0
        %v1168 = vadd.f32 %v526, %v1167
        %v1169 = vpop.f32.mrf.mxu0
        %v1170 = vpop.f32.mrf.mxu0
        %v1171 = vadd.f32 %v526, %v1170
        %v1172 = vpop.f32.mrf.mxu0
        %1173 = vmatprep.mubr.bf16.mxu0 0
        %1174 = vmatmul.mubr.bf16.gmra.mxu0 %v886
        %v1175 = vpop.f32.mrf.mxu0
        %v1176 = vadd.f32 %v526, %v1175
        %v1177 = vpop.f32.mrf.mxu0
        %v1178 = vpop.f32.mrf.mxu0
        %v1179 = vadd.f32 %v526, %v1178
        %v1180 = vpop.f32.mrf.mxu0
        %1181 = vmatprep.mubr.bf16.mxu0 0
        %1182 = vmatmul.mubr.bf16.gmra.mxu0 %v889
        %v1183 = vpop.f32.mrf.mxu0
        %v1184 = vadd.f32 %v526, %v1183
        %v1185 = vpop.f32.mrf.mxu0
        %v1186 = vpop.f32.mrf.mxu0
        %v1187 = vadd.f32 %v526, %v1186
        %v1188 = vpop.f32.mrf.mxu0
        %1189 = vmatprep.mubr.bf16.mxu0 0
        %1190 = vmatmul.mubr.bf16.gmra.mxu0 %v892
        %v1191 = vpop.f32.mrf.mxu0
        %v1192 = vadd.f32 %v526, %v1191
        %v1193 = vpop.f32.mrf.mxu0
        %v1194 = vpop.f32.mrf.mxu0
        %v1195 = vadd.f32 %v526, %v1194
        %v1196 = vpop.f32.mrf.mxu0
        %1197 = vmatprep.mubr.bf16.mxu0 0
        %1198 = vmatmul.mubr.bf16.gmra.mxu0 %v895
        %v1199 = vpop.f32.mrf.mxu0
        %v1200 = vadd.f32 %v526, %v1199
        %v1201 = vpop.f32.mrf.mxu0
        %v1202 = vpop.f32.mrf.mxu0
        %v1203 = vadd.f32 %v526, %v1202
        %v1204 = vpop.f32.mrf.mxu0
        %1205 = vmatprep.mubr.bf16.mxu0 0
        %1206 = vmatmul.mubr.bf16.gmra.mxu0 %v898
        %v1207 = vpop.f32.mrf.mxu0
        %v1208 = vadd.f32 %v526, %v1207
        %v1209 = vpop.f32.mrf.mxu0
        %v1210 = vpop.f32.mrf.mxu0
        %v1211 = vadd.f32 %v526, %v1210
        %v1212 = vpop.f32.mrf.mxu0
        %1213 = vmatprep.mubr.bf16.mxu0 0
        %1214 = vmatmul.mubr.bf16.gmra.mxu0 %v901
        %v1215 = vpop.f32.mrf.mxu0
        %v1216 = vadd.f32 %v526, %v1215
        %v1217 = vpop.f32.mrf.mxu0
        %v1218 = vpop.f32.mrf.mxu0
        %v1219 = vadd.f32 %v526, %v1218
        %v1220 = vpop.f32.mrf.mxu0
        %1221 = vmatprep.mubr.bf16.mxu0 0
        %1222 = vmatmul.mubr.bf16.gmra.mxu0 %v904
        %v1223 = vpop.f32.mrf.mxu0
        %v1224 = vadd.f32 %v526, %v1223
        %v1225 = vpop.f32.mrf.mxu0
        %v1226 = vpop.f32.mrf.mxu0
        %v1227 = vadd.f32 %v526, %v1226
        %v1228 = vpop.f32.mrf.mxu0
        %1229 = vmatprep.mubr.bf16.mxu0 0
        %1230 = vmatmul.mubr.bf16.gmra.mxu0 %v907
        %v1231 = vpop.f32.mrf.mxu0
        %v1232 = vadd.f32 %v526, %v1231
        %v1233 = vpop.f32.mrf.mxu0
        %v1234 = vpop.f32.mrf.mxu0
        %v1235 = vadd.f32 %v526, %v1234
        %v1236 = vpop.f32.mrf.mxu0
        %1237 = vmatprep.mubr.bf16.mxu0 0
        %1238 = vmatmul.mubr.bf16.gmra.mxu0 %v910
        %v1239 = vpop.f32.mrf.mxu0
        %v1240 = vadd.f32 %v526, %v1239
        %v1241 = vpop.f32.mrf.mxu0
        %v1242 = vpop.f32.mrf.mxu0
        %v1243 = vadd.f32 %v526, %v1242
        %v1244 = vpop.f32.mrf.mxu0
        %1245 = vmatprep.mubr.bf16.mxu0 0
        %1246 = vmatmul.mubr.bf16.gmra.mxu0 %v913
        %v1247 = vpop.f32.mrf.mxu0
        %v1248 = vadd.f32 %v526, %v1247
        %v1249 = vpop.f32.mrf.mxu0
        %v1250 = vpop.f32.mrf.mxu0
        %v1251 = vadd.f32 %v526, %v1250
        %v1252 = vpop.f32.mrf.mxu0
        %1253 = vmatprep.mubr.bf16.mxu0 0
        %1254 = vmatmul.mubr.bf16.gmra.mxu0 %v916
        %v1255 = vpop.f32.mrf.mxu0
        %v1256 = vadd.f32 %v526, %v1255
        %v1257 = vpop.f32.mrf.mxu0
        %v1258 = vpop.f32.mrf.mxu0
        %v1259 = vadd.f32 %v526, %v1258
        %v1260 = vpop.f32.mrf.mxu0
        %1261 = vmatprep.mubr.bf16.mxu0 0
        %1262 = vmatmul.mubr.bf16.gmra.mxu0 %v919
        %v1263 = vpop.f32.mrf.mxu0
        %v1264 = vadd.f32 %v526, %v1263
        %v1265 = vpop.f32.mrf.mxu0
        %v1266 = vpop.f32.mrf.mxu0
        %v1267 = vadd.f32 %v526, %v1266
        %v1268 = vpop.f32.mrf.mxu0
        %1269 = vmatprep.mubr.bf16.mxu0 0
        %1270 = vmatmul.mubr.bf16.gmra.mxu0 %v922
        %v1271 = vpop.f32.mrf.mxu0
        %v1272 = vadd.f32 %v526, %v1271
        %v1273 = vpop.f32.mrf.mxu0
        %v1274 = vpop.f32.mrf.mxu0
        %v1275 = vadd.f32 %v526, %v1274
        %v1276 = vpop.f32.mrf.mxu0
        %1277 = vmatprep.mubr.bf16.mxu0 0
        %1278 = vmatmul.mubr.bf16.gmra.mxu0 %v925
        %v1279 = vpop.f32.mrf.mxu0
        %v1280 = vadd.f32 %v526, %v1279
        %v1281 = vpop.f32.mrf.mxu0
        %v1282 = vpop.f32.mrf.mxu0
        %v1283 = vadd.f32 %v526, %v1282
        %v1284 = vpop.f32.mrf.mxu0
        %1285 = vmatprep.mubr.bf16.mxu0 0
        %1286 = vmatmul.mubr.bf16.gmra.mxu0 %v928
        %v1287 = vpop.f32.mrf.mxu0
        %v1288 = vadd.f32 %v526, %v1287
        %v1289 = vpop.f32.mrf.mxu0
        %v1290 = vpop.f32.mrf.mxu0
        %v1291 = vadd.f32 %v526, %v1290
        %v1292 = vpop.f32.mrf.mxu0
        %1293 = vmatprep.mubr.bf16.mxu0 0
        %1294 = vmatmul.mubr.bf16.gmra.mxu0 %v931
        %v1295 = vpop.f32.mrf.mxu0
        %v1296 = vadd.f32 %v526, %v1295
        %v1297 = vpop.f32.mrf.mxu0
        %v1298 = vpop.f32.mrf.mxu0
        %v1299 = vadd.f32 %v526, %v1298
        %v1300 = vpop.f32.mrf.mxu0
        %1301 = vmatprep.mubr.bf16.mxu0 0
        %1302 = vmatmul.mubr.bf16.gmra.mxu0 %v934
        %v1303 = vpop.f32.mrf.mxu0
        %v1304 = vadd.f32 %v526, %v1303
        %v1305 = vpop.f32.mrf.mxu0
        %v1306 = vpop.f32.mrf.mxu0
        %v1307 = vadd.f32 %v526, %v1306
        %v1308 = vpop.f32.mrf.mxu0
        %1309 = vmatprep.mubr.bf16.mxu0 0
        %1310 = vmatmul.mubr.bf16.gmra.mxu0 %v937
        %v1311 = vpop.f32.mrf.mxu0
        %v1312 = vadd.f32 %v526, %v1311
        %v1313 = vpop.f32.mrf.mxu0
        %v1314 = vpop.f32.mrf.mxu0
        %v1315 = vadd.f32 %v526, %v1314
        %v1316 = vpop.f32.mrf.mxu0
        %1317 = vmatprep.mubr.bf16.mxu0 0
        %1318 = vmatmul.mubr.bf16.gmra.mxu0 %v940
        %v1319 = vpop.f32.mrf.mxu0
        %v1320 = vadd.f32 %v526, %v1319
        %v1321 = vpop.f32.mrf.mxu0
        %v1322 = vpop.f32.mrf.mxu0
        %v1323 = vadd.f32 %v526, %v1322
        %v1324 = vpop.f32.mrf.mxu0
        %1325 = vmatprep.mubr.bf16.mxu0 0
        %1326 = vmatmul.mubr.bf16.gmra.mxu0 %v943
        %v1327 = vpop.f32.mrf.mxu0
        %v1328 = vadd.f32 %v526, %v1327
        %v1329 = vpop.f32.mrf.mxu0
        %v1330 = vpop.f32.mrf.mxu0
        %v1331 = vadd.f32 %v526, %v1330
        %v1332 = vpop.f32.mrf.mxu0
        %1333 = vmatprep.mubr.bf16.mxu0 0
        %1334 = vmatmul.mubr.bf16.gmra.mxu0 %v946
        %v1335 = vpop.f32.mrf.mxu0
        %v1336 = vadd.f32 %v526, %v1335
        %v1337 = vpop.f32.mrf.mxu0
        %v1338 = vpop.f32.mrf.mxu0
        %v1339 = vadd.f32 %v526, %v1338
        %v1340 = vpop.f32.mrf.mxu0
        %1341 = vmatprep.mubr.bf16.mxu0 0
        %1342 = vmatmul.mubr.bf16.gmra.mxu0 %v949
        %v1343 = vpop.f32.mrf.mxu0
        %v1344 = vadd.f32 %v526, %v1343
        %v1345 = vpop.f32.mrf.mxu0
        %v1346 = vpop.f32.mrf.mxu0
        %v1347 = vadd.f32 %v526, %v1346
        %v1348 = vpop.f32.mrf.mxu0
        %1349 = vmatprep.mubr.bf16.mxu0 0
        %1350 = vmatmul.mubr.bf16.gmra.mxu0 %v952
        %v1351 = vpop.f32.mrf.mxu0
        %v1352 = vadd.f32 %v526, %v1351
        %v1353 = vpop.f32.mrf.mxu0
        %v1354 = vpop.f32.mrf.mxu0
        %v1355 = vadd.f32 %v526, %v1354
        %v1356 = vpop.f32.mrf.mxu0
        %1357 = vmatprep.mubr.bf16.mxu0 0
        %1358 = vmatmul.mubr.bf16.gmra.mxu0 %v955
        %v1359 = vpop.f32.mrf.mxu0
        %v1360 = vadd.f32 %v526, %v1359
        %v1361 = vpop.f32.mrf.mxu0
        %v1362 = vpop.f32.mrf.mxu0
        %v1363 = vadd.f32 %v526, %v1362
        %v1364 = vpop.f32.mrf.mxu0
        %1365 = vmatprep.mubr.bf16.mxu0 0
        %1366 = vmatmul.mubr.bf16.gmra.mxu0 %v958
        %v1367 = vpop.f32.mrf.mxu0
        %v1368 = vadd.f32 %v526, %v1367
        %v1369 = vpop.f32.mrf.mxu0
        %v1370 = vpop.f32.mrf.mxu0
        %v1371 = vadd.f32 %v526, %v1370
        %v1372 = vpop.f32.mrf.mxu0
        %1373 = vmatprep.mubr.bf16.mxu0 0
        %1374 = vmatmul.mubr.bf16.gmra.mxu0 %v961
        %v1375 = vpop.f32.mrf.mxu0
        %v1376 = vadd.f32 %v526, %v1375
        %v1377 = vpop.f32.mrf.mxu0
        %v1378 = vpop.f32.mrf.mxu0
        %v1379 = vadd.f32 %v526, %v1378
        %v1380 = vpop.f32.mrf.mxu0
        %1381 = vmatprep.mubr.bf16.mxu0 0
        %1382 = vmatmul.mubr.bf16.gmra.mxu0 %v964
        %v1383 = vpop.f32.mrf.mxu0
        %v1384 = vadd.f32 %v526, %v1383
        %v1385 = vpop.f32.mrf.mxu0
        %v1386 = vpop.f32.mrf.mxu0
        %v1387 = vadd.f32 %v526, %v1386
        %v1388 = vpop.f32.mrf.mxu0
        %1389 = vmatprep.mubr.bf16.mxu0 0
        %1390 = vmatmul.mubr.bf16.gmra.mxu0 %v967
        %v1391 = vpop.f32.mrf.mxu0
        %v1392 = vadd.f32 %v526, %v1391
        %v1393 = vpop.f32.mrf.mxu0
        %v1394 = vpop.f32.mrf.mxu0
        %v1395 = vadd.f32 %v526, %v1394
        %v1396 = vpop.f32.mrf.mxu0
        %1397 = vmatprep.mubr.bf16.mxu0 0
        %1398 = vmatmul.mubr.bf16.gmra.mxu0 %v970
        %v1399 = vpop.f32.mrf.mxu0
        %v1400 = vadd.f32 %v526, %v1399
        %v1401 = vpop.f32.mrf.mxu0
        %v1402 = vpop.f32.mrf.mxu0
        %v1403 = vadd.f32 %v526, %v1402
        %v1404 = vpop.f32.mrf.mxu0
        %1405 = vmatprep.mubr.bf16.mxu0 0
        %1406 = vmatmul.mubr.bf16.gmra.mxu0 %v973
        %v1407 = vpop.f32.mrf.mxu0
        %v1408 = vadd.f32 %v526, %v1407
        %v1409 = vpop.f32.mrf.mxu0
        %v1410 = vpop.f32.mrf.mxu0
        %v1411 = vadd.f32 %v526, %v1410
        %v1412 = vpop.f32.mrf.mxu0
        %1413 = vmatprep.mubr.bf16.mxu0 0
        %1414 = vmatmul.mubr.bf16.gmra.mxu0 %v976
        %v1415 = vpop.f32.mrf.mxu0
        %v1416 = vadd.f32 %v526, %v1415
        %v1417 = vpop.f32.mrf.mxu0
        %v1418 = vpop.f32.mrf.mxu0
        %v1419 = vadd.f32 %v526, %v1418
        %v1420 = vpop.f32.mrf.mxu0
        %1421 = vmatprep.mubr.bf16.mxu0 0
        %1422 = vmatmul.mubr.bf16.gmra.mxu0 %v979
        %v1423 = vpop.f32.mrf.mxu0
        %v1424 = vadd.f32 %v526, %v1423
        %v1425 = vpop.f32.mrf.mxu0
        %v1426 = vpop.f32.mrf.mxu0
        %v1427 = vadd.f32 %v526, %v1426
        %v1428 = vpop.f32.mrf.mxu0
        %1429 = vmatprep.mubr.bf16.mxu0 0
        %1430 = vmatmul.mubr.bf16.gmra.mxu0 %v982
        %v1431 = vpop.f32.mrf.mxu0
        %v1432 = vadd.f32 %v526, %v1431
        %v1433 = vpop.f32.mrf.mxu0
        %v1434 = vpop.f32.mrf.mxu0
        %v1435 = vadd.f32 %v526, %v1434
        %v1436 = vpop.f32.mrf.mxu0
        %1437 = vmatprep.mubr.bf16.mxu0 0
        %1438 = vmatmul.mubr.bf16.gmra.mxu0 %v985
        %v1439 = vpop.f32.mrf.mxu0
        %v1440 = vadd.f32 %v526, %v1439
        %v1441 = vpop.f32.mrf.mxu0
        %v1442 = vpop.f32.mrf.mxu0
        %v1443 = vadd.f32 %v526, %v1442
        %v1444 = vpop.f32.mrf.mxu0
        %1445 = vmatprep.mubr.bf16.mxu0 0
        %1446 = vmatmul.mubr.bf16.gmra.mxu0 %v988
        %v1447 = vpop.f32.mrf.mxu0
        %v1448 = vadd.f32 %v526, %v1447
        %v1449 = vpop.f32.mrf.mxu0
        %v1450 = vpop.f32.mrf.mxu0
        %v1451 = vadd.f32 %v526, %v1450
        %v1452 = vpop.f32.mrf.mxu0
        %1453 = vmatprep.mubr.bf16.mxu0 0
        %1454 = vmatmul.mubr.bf16.gmra.mxu0 %v991
        %v1455 = vpop.f32.mrf.mxu0
        %v1456 = vadd.f32 %v526, %v1455
        %v1457 = vpop.f32.mrf.mxu0
        %v1458 = vpop.f32.mrf.mxu0
        %v1459 = vadd.f32 %v526, %v1458
        %v1460 = vpop.f32.mrf.mxu0
        %1461 = vmatprep.mubr.bf16.mxu0 0
        %1462 = vmatmul.mubr.bf16.gmra.mxu0 %v994
        %v1463 = vpop.f32.mrf.mxu0
        %v1464 = vadd.f32 %v526, %v1463
        %v1465 = vpop.f32.mrf.mxu0
        %v1466 = vpop.f32.mrf.mxu0
        %v1467 = vadd.f32 %v526, %v1466
        %v1468 = vpop.f32.mrf.mxu0
        %1469 = vmatprep.mubr.bf16.mxu0 0
        %1470 = vmatmul.mubr.bf16.gmra.mxu0 %v997
        %v1471 = vpop.f32.mrf.mxu0
        %v1472 = vadd.f32 %v526, %v1471
        %v1473 = vpop.f32.mrf.mxu0
        %v1474 = vpop.f32.mrf.mxu0
        %v1475 = vadd.f32 %v526, %v1474
        %v1476 = vpop.f32.mrf.mxu0
        %1477 = vmatprep.mubr.bf16.mxu0 0
        %1478 = vmatmul.mubr.bf16.gmra.mxu0 %v1000
        %v1479 = vpop.f32.mrf.mxu0
        %v1480 = vadd.f32 %v526, %v1479
        %v1481 = vpop.f32.mrf.mxu0
        %v1482 = vpop.f32.mrf.mxu0
        %v1483 = vadd.f32 %v526, %v1482
        %v1484 = vpop.f32.mrf.mxu0
        %1485 = vmatprep.mubr.bf16.mxu0 0
        %1486 = vmatmul.mubr.bf16.gmra.mxu0 %v1003
        %v1487 = vpop.f32.mrf.mxu0
        %v1488 = vadd.f32 %v526, %v1487
        %v1489 = vpop.f32.mrf.mxu0
        %v1490 = vpop.f32.mrf.mxu0
        %v1491 = vadd.f32 %v526, %v1490
        %v1492 = vpop.f32.mrf.mxu0
        %1493 = vmatprep.mubr.bf16.mxu0 0
        %1494 = vmatmul.mubr.bf16.gmra.mxu0 %v1006
        %v1495 = vpop.f32.mrf.mxu0
        %v1496 = vadd.f32 %v526, %v1495
        %v1497 = vpop.f32.mrf.mxu0
        %v1498 = vpop.f32.mrf.mxu0
        %v1499 = vadd.f32 %v526, %v1498
        %v1500 = vpop.f32.mrf.mxu0
        %1501 = vmatprep.mubr.bf16.mxu0 0
        %1502 = vmatmul.mubr.bf16.gmra.mxu0 %v1009
        %v1503 = vpop.f32.mrf.mxu0
        %v1504 = vadd.f32 %v526, %v1503
        %v1505 = vpop.f32.mrf.mxu0
        %v1506 = vpop.f32.mrf.mxu0
        %v1507 = vadd.f32 %v526, %v1506
        %v1508 = vpop.f32.mrf.mxu0
        %1509 = vmatprep.mubr.bf16.mxu0 0
        %1510 = vmatmul.mubr.bf16.gmra.mxu0 %v1012
        %v1511 = vpop.f32.mrf.mxu0
        %v1512 = vadd.f32 %v526, %v1511
        %v1513 = vpop.f32.mrf.mxu0
        %v1514 = vpop.f32.mrf.mxu0
        %v1515 = vadd.f32 %v526, %v1514
        %v1516 = vpop.f32.mrf.mxu0
        %1517 = vmatprep.mubr.bf16.mxu0 0
        %1518 = vmatmul.mubr.bf16.gmra.mxu0 %v1015
        %v1519 = vpop.f32.mrf.mxu0
        %v1520 = vadd.f32 %v526, %v1519
        %v1521 = vpop.f32.mrf.mxu0
        %v1522 = vpop.f32.mrf.mxu0
        %v1523 = vadd.f32 %v526, %v1522
        %v1524 = vpop.f32.mrf.mxu0
        %1525 = vmatprep.mubr.bf16.mxu0 0
        %1526 = vmatmul.mubr.bf16.gmra.mxu0 %v1018
        %v1527 = vpop.f32.mrf.mxu0
        %v1528 = vadd.f32 %v526, %v1527
        %v1529 = vpop.f32.mrf.mxu0
        %v1530 = vpop.f32.mrf.mxu0
        %v1531 = vadd.f32 %v526, %v1530
        %v1532 = vpop.f32.mrf.mxu0
        %1533 = vmatprep.mubr.bf16.mxu0 0
        %1534 = vmatmul.mubr.bf16.gmra.mxu0 %v1021
        %v1535 = vpop.f32.mrf.mxu0
        %v1536 = vadd.f32 %v526, %v1535
        %v1537 = vpop.f32.mrf.mxu0
        %v1538 = vpop.f32.mrf.mxu0
        %v1539 = vadd.f32 %v526, %v1538
        %v1540 = vpop.f32.mrf.mxu0
        %1541 = vmatprep.mubr.bf16.mxu0 0
        %1542 = vmatmul.mubr.bf16.gmra.mxu0 %v1024
        %v1543 = vpop.f32.mrf.mxu0
        %v1544 = vadd.f32 %v526, %v1543
        %v1545 = vpop.f32.mrf.mxu0
        %v1546 = vpop.f32.mrf.mxu0
        %v1547 = vadd.f32 %v526, %v1546
        %v1548 = vpop.f32.mrf.mxu0
        %1549 = vmatprep.mubr.bf16.mxu0 0
        %1550 = vmatmul.mubr.bf16.gmra.mxu0 %v1027
        %v1551 = vpop.f32.mrf.mxu0
        %v1552 = vadd.f32 %v526, %v1551
        %v1553 = vpop.f32.mrf.mxu0
        %v1554 = vpop.f32.mrf.mxu0
        %v1555 = vadd.f32 %v526, %v1554
        %v1556 = vpop.f32.mrf.mxu0
        %1557 = vmatprep.mubr.bf16.mxu0 0
        %1558 = vmatmul.mubr.bf16.gmra.mxu0 %v1030
        %v1559 = vpop.f32.mrf.mxu0
        %v1560 = vadd.f32 %v526, %v1559
        %v1561 = vpop.f32.mrf.mxu0
        %v1562 = vpop.f32.mrf.mxu0
        %v1563 = vadd.f32 %v526, %v1562
        %v1564 = vpop.f32.mrf.mxu0
        %1565 = vmatprep.mubr.bf16.mxu0 0
        %1566 = vmatmul.mubr.bf16.gmra.mxu0 %v1033
        %v1567 = vpop.f32.mrf.mxu0
        %v1568 = vadd.f32 %v526, %v1567
        %v1569 = vpop.f32.mrf.mxu0
        %v1570 = vpop.f32.mrf.mxu0
        %v1571 = vadd.f32 %v526, %v1570
        %v1572 = vpop.f32.mrf.mxu0
        %1573 = vmatprep.mubr.bf16.mxu0 0
        %1574 = vmatmul.mubr.bf16.gmra.mxu0 %v1036
        %v1575 = vpop.f32.mrf.mxu0
        %v1576 = vadd.f32 %v526, %v1575
        %v1577 = vpop.f32.mrf.mxu0
        %v1578 = vpop.f32.mrf.mxu0
        %v1579 = vadd.f32 %v526, %v1578
        %v1580 = vpop.f32.mrf.mxu0
        %1581 = vmatprep.mubr.bf16.mxu0 0
        %1582 = vmatmul.mubr.bf16.gmra.mxu0 %v1039
        %v1583 = vpop.f32.mrf.mxu0
        %v1584 = vadd.f32 %v526, %v1583
        %v1585 = vpop.f32.mrf.mxu0
        %v1586 = vpop.f32.mrf.mxu0
        %v1587 = vadd.f32 %v526, %v1586
        %v1588 = vpop.f32.mrf.mxu0
        %1589 = vdwg.mxu0
        %v1590 = vmax.f32 %v1080, 0.0
        %v1591 = vmax.f32 %v1083, 0.0
        %v1592 = vmax.f32 %v1088, 0.0
        %v1593 = vmax.f32 %v1091, 0.0
        %v1594 = vmax.f32 %v1096, 0.0
        %v1595 = vmax.f32 %v1099, 0.0
        %v1596 = vmax.f32 %v1104, 0.0
        %v1597 = vmax.f32 %v1107, 0.0
        %v1598 = vmax.f32 %v1112, 0.0
        %v1599 = vmax.f32 %v1115, 0.0
        %v1600 = vmax.f32 %v1120, 0.0
        %v1601 = vmax.f32 %v1123, 0.0
        %v1602 = vmax.f32 %v1128, 0.0
        %v1603 = vmax.f32 %v1131, 0.0
        %v1604 = vmax.f32 %v1136, 0.0
        %v1605 = vmax.f32 %v1139, 0.0
        %v1606 = vmax.f32 %v1144, 0.0
        %v1607 = vmax.f32 %v1147, 0.0
        %v1608 = vmax.f32 %v1152, 0.0
        %v1609 = vmax.f32 %v1155, 0.0
        %v1610 = vmax.f32 %v1160, 0.0
        %v1611 = vmax.f32 %v1163, 0.0
        %v1612 = vmax.f32 %v1168, 0.0
        %v1613 = vmax.f32 %v1171, 0.0
        %v1614 = vmax.f32 %v1176, 0.0
        %v1615 = vmax.f32 %v1179, 0.0
        %v1616 = vmax.f32 %v1184, 0.0
        %v1617 = vmax.f32 %v1187, 0.0
        %v1618 = vmax.f32 %v1192, 0.0
        %v1619 = vmax.f32 %v1195, 0.0
        %v1620 = vmax.f32 %v1200, 0.0
        %v1621 = vmax.f32 %v1203, 0.0
        %v1622 = vmax.f32 %v1208, 0.0
        %v1623 = vmax.f32 %v1211, 0.0
        %v1624 = vmax.f32 %v1216, 0.0
        %v1625 = vmax.f32 %v1219, 0.0
        %v1626 = vmax.f32 %v1224, 0.0
        %v1627 = vmax.f32 %v1227, 0.0
        %v1628 = vmax.f32 %v1232, 0.0
        %v1629 = vmax.f32 %v1235, 0.0
        %v1630 = vmax.f32 %v1240, 0.0
        %v1631 = vmax.f32 %v1243, 0.0
        %v1632 = vmax.f32 %v1248, 0.0
        %v1633 = vmax.f32 %v1251, 0.0
        %v1634 = vmax.f32 %v1256, 0.0
        %v1635 = vmax.f32 %v1259, 0.0
        %v1636 = vmax.f32 %v1264, 0.0
        %v1637 = vmax.f32 %v1267, 0.0
        %v1638 = vmax.f32 %v1272, 0.0
        %v1639 = vmax.f32 %v1275, 0.0
        %v1640 = vmax.f32 %v1280, 0.0
        %v1641 = vmax.f32 %v1283, 0.0
        %v1642 = vmax.f32 %v1288, 0.0
        %v1643 = vmax.f32 %v1291, 0.0
        %v1644 = vmax.f32 %v1296, 0.0
        %v1645 = vmax.f32 %v1299, 0.0
        %v1646 = vmax.f32 %v1304, 0.0
        %v1647 = vmax.f32 %v1307, 0.0
        %v1648 = vmax.f32 %v1312, 0.0
        %v1649 = vmax.f32 %v1315, 0.0
        %v1650 = vmax.f32 %v1320, 0.0
        %v1651 = vmax.f32 %v1323, 0.0
        %v1652 = vmax.f32 %v1328, 0.0
        %v1653 = vmax.f32 %v1331, 0.0
        %v1654 = vmax.f32 %v1336, 0.0
        %v1655 = vmax.f32 %v1339, 0.0
        %v1656 = vmax.f32 %v1344, 0.0
        %v1657 = vmax.f32 %v1347, 0.0
        %v1658 = vmax.f32 %v1352, 0.0
        %v1659 = vmax.f32 %v1355, 0.0
        %v1660 = vmax.f32 %v1360, 0.0
        %v1661 = vmax.f32 %v1363, 0.0
        %v1662 = vmax.f32 %v1368, 0.0
        %v1663 = vmax.f32 %v1371, 0.0
        %v1664 = vmax.f32 %v1376, 0.0
        %v1665 = vmax.f32 %v1379, 0.0
        %v1666 = vmax.f32 %v1384, 0.0
        %v1667 = vmax.f32 %v1387, 0.0
        %v1668 = vmax.f32 %v1392, 0.0
        %v1669 = vmax.f32 %v1395, 0.0
        %v1670 = vmax.f32 %v1400, 0.0
        %v1671 = vmax.f32 %v1403, 0.0
        %v1672 = vmax.f32 %v1408, 0.0
        %v1673 = vmax.f32 %v1411, 0.0
        %v1674 = vmax.f32 %v1416, 0.0
        %v1675 = vmax.f32 %v1419, 0.0
        %v1676 = vmax.f32 %v1424, 0.0
        %v1677 = vmax.f32 %v1427, 0.0
        %v1678 = vmax.f32 %v1432, 0.0
        %v1679 = vmax.f32 %v1435, 0.0
        %v1680 = vmax.f32 %v1440, 0.0
        %v1681 = vmax.f32 %v1443, 0.0
        %v1682 = vmax.f32 %v1448, 0.0
        %v1683 = vmax.f32 %v1451, 0.0
        %v1684 = vmax.f32 %v1456, 0.0
        %v1685 = vmax.f32 %v1459, 0.0
        %v1686 = vmax.f32 %v1464, 0.0
        %v1687 = vmax.f32 %v1467, 0.0
        %v1688 = vmax.f32 %v1472, 0.0
        %v1689 = vmax.f32 %v1475, 0.0
        %v1690 = vmax.f32 %v1480, 0.0
        %v1691 = vmax.f32 %v1483, 0.0
        %v1692 = vmax.f32 %v1488, 0.0
        %v1693 = vmax.f32 %v1491, 0.0
        %v1694 = vmax.f32 %v1496, 0.0
        %v1695 = vmax.f32 %v1499, 0.0
        %v1696 = vmax.f32 %v1504, 0.0
        %v1697 = vmax.f32 %v1507, 0.0
        %v1698 = vmax.f32 %v1512, 0.0
        %v1699 = vmax.f32 %v1515, 0.0
        %v1700 = vmax.f32 %v1520, 0.0
        %v1701 = vmax.f32 %v1523, 0.0
        %v1702 = vmax.f32 %v1528, 0.0
        %v1703 = vmax.f32 %v1531, 0.0
        %v1704 = vmax.f32 %v1536, 0.0
        %v1705 = vmax.f32 %v1539, 0.0
        %v1706 = vmax.f32 %v1544, 0.0
        %v1707 = vmax.f32 %v1547, 0.0
        %v1708 = vmax.f32 %v1552, 0.0
        %v1709 = vmax.f32 %v1555, 0.0
        %v1710 = vmax.f32 %v1560, 0.0
        %v1711 = vmax.f32 %v1563, 0.0
        %v1712 = vmax.f32 %v1568, 0.0
        %v1713 = vmax.f32 %v1571, 0.0
        %v1714 = vmax.f32 %v1576, 0.0
        %v1715 = vmax.f32 %v1579, 0.0
        %v1716 = vmax.f32 %v1584, 0.0
        %v1717 = vmax.f32 %v1587, 0.0
        %vm1718 = vcmask 130048
        %1719 = vst.msk [vmem:[#allocation2] sm:$0xff] %vm1718, 0.0
        %1720 = vst.msk [vmem:[#allocation2 + $0x8] sm:$0xff] %vm1718, 0.0
        %vm1721 = vcmask 123904
        %1722 = vst.msk [vmem:[#allocation2 + $0x10] sm:$0x3] %vm1721, 0.0
        %1723 = vst.msk [vmem:[#allocation2 + $0x1b0] sm:$0xff] %vm1718, 0.0
        %1724 = vst.msk [vmem:[#allocation2 + $0x1b8] sm:$0xff] %vm1718, 0.0
        %1725 = vst.msk [vmem:[#allocation2 + $0x1c0] sm:$0x3] %vm1721, 0.0
        %1726 = vst.msk [vmem:[#allocation2 + $0x360] sm:$0xff] %vm1718, 0.0
        %1727 = vst.msk [vmem:[#allocation2 + $0x368] sm:$0xff] %vm1718, 0.0
        %1728 = vst.msk [vmem:[#allocation2 + $0x370] sm:$0x3] %vm1721, 0.0
        %1729 = vst.msk [vmem:[#allocation2 + $0x510] sm:$0xff] %vm1718, 0.0
        %1730 = vst.msk [vmem:[#allocation2 + $0x518] sm:$0xff] %vm1718, 0.0
        %1731 = vst.msk [vmem:[#allocation2 + $0x520] sm:$0x3] %vm1721, 0.0
        %s1732 = scalar_lea.vmem [#allocation2], 408
        %1733 = vst.msk [vmem:[%s1732] sm:$0xff] %vm1718, 0.0
        %1734 = vst.msk [vmem:[%s1732 + $0x8] sm:$0xff] %vm1718, 0.0
        %1735 = vst.msk [vmem:[%s1732 + $0x10] sm:$0x3] %vm1721, 0.0
        %1736 = vst.msk [vmem:[%s1732 + $0x1b0] sm:$0xff] %vm1718, 0.0
        %1737 = vst.msk [vmem:[%s1732 + $0x1b8] sm:$0xff] %vm1718, 0.0
        %1738 = vst.msk [vmem:[%s1732 + $0x1c0] sm:$0x3] %vm1721, 0.0
        %1739 = vst.msk [vmem:[%s1732 + $0x360] sm:$0xff] %vm1718, 0.0
        %1740 = vst.msk [vmem:[%s1732 + $0x368] sm:$0xff] %vm1718, 0.0
        %1741 = vst.msk [vmem:[%s1732 + $0x370] sm:$0x3] %vm1721, 0.0
        %1742 = vst.msk [vmem:[%s1732 + $0x510] sm:$0xff] %vm1718, 0.0
        %1743 = vst.msk [vmem:[%s1732 + $0x518] sm:$0xff] %vm1718, 0.0
        %1744 = vst.msk [vmem:[%s1732 + $0x520] sm:$0x3] %vm1721, 0.0
        %vm1745 = vcmask 122880
        %1746 = vst.msk [vmem:[#allocation2] sm:$0x1] %vm1745, 0.0
        %1747 = vst.msk [vmem:[#allocation2 + $0x18] sm:$0x1] %vm1745, 0.0
        %1748 = vst.msk [vmem:[#allocation2 + $0x30] sm:$0x1] %vm1745, 0.0
        %1749 = vst.msk [vmem:[#allocation2 + $0x48] sm:$0x1] %vm1745, 0.0
        %1750 = vst.msk [vmem:[#allocation2 + $0x60] sm:$0x1] %vm1745, 0.0
        %1751 = vst.msk [vmem:[#allocation2 + $0x78] sm:$0x1] %vm1745, 0.0
        %1752 = vst.msk [vmem:[#allocation2 + $0x90] sm:$0x1] %vm1745, 0.0
        %1753 = vst.msk [vmem:[#allocation2 + $0xa8] sm:$0x1] %vm1745, 0.0
        %1754 = vst.msk [vmem:[#allocation2 + $0xc0] sm:$0x1] %vm1745, 0.0
        %1755 = vst.msk [vmem:[#allocation2 + $0xd8] sm:$0x1] %vm1745, 0.0
        %1756 = vst.msk [vmem:[#allocation2 + $0xf0] sm:$0x1] %vm1745, 0.0
        %1757 = vst.msk [vmem:[#allocation2 + $0x108] sm:$0x1] %vm1745, 0.0
        %1758 = vst.msk [vmem:[#allocation2 + $0x120] sm:$0x1] %vm1745, 0.0
        %1759 = vst.msk [vmem:[#allocation2 + $0x138] sm:$0x1] %vm1745, 0.0
        %1760 = vst.msk [vmem:[#allocation2 + $0x150] sm:$0x1] %vm1745, 0.0
        %1761 = vst.msk [vmem:[#allocation2 + $0x168] sm:$0x1] %vm1745, 0.0
        %1762 = vst.msk [vmem:[#allocation2 + $0x180] sm:$0x1] %vm1745, 0.0
        %1763 = vst.msk [vmem:[#allocation2 + $0x198] sm:$0x1] %vm1745, 0.0
        %1764 = vst.msk [vmem:[#allocation2 + $0x1b0] sm:$0x1] %vm1745, 0.0
        %1765 = vst.msk [vmem:[#allocation2 + $0x1c8] sm:$0x1] %vm1745, 0.0
        %1766 = vst.msk [vmem:[#allocation2 + $0x1e0] sm:$0x1] %vm1745, 0.0
        %1767 = vst.msk [vmem:[#allocation2 + $0x1f8] sm:$0x1] %vm1745, 0.0
        %1768 = vst.msk [vmem:[#allocation2 + $0x210] sm:$0x1] %vm1745, 0.0
        %1769 = vst.msk [vmem:[#allocation2 + $0x228] sm:$0x1] %vm1745, 0.0
        %1770 = vst.msk [vmem:[#allocation2 + $0x240] sm:$0x1] %vm1745, 0.0
        %1771 = vst.msk [vmem:[#allocation2 + $0x258] sm:$0x1] %vm1745, 0.0
        %1772 = vst.msk [vmem:[#allocation2 + $0x270] sm:$0x1] %vm1745, 0.0
        %1773 = vst.msk [vmem:[#allocation2 + $0x288] sm:$0x1] %vm1745, 0.0
        %1774 = vst.msk [vmem:[#allocation2 + $0x2a0] sm:$0x1] %vm1745, 0.0
        %1775 = vst.msk [vmem:[#allocation2 + $0x2b8] sm:$0x1] %vm1745, 0.0
        %1776 = vst.msk [vmem:[#allocation2 + $0x2d0] sm:$0x1] %vm1745, 0.0
        %1777 = vst.msk [vmem:[#allocation2 + $0x2e8] sm:$0x1] %vm1745, 0.0
        %1778 = vst.msk [vmem:[#allocation2 + $0x300] sm:$0x1] %vm1745, 0.0
        %1779 = vst.msk [vmem:[#allocation2 + $0x318] sm:$0x1] %vm1745, 0.0
        %1780 = vst.msk [vmem:[#allocation2 + $0x330] sm:$0x1] %vm1745, 0.0
        %1781 = vst.msk [vmem:[#allocation2 + $0x348] sm:$0x1] %vm1745, 0.0
        %1782 = vst.msk [vmem:[#allocation2 + $0x360] sm:$0x1] %vm1745, 0.0
        %1783 = vst.msk [vmem:[#allocation2 + $0x378] sm:$0x1] %vm1745, 0.0
        %1784 = vst.msk [vmem:[#allocation2 + $0x390] sm:$0x1] %vm1745, 0.0
        %1785 = vst.msk [vmem:[#allocation2 + $0x3a8] sm:$0x1] %vm1745, 0.0
        %1786 = vst.msk [vmem:[#allocation2 + $0x3c0] sm:$0x1] %vm1745, 0.0
        %1787 = vst.msk [vmem:[#allocation2 + $0x3d8] sm:$0x1] %vm1745, 0.0
        %1788 = vst.msk [vmem:[#allocation2 + $0x3f0] sm:$0x1] %vm1745, 0.0
        %1789 = vst.msk [vmem:[#allocation2 + $0x408] sm:$0x1] %vm1745, 0.0
        %1790 = vst.msk [vmem:[#allocation2 + $0x420] sm:$0x1] %vm1745, 0.0
        %1791 = vst.msk [vmem:[#allocation2 + $0x438] sm:$0x1] %vm1745, 0.0
        %1792 = vst.msk [vmem:[#allocation2 + $0x450] sm:$0x1] %vm1745, 0.0
        %1793 = vst.msk [vmem:[#allocation2 + $0x468] sm:$0x1] %vm1745, 0.0
        %1794 = vst.msk [vmem:[#allocation2 + $0x480] sm:$0x1] %vm1745, 0.0
        %1795 = vst.msk [vmem:[#allocation2 + $0x498] sm:$0x1] %vm1745, 0.0
        %1796 = vst.msk [vmem:[#allocation2 + $0x4b0] sm:$0x1] %vm1745, 0.0
        %1797 = vst.msk [vmem:[#allocation2 + $0x4c8] sm:$0x1] %vm1745, 0.0
        %1798 = vst.msk [vmem:[#allocation2 + $0x4e0] sm:$0x1] %vm1745, 0.0
        %1799 = vst.msk [vmem:[#allocation2 + $0x4f8] sm:$0x1] %vm1745, 0.0
        %1800 = vst.msk [vmem:[#allocation2 + $0x510] sm:$0x1] %vm1745, 0.0
        %1801 = vst.msk [vmem:[#allocation2 + $0x528] sm:$0x1] %vm1745, 0.0
        %1802 = vst.msk [vmem:[#allocation2 + $0x540] sm:$0x1] %vm1745, 0.0
        %1803 = vst.msk [vmem:[#allocation2 + $0x558] sm:$0x1] %vm1745, 0.0
        %1804 = vst.msk [vmem:[#allocation2 + $0x570] sm:$0x1] %vm1745, 0.0
        %1805 = vst.msk [vmem:[#allocation2 + $0x588] sm:$0x1] %vm1745, 0.0
        %1806 = vst.msk [vmem:[#allocation2 + $0x5a0] sm:$0x1] %vm1745, 0.0
        %1807 = vst.msk [vmem:[#allocation2 + $0x5b8] sm:$0x1] %vm1745, 0.0
        %1808 = vst.msk [vmem:[#allocation2 + $0x5d0] sm:$0x1] %vm1745, 0.0
        %1809 = vst.msk [vmem:[#allocation2 + $0x5e8] sm:$0x1] %vm1745, 0.0
        %1810 = vst.msk [vmem:[#allocation2 + $0x600] sm:$0x1] %vm1745, 0.0
        %1811 = vst.msk [vmem:[#allocation2 + $0x618] sm:$0x1] %vm1745, 0.0
        %1812 = vst.msk [vmem:[#allocation2 + $0x630] sm:$0x1] %vm1745, 0.0
        %1813 = vst.msk [vmem:[#allocation2 + $0x648] sm:$0x1] %vm1745, 0.0
        %1814 = vst.msk [vmem:[#allocation2 + $0x660] sm:$0x1] %vm1745, 0.0
        %1815 = vst.msk [vmem:[#allocation2 + $0x678] sm:$0x1] %vm1745, 0.0
        %1816 = vst.msk [vmem:[#allocation2 + $0x690] sm:$0x1] %vm1745, 0.0
        %1817 = vst.msk [vmem:[#allocation2 + $0x6a8] sm:$0x1] %vm1745, 0.0
        %1818 = vst.msk [vmem:[#allocation2 + $0x11] sm:$0x1] %vm1745, 0.0
        %1819 = vst.msk [vmem:[#allocation2 + $0x29] sm:$0x1] %vm1745, 0.0
        %1820 = vst.msk [vmem:[#allocation2 + $0x41] sm:$0x1] %vm1745, 0.0
        %1821 = vst.msk [vmem:[#allocation2 + $0x59] sm:$0x1] %vm1745, 0.0
        %1822 = vst.msk [vmem:[#allocation2 + $0x71] sm:$0x1] %vm1745, 0.0
        %1823 = vst.msk [vmem:[#allocation2 + $0x89] sm:$0x1] %vm1745, 0.0
        %1824 = vst.msk [vmem:[#allocation2 + $0xa1] sm:$0x1] %vm1745, 0.0
        %1825 = vst.msk [vmem:[#allocation2 + $0xb9] sm:$0x1] %vm1745, 0.0
        %1826 = vst.msk [vmem:[#allocation2 + $0xd1] sm:$0x1] %vm1745, 0.0
        %1827 = vst.msk [vmem:[#allocation2 + $0xe9] sm:$0x1] %vm1745, 0.0
        %1828 = vst.msk [vmem:[#allocation2 + $0x101] sm:$0x1] %vm1745, 0.0
        %1829 = vst.msk [vmem:[#allocation2 + $0x119] sm:$0x1] %vm1745, 0.0
        %1830 = vst.msk [vmem:[#allocation2 + $0x131] sm:$0x1] %vm1745, 0.0
        %1831 = vst.msk [vmem:[#allocation2 + $0x149] sm:$0x1] %vm1745, 0.0
        %1832 = vst.msk [vmem:[#allocation2 + $0x161] sm:$0x1] %vm1745, 0.0
        %1833 = vst.msk [vmem:[#allocation2 + $0x179] sm:$0x1] %vm1745, 0.0
        %1834 = vst.msk [vmem:[#allocation2 + $0x191] sm:$0x1] %vm1745, 0.0
        %1835 = vst.msk [vmem:[#allocation2 + $0x1a9] sm:$0x1] %vm1745, 0.0
        %1836 = vst.msk [vmem:[#allocation2 + $0x1c1] sm:$0x1] %vm1745, 0.0
        %1837 = vst.msk [vmem:[#allocation2 + $0x1d9] sm:$0x1] %vm1745, 0.0
        %1838 = vst.msk [vmem:[#allocation2 + $0x1f1] sm:$0x1] %vm1745, 0.0
        %1839 = vst.msk [vmem:[#allocation2 + $0x209] sm:$0x1] %vm1745, 0.0
        %1840 = vst.msk [vmem:[#allocation2 + $0x221] sm:$0x1] %vm1745, 0.0
        %1841 = vst.msk [vmem:[#allocation2 + $0x239] sm:$0x1] %vm1745, 0.0
        %1842 = vst.msk [vmem:[#allocation2 + $0x251] sm:$0x1] %vm1745, 0.0
        %1843 = vst.msk [vmem:[#allocation2 + $0x269] sm:$0x1] %vm1745, 0.0
        %1844 = vst.msk [vmem:[#allocation2 + $0x281] sm:$0x1] %vm1745, 0.0
        %1845 = vst.msk [vmem:[#allocation2 + $0x299] sm:$0x1] %vm1745, 0.0
        %1846 = vst.msk [vmem:[#allocation2 + $0x2b1] sm:$0x1] %vm1745, 0.0
        %1847 = vst.msk [vmem:[#allocation2 + $0x2c9] sm:$0x1] %vm1745, 0.0
        %1848 = vst.msk [vmem:[#allocation2 + $0x2e1] sm:$0x1] %vm1745, 0.0
        %1849 = vst.msk [vmem:[#allocation2 + $0x2f9] sm:$0x1] %vm1745, 0.0
        %1850 = vst.msk [vmem:[#allocation2 + $0x311] sm:$0x1] %vm1745, 0.0
        %1851 = vst.msk [vmem:[#allocation2 + $0x329] sm:$0x1] %vm1745, 0.0
        %1852 = vst.msk [vmem:[#allocation2 + $0x341] sm:$0x1] %vm1745, 0.0
        %1853 = vst.msk [vmem:[#allocation2 + $0x359] sm:$0x1] %vm1745, 0.0
        %1854 = vst.msk [vmem:[#allocation2 + $0x371] sm:$0x1] %vm1745, 0.0
        %1855 = vst.msk [vmem:[#allocation2 + $0x389] sm:$0x1] %vm1745, 0.0
        %1856 = vst.msk [vmem:[#allocation2 + $0x3a1] sm:$0x1] %vm1745, 0.0
        %1857 = vst.msk [vmem:[#allocation2 + $0x3b9] sm:$0x1] %vm1745, 0.0
        %1858 = vst.msk [vmem:[#allocation2 + $0x3d1] sm:$0x1] %vm1745, 0.0
        %1859 = vst.msk [vmem:[#allocation2 + $0x3e9] sm:$0x1] %vm1745, 0.0
        %1860 = vst.msk [vmem:[#allocation2 + $0x401] sm:$0x1] %vm1745, 0.0
        %1861 = vst.msk [vmem:[#allocation2 + $0x419] sm:$0x1] %vm1745, 0.0
        %1862 = vst.msk [vmem:[#allocation2 + $0x431] sm:$0x1] %vm1745, 0.0
        %1863 = vst.msk [vmem:[#allocation2 + $0x449] sm:$0x1] %vm1745, 0.0
        %1864 = vst.msk [vmem:[#allocation2 + $0x461] sm:$0x1] %vm1745, 0.0
        %1865 = vst.msk [vmem:[#allocation2 + $0x479] sm:$0x1] %vm1745, 0.0
        %1866 = vst.msk [vmem:[#allocation2 + $0x491] sm:$0x1] %vm1745, 0.0
        %1867 = vst.msk [vmem:[#allocation2 + $0x4a9] sm:$0x1] %vm1745, 0.0
        %1868 = vst.msk [vmem:[#allocation2 + $0x4c1] sm:$0x1] %vm1745, 0.0
        %1869 = vst.msk [vmem:[#allocation2 + $0x4d9] sm:$0x1] %vm1745, 0.0
        %1870 = vst.msk [vmem:[#allocation2 + $0x4f1] sm:$0x1] %vm1745, 0.0
        %1871 = vst.msk [vmem:[#allocation2 + $0x509] sm:$0x1] %vm1745, 0.0
        %1872 = vst.msk [vmem:[#allocation2 + $0x521] sm:$0x1] %vm1745, 0.0
        %1873 = vst.msk [vmem:[#allocation2 + $0x539] sm:$0x1] %vm1745, 0.0
        %1874 = vst.msk [vmem:[#allocation2 + $0x551] sm:$0x1] %vm1745, 0.0
        %1875 = vst.msk [vmem:[#allocation2 + $0x569] sm:$0x1] %vm1745, 0.0
        %1876 = vst.msk [vmem:[#allocation2 + $0x581] sm:$0x1] %vm1745, 0.0
        %1877 = vst.msk [vmem:[#allocation2 + $0x599] sm:$0x1] %vm1745, 0.0
        %1878 = vst.msk [vmem:[#allocation2 + $0x5b1] sm:$0x1] %vm1745, 0.0
        %1879 = vst.msk [vmem:[#allocation2 + $0x5c9] sm:$0x1] %vm1745, 0.0
        %1880 = vst.msk [vmem:[#allocation2 + $0x5e1] sm:$0x1] %vm1745, 0.0
        %1881 = vst.msk [vmem:[#allocation2 + $0x5f9] sm:$0x1] %vm1745, 0.0
        %1882 = vst.msk [vmem:[#allocation2 + $0x611] sm:$0x1] %vm1745, 0.0
        %1883 = vst.msk [vmem:[#allocation2 + $0x629] sm:$0x1] %vm1745, 0.0
        %1884 = vst.msk [vmem:[#allocation2 + $0x641] sm:$0x1] %vm1745, 0.0
        %1885 = vst.msk [vmem:[#allocation2 + $0x659] sm:$0x1] %vm1745, 0.0
        %1886 = vst.msk [vmem:[#allocation2 + $0x671] sm:$0x1] %vm1745, 0.0
        %1887 = vst.msk [vmem:[#allocation2 + $0x689] sm:$0x1] %vm1745, 0.0
        %1888 = vst.msk [vmem:[#allocation2 + $0x6a1] sm:$0x1] %vm1745, 0.0
        %1889 = vst.msk [vmem:[#allocation2 + $0x6b9] sm:$0x1] %vm1745, 0.0
        %s1890 = scalar_lea.vmem [#allocation2], 24
        %1891 = vst.msk [vmem:[%s1890 + $0x1] sm:$0xff] %vm1718, %v1590
        %1892 = vst.msk [vmem:[%s1890 + $0x9] sm:$0xff] %vm1718, %v1591
        %1893 = vst.msk [vmem:[%s1890 + $0x19] sm:$0xff] %vm1718, %v1592
        %1894 = vst.msk [vmem:[%s1890 + $0x21] sm:$0xff] %vm1718, %v1593
        %1895 = vst.msk [vmem:[%s1890 + $0x31] sm:$0xff] %vm1718, %v1594
        %1896 = vst.msk [vmem:[%s1890 + $0x39] sm:$0xff] %vm1718, %v1595
        %1897 = vst.msk [vmem:[%s1890 + $0x49] sm:$0xff] %vm1718, %v1596
        %1898 = vst.msk [vmem:[%s1890 + $0x51] sm:$0xff] %vm1718, %v1597
        %1899 = vst.msk [vmem:[%s1890 + $0x61] sm:$0xff] %vm1718, %v1598
        %1900 = vst.msk [vmem:[%s1890 + $0x69] sm:$0xff] %vm1718, %v1599
        %1901 = vst.msk [vmem:[%s1890 + $0x79] sm:$0xff] %vm1718, %v1600
        %1902 = vst.msk [vmem:[%s1890 + $0x81] sm:$0xff] %vm1718, %v1601
        %1903 = vst.msk [vmem:[%s1890 + $0x91] sm:$0xff] %vm1718, %v1602
        %1904 = vst.msk [vmem:[%s1890 + $0x99] sm:$0xff] %vm1718, %v1603
        %1905 = vst.msk [vmem:[%s1890 + $0xa9] sm:$0xff] %vm1718, %v1604
        %1906 = vst.msk [vmem:[%s1890 + $0xb1] sm:$0xff] %vm1718, %v1605
        %1907 = vst.msk [vmem:[%s1890 + $0xc1] sm:$0xff] %vm1718, %v1606
        %1908 = vst.msk [vmem:[%s1890 + $0xc9] sm:$0xff] %vm1718, %v1607
        %1909 = vst.msk [vmem:[%s1890 + $0xd9] sm:$0xff] %vm1718, %v1608
        %1910 = vst.msk [vmem:[%s1890 + $0xe1] sm:$0xff] %vm1718, %v1609
        %1911 = vst.msk [vmem:[%s1890 + $0xf1] sm:$0xff] %vm1718, %v1610
        %1912 = vst.msk [vmem:[%s1890 + $0xf9] sm:$0xff] %vm1718, %v1611
        %1913 = vst.msk [vmem:[%s1890 + $0x109] sm:$0xff] %vm1718, %v1612
        %1914 = vst.msk [vmem:[%s1890 + $0x111] sm:$0xff] %vm1718, %v1613
        %1915 = vst.msk [vmem:[%s1890 + $0x121] sm:$0xff] %vm1718, %v1614
        %1916 = vst.msk [vmem:[%s1890 + $0x129] sm:$0xff] %vm1718, %v1615
        %1917 = vst.msk [vmem:[%s1890 + $0x139] sm:$0xff] %vm1718, %v1616
        %1918 = vst.msk [vmem:[%s1890 + $0x141] sm:$0xff] %vm1718, %v1617
        %1919 = vst.msk [vmem:[%s1890 + $0x151] sm:$0xff] %vm1718, %v1618
        %1920 = vst.msk [vmem:[%s1890 + $0x159] sm:$0xff] %vm1718, %v1619
        %1921 = vst.msk [vmem:[%s1890 + $0x169] sm:$0xff] %vm1718, %v1620
        %1922 = vst.msk [vmem:[%s1890 + $0x171] sm:$0xff] %vm1718, %v1621
        %1923 = vst.msk [vmem:[%s1890 + $0x1b1] sm:$0xff] %vm1718, %v1622
        %1924 = vst.msk [vmem:[%s1890 + $0x1b9] sm:$0xff] %vm1718, %v1623
        %1925 = vst.msk [vmem:[%s1890 + $0x1c9] sm:$0xff] %vm1718, %v1624
        %1926 = vst.msk [vmem:[%s1890 + $0x1d1] sm:$0xff] %vm1718, %v1625
        %1927 = vst.msk [vmem:[%s1890 + $0x1e1] sm:$0xff] %vm1718, %v1626
        %1928 = vst.msk [vmem:[%s1890 + $0x1e9] sm:$0xff] %vm1718, %v1627
        %1929 = vst.msk [vmem:[%s1890 + $0x1f9] sm:$0xff] %vm1718, %v1628
        %1930 = vst.msk [vmem:[%s1890 + $0x201] sm:$0xff] %vm1718, %v1629
        %1931 = vst.msk [vmem:[%s1890 + $0x211] sm:$0xff] %vm1718, %v1630
        %1932 = vst.msk [vmem:[%s1890 + $0x219] sm:$0xff] %vm1718, %v1631
        %1933 = vst.msk [vmem:[%s1890 + $0x229] sm:$0xff] %vm1718, %v1632
        %1934 = vst.msk [vmem:[%s1890 + $0x231] sm:$0xff] %vm1718, %v1633
        %1935 = vst.msk [vmem:[%s1890 + $0x241] sm:$0xff] %vm1718, %v1634
        %1936 = vst.msk [vmem:[%s1890 + $0x249] sm:$0xff] %vm1718, %v1635
        %1937 = vst.msk [vmem:[%s1890 + $0x259] sm:$0xff] %vm1718, %v1636
        %1938 = vst.msk [vmem:[%s1890 + $0x261] sm:$0xff] %vm1718, %v1637
        %1939 = vst.msk [vmem:[%s1890 + $0x271] sm:$0xff] %vm1718, %v1638
        %1940 = vst.msk [vmem:[%s1890 + $0x279] sm:$0xff] %vm1718, %v1639
        %1941 = vst.msk [vmem:[%s1890 + $0x289] sm:$0xff] %vm1718, %v1640
        %1942 = vst.msk [vmem:[%s1890 + $0x291] sm:$0xff] %vm1718, %v1641
        %1943 = vst.msk [vmem:[%s1890 + $0x2a1] sm:$0xff] %vm1718, %v1642
        %1944 = vst.msk [vmem:[%s1890 + $0x2a9] sm:$0xff] %vm1718, %v1643
        %1945 = vst.msk [vmem:[%s1890 + $0x2b9] sm:$0xff] %vm1718, %v1644
        %1946 = vst.msk [vmem:[%s1890 + $0x2c1] sm:$0xff] %vm1718, %v1645
        %1947 = vst.msk [vmem:[%s1890 + $0x2d1] sm:$0xff] %vm1718, %v1646
        %1948 = vst.msk [vmem:[%s1890 + $0x2d9] sm:$0xff] %vm1718, %v1647
        %1949 = vst.msk [vmem:[%s1890 + $0x2e9] sm:$0xff] %vm1718, %v1648
        %1950 = vst.msk [vmem:[%s1890 + $0x2f1] sm:$0xff] %vm1718, %v1649
        %1951 = vst.msk [vmem:[%s1890 + $0x301] sm:$0xff] %vm1718, %v1650
        %1952 = vst.msk [vmem:[%s1890 + $0x309] sm:$0xff] %vm1718, %v1651
        %1953 = vst.msk [vmem:[%s1890 + $0x319] sm:$0xff] %vm1718, %v1652
        %1954 = vst.msk [vmem:[%s1890 + $0x321] sm:$0xff] %vm1718, %v1653
        %1955 = vst.msk [vmem:[%s1890 + $0x361] sm:$0xff] %vm1718, %v1654
        %1956 = vst.msk [vmem:[%s1890 + $0x369] sm:$0xff] %vm1718, %v1655
        %1957 = vst.msk [vmem:[%s1890 + $0x379] sm:$0xff] %vm1718, %v1656
        %1958 = vst.msk [vmem:[%s1890 + $0x381] sm:$0xff] %vm1718, %v1657
        %1959 = vst.msk [vmem:[%s1890 + $0x391] sm:$0xff] %vm1718, %v1658
        %1960 = vst.msk [vmem:[%s1890 + $0x399] sm:$0xff] %vm1718, %v1659
        %1961 = vst.msk [vmem:[%s1890 + $0x3a9] sm:$0xff] %vm1718, %v1660
        %1962 = vst.msk [vmem:[%s1890 + $0x3b1] sm:$0xff] %vm1718, %v1661
        %1963 = vst.msk [vmem:[%s1890 + $0x3c1] sm:$0xff] %vm1718, %v1662
        %1964 = vst.msk [vmem:[%s1890 + $0x3c9] sm:$0xff] %vm1718, %v1663
        %1965 = vst.msk [vmem:[%s1890 + $0x3d9] sm:$0xff] %vm1718, %v1664
        %1966 = vst.msk [vmem:[%s1890 + $0x3e1] sm:$0xff] %vm1718, %v1665
        %1967 = vst.msk [vmem:[%s1890 + $0x3f1] sm:$0xff] %vm1718, %v1666
        %1968 = vst.msk [vmem:[%s1890 + $0x3f9] sm:$0xff] %vm1718, %v1667
        %1969 = vst.msk [vmem:[%s1890 + $0x409] sm:$0xff] %vm1718, %v1668
        %1970 = vst.msk [vmem:[%s1890 + $0x411] sm:$0xff] %vm1718, %v1669
        %1971 = vst.msk [vmem:[%s1890 + $0x421] sm:$0xff] %vm1718, %v1670
        %1972 = vst.msk [vmem:[%s1890 + $0x429] sm:$0xff] %vm1718, %v1671
        %1973 = vst.msk [vmem:[%s1890 + $0x439] sm:$0xff] %vm1718, %v1672
        %1974 = vst.msk [vmem:[%s1890 + $0x441] sm:$0xff] %vm1718, %v1673
        %1975 = vst.msk [vmem:[%s1890 + $0x451] sm:$0xff] %vm1718, %v1674
        %1976 = vst.msk [vmem:[%s1890 + $0x459] sm:$0xff] %vm1718, %v1675
        %1977 = vst.msk [vmem:[%s1890 + $0x469] sm:$0xff] %vm1718, %v1676
        %1978 = vst.msk [vmem:[%s1890 + $0x471] sm:$0xff] %vm1718, %v1677
        %1979 = vst.msk [vmem:[%s1890 + $0x481] sm:$0xff] %vm1718, %v1678
        %1980 = vst.msk [vmem:[%s1890 + $0x489] sm:$0xff] %vm1718, %v1679
        %1981 = vst.msk [vmem:[%s1890 + $0x499] sm:$0xff] %vm1718, %v1680
        %1982 = vst.msk [vmem:[%s1890 + $0x4a1] sm:$0xff] %vm1718, %v1681
        %1983 = vst.msk [vmem:[%s1890 + $0x4b1] sm:$0xff] %vm1718, %v1682
        %1984 = vst.msk [vmem:[%s1890 + $0x4b9] sm:$0xff] %vm1718, %v1683
        %1985 = vst.msk [vmem:[%s1890 + $0x4c9] sm:$0xff] %vm1718, %v1684
        %1986 = vst.msk [vmem:[%s1890 + $0x4d1] sm:$0xff] %vm1718, %v1685
        %1987 = vst.msk [vmem:[%s1890 + $0x511] sm:$0xff] %vm1718, %v1686
        %1988 = vst.msk [vmem:[%s1890 + $0x519] sm:$0xff] %vm1718, %v1687
        %1989 = vst.msk [vmem:[%s1890 + $0x529] sm:$0xff] %vm1718, %v1688
        %1990 = vst.msk [vmem:[%s1890 + $0x531] sm:$0xff] %vm1718, %v1689
        %1991 = vst.msk [vmem:[%s1890 + $0x541] sm:$0xff] %vm1718, %v1690
        %1992 = vst.msk [vmem:[%s1890 + $0x549] sm:$0xff] %vm1718, %v1691
        %1993 = vst.msk [vmem:[%s1890 + $0x559] sm:$0xff] %vm1718, %v1692
        %1994 = vst.msk [vmem:[%s1890 + $0x561] sm:$0xff] %vm1718, %v1693
        %1995 = vst.msk [vmem:[%s1890 + $0x571] sm:$0xff] %vm1718, %v1694
        %1996 = vst.msk [vmem:[%s1890 + $0x579] sm:$0xff] %vm1718, %v1695
        %1997 = vst.msk [vmem:[%s1890 + $0x589] sm:$0xff] %vm1718, %v1696
        %1998 = vst.msk [vmem:[%s1890 + $0x591] sm:$0xff] %vm1718, %v1697
        %1999 = vst.msk [vmem:[%s1890 + $0x5a1] sm:$0xff] %vm1718, %v1698
        %2000 = vst.msk [vmem:[%s1890 + $0x5a9] sm:$0xff] %vm1718, %v1699
        %2001 = vst.msk [vmem:[%s1890 + $0x5b9] sm:$0xff] %vm1718, %v1700
        %2002 = vst.msk [vmem:[%s1890 + $0x5c1] sm:$0xff] %vm1718, %v1701
        %2003 = vst.msk [vmem:[%s1890 + $0x5d1] sm:$0xff] %vm1718, %v1702
        %2004 = vst.msk [vmem:[%s1890 + $0x5d9] sm:$0xff] %vm1718, %v1703
        %2005 = vst.msk [vmem:[%s1890 + $0x5e9] sm:$0xff] %vm1718, %v1704
        %2006 = vst.msk [vmem:[%s1890 + $0x5f1] sm:$0xff] %vm1718, %v1705
        %2007 = vst.msk [vmem:[%s1890 + $0x601] sm:$0xff] %vm1718, %v1706
        %2008 = vst.msk [vmem:[%s1890 + $0x609] sm:$0xff] %vm1718, %v1707
        %2009 = vst.msk [vmem:[%s1890 + $0x619] sm:$0xff] %vm1718, %v1708
        %2010 = vst.msk [vmem:[%s1890 + $0x621] sm:$0xff] %vm1718, %v1709
        %2011 = vst.msk [vmem:[%s1890 + $0x631] sm:$0xff] %vm1718, %v1710
        %2012 = vst.msk [vmem:[%s1890 + $0x639] sm:$0xff] %vm1718, %v1711
        %2013 = vst.msk [vmem:[%s1890 + $0x649] sm:$0xff] %vm1718, %v1712
        %2014 = vst.msk [vmem:[%s1890 + $0x651] sm:$0xff] %vm1718, %v1713
        %2015 = vst.msk [vmem:[%s1890 + $0x661] sm:$0xff] %vm1718, %v1714
        %2016 = vst.msk [vmem:[%s1890 + $0x669] sm:$0xff] %vm1718, %v1715
        %2017 = vst.msk [vmem:[%s1890 + $0x679] sm:$0xff] %vm1718, %v1716
        %2018 = vst.msk [vmem:[%s1890 + $0x681] sm:$0xff] %vm1718, %v1717
        %v2019 = vld [vmem:[#allocation2] ss:$2 sm:$0xff]
        %s2020 = scalar_lea.vmem [#allocation2], 48
        %v2021 = vld [vmem:[%s2020] ss:$2 sm:$0xff]
        %s2022 = scalar_lea.vmem [#allocation2], 96
        %v2023 = vld [vmem:[%s2022] ss:$2 sm:$0xff]
        %s2024 = scalar_lea.vmem [#allocation2], 144
        %v2025 = vld [vmem:[%s2024] ss:$2 sm:$0xff]
        %s2026 = scalar_lea.vmem [#allocation2], 192
        %v2027 = vld [vmem:[%s2026] ss:$2 sm:$0xff]
        %s2028 = scalar_lea.vmem [#allocation2], 240
        %v2029 = vld [vmem:[%s2028] ss:$2 sm:$0xff]
        %s2030 = scalar_lea.vmem [#allocation2], 288
        %v2031 = vld [vmem:[%s2030] ss:$2 sm:$0xff]
        %s2032 = scalar_lea.vmem [#allocation2], 336
        %v2033 = vld [vmem:[%s2032] ss:$2 sm:$0xff]
        %s2034 = scalar_lea.vmem [#allocation2], 432
        %v2035 = vld [vmem:[%s2034] ss:$2 sm:$0xff]
        %s2036 = scalar_lea.vmem [#allocation2], 480
        %v2037 = vld [vmem:[%s2036] ss:$2 sm:$0xff]
        %s2038 = scalar_lea.vmem [#allocation2], 528
        %v2039 = vld [vmem:[%s2038] ss:$2 sm:$0xff]
        %s2040 = scalar_lea.vmem [#allocation2], 576
        %v2041 = vld [vmem:[%s2040] ss:$2 sm:$0xff]
        %s2042 = scalar_lea.vmem [#allocation2], 624
        %v2043 = vld [vmem:[%s2042] ss:$2 sm:$0xff]
        %s2044 = scalar_lea.vmem [#allocation2], 672
        %v2045 = vld [vmem:[%s2044] ss:$2 sm:$0xff]
        %s2046 = scalar_lea.vmem [#allocation2], 720
        %v2047 = vld [vmem:[%s2046] ss:$2 sm:$0xff]
        %s2048 = scalar_lea.vmem [#allocation2], 768
        %v2049 = vld [vmem:[%s2048] ss:$2 sm:$0xff]
        %s2050 = scalar_lea.vmem [#allocation2], 864
        %v2051 = vld [vmem:[%s2050] ss:$2 sm:$0xff]
        %s2052 = scalar_lea.vmem [#allocation2], 912
        %v2053 = vld [vmem:[%s2052] ss:$2 sm:$0xff]
        %s2054 = scalar_lea.vmem [#allocation2], 960
        %v2055 = vld [vmem:[%s2054] ss:$2 sm:$0xff]
        %s2056 = scalar_lea.vmem [#allocation2], 1008
        %v2057 = vld [vmem:[%s2056] ss:$2 sm:$0xff]
        %s2058 = scalar_lea.vmem [#allocation2], 1056
        %v2059 = vld [vmem:[%s2058] ss:$2 sm:$0xff]
        %s2060 = scalar_lea.vmem [#allocation2], 1104
        %v2061 = vld [vmem:[%s2060] ss:$2 sm:$0xff]
        %s2062 = scalar_lea.vmem [#allocation2], 1152
        %v2063 = vld [vmem:[%s2062] ss:$2 sm:$0xff]
        %s2064 = scalar_lea.vmem [#allocation2], 1200
        %v2065 = vld [vmem:[%s2064] ss:$2 sm:$0xff]
        %s2066 = scalar_lea.vmem [#allocation2], 1296
        %v2067 = vld [vmem:[%s2066] ss:$2 sm:$0xff]
        %s2068 = scalar_lea.vmem [#allocation2], 1344
        %v2069 = vld [vmem:[%s2068] ss:$2 sm:$0xff]
        %s2070 = scalar_lea.vmem [#allocation2], 1392
        %v2071 = vld [vmem:[%s2070] ss:$2 sm:$0xff]
        %s2072 = scalar_lea.vmem [#allocation2], 1440
        %v2073 = vld [vmem:[%s2072] ss:$2 sm:$0xff]
        %s2074 = scalar_lea.vmem [#allocation2], 1488
        %v2075 = vld [vmem:[%s2074] ss:$2 sm:$0xff]
        %s2076 = scalar_lea.vmem [#allocation2], 1536
        %v2077 = vld [vmem:[%s2076] ss:$2 sm:$0xff]
        %s2078 = scalar_lea.vmem [#allocation2], 1584
        %v2079 = vld [vmem:[%s2078] ss:$2 sm:$0xff]
        %s2080 = scalar_lea.vmem [#allocation2], 1632
        %v2081 = vld [vmem:[%s2080] ss:$2 sm:$0xff]
        %v2082 = vpack.c.bf16 %v2021, %v2019
        %v2083 = vpack.c.bf16 %v2025, %v2023
        %v2084 = vpack.c.bf16 %v2029, %v2027
        %v2085 = vpack.c.bf16 %v2033, %v2031
        %v2086 = vpack.c.bf16 %v2037, %v2035
        %v2087 = vpack.c.bf16 %v2041, %v2039
        %v2088 = vpack.c.bf16 %v2045, %v2043
        %v2089 = vpack.c.bf16 %v2049, %v2047
        %v2090 = vpack.c.bf16 %v2053, %v2051
        %v2091 = vpack.c.bf16 %v2057, %v2055
        %v2092 = vpack.c.bf16 %v2061, %v2059
        %v2093 = vpack.c.bf16 %v2065, %v2063
        %v2094 = vpack.c.bf16 %v2069, %v2067
        %v2095 = vpack.c.bf16 %v2073, %v2071
        %v2096 = vpack.c.bf16 %v2077, %v2075
        %v2097 = vpack.c.bf16 %v2081, %v2079
        %v2098 = vld [vmem:[%s2] sm:$0xf]
        %v2099 = vld [vmem:[%s2 + $0x4] sm:$0xf]
        %s2100 = scalar_lea.vmem [#allocation2], 1
        %v2101 = vld [vmem:[%s2100] ss:$2 sm:$0xff]
        %s2102 = scalar_lea.vmem [#allocation2], 49
        %v2103 = vld [vmem:[%s2102] ss:$2 sm:$0xff]
        %s2104 = scalar_lea.vmem [#allocation2], 97
        %v2105 = vld [vmem:[%s2104] ss:$2 sm:$0xff]
        %s2106 = scalar_lea.vmem [#allocation2], 145
        %v2107 = vld [vmem:[%s2106] ss:$2 sm:$0xff]
        %s2108 = scalar_lea.vmem [#allocation2], 193
        %v2109 = vld [vmem:[%s2108] ss:$2 sm:$0xff]
        %s2110 = scalar_lea.vmem [#allocation2], 241
        %v2111 = vld [vmem:[%s2110] ss:$2 sm:$0xff]
        %s2112 = scalar_lea.vmem [#allocation2], 289
        %v2113 = vld [vmem:[%s2112] ss:$2 sm:$0xff]
        %s2114 = scalar_lea.vmem [#allocation2], 337
        %v2115 = vld [vmem:[%s2114] ss:$2 sm:$0xff]
        %s2116 = scalar_lea.vmem [#allocation2], 433
        %v2117 = vld [vmem:[%s2116] ss:$2 sm:$0xff]
        %s2118 = scalar_lea.vmem [#allocation2], 481
        %v2119 = vld [vmem:[%s2118] ss:$2 sm:$0xff]
        %s2120 = scalar_lea.vmem [#allocation2], 529
        %v2121 = vld [vmem:[%s2120] ss:$2 sm:$0xff]
        %s2122 = scalar_lea.vmem [#allocation2], 577
        %v2123 = vld [vmem:[%s2122] ss:$2 sm:$0xff]
        %s2124 = scalar_lea.vmem [#allocation2], 625
        %v2125 = vld [vmem:[%s2124] ss:$2 sm:$0xff]
        %s2126 = scalar_lea.vmem [#allocation2], 673
        %v2127 = vld [vmem:[%s2126] ss:$2 sm:$0xff]
        %s2128 = scalar_lea.vmem [#allocation2], 721
        %v2129 = vld [vmem:[%s2128] ss:$2 sm:$0xff]
        %s2130 = scalar_lea.vmem [#allocation2], 769
        %v2131 = vld [vmem:[%s2130] ss:$2 sm:$0xff]
        %s2132 = scalar_lea.vmem [#allocation2], 865
        %v2133 = vld [vmem:[%s2132] ss:$2 sm:$0xff]
        %s2134 = scalar_lea.vmem [#allocation2], 913
        %v2135 = vld [vmem:[%s2134] ss:$2 sm:$0xff]
        %s2136 = scalar_lea.vmem [#allocation2], 961
        %v2137 = vld [vmem:[%s2136] ss:$2 sm:$0xff]
        %s2138 = scalar_lea.vmem [#allocation2], 1009
        %v2139 = vld [vmem:[%s2138] ss:$2 sm:$0xff]
        %s2140 = scalar_lea.vmem [#allocation2], 1057
        %v2141 = vld [vmem:[%s2140] ss:$2 sm:$0xff]
        %s2142 = scalar_lea.vmem [#allocation2], 1105
        %v2143 = vld [vmem:[%s2142] ss:$2 sm:$0xff]
        %s2144 = scalar_lea.vmem [#allocation2], 1153
        %v2145 = vld [vmem:[%s2144] ss:$2 sm:$0xff]
        %s2146 = scalar_lea.vmem [#allocation2], 1201
        %v2147 = vld [vmem:[%s2146] ss:$2 sm:$0xff]
        %s2148 = scalar_lea.vmem [#allocation2], 1297
        %v2149 = vld [vmem:[%s2148] ss:$2 sm:$0xff]
        %s2150 = scalar_lea.vmem [#allocation2], 1345
        %v2151 = vld [vmem:[%s2150] ss:$2 sm:$0xff]
        %s2152 = scalar_lea.vmem [#allocation2], 1393
        %v2153 = vld [vmem:[%s2152] ss:$2 sm:$0xff]
        %s2154 = scalar_lea.vmem [#allocation2], 1441
        %v2155 = vld [vmem:[%s2154] ss:$2 sm:$0xff]
        %s2156 = scalar_lea.vmem [#allocation2], 1489
        %v2157 = vld [vmem:[%s2156] ss:$2 sm:$0xff]
        %s2158 = scalar_lea.vmem [#allocation2], 1537
        %v2159 = vld [vmem:[%s2158] ss:$2 sm:$0xff]
        %s2160 = scalar_lea.vmem [#allocation2], 1585
        %v2161 = vld [vmem:[%s2160] ss:$2 sm:$0xff]
        %s2162 = scalar_lea.vmem [#allocation2], 1633
        %v2163 = vld [vmem:[%s2162] ss:$2 sm:$0xff]
        %v2164 = vpack.c.bf16 %v2103, %v2101
        %v2165 = vpack.c.bf16 %v2107, %v2105
        %v2166 = vpack.c.bf16 %v2111, %v2109
        %v2167 = vpack.c.bf16 %v2115, %v2113
        %v2168 = vpack.c.bf16 %v2119, %v2117
        %v2169 = vpack.c.bf16 %v2123, %v2121
        %v2170 = vpack.c.bf16 %v2127, %v2125
        %v2171 = vpack.c.bf16 %v2131, %v2129
        %v2172 = vpack.c.bf16 %v2135, %v2133
        %v2173 = vpack.c.bf16 %v2139, %v2137
        %v2174 = vpack.c.bf16 %v2143, %v2141
        %v2175 = vpack.c.bf16 %v2147, %v2145
        %v2176 = vpack.c.bf16 %v2151, %v2149
        %v2177 = vpack.c.bf16 %v2155, %v2153
        %v2178 = vpack.c.bf16 %v2159, %v2157
        %v2179 = vpack.c.bf16 %v2163, %v2161
        %s2180 = scalar_lea.vmem %s2, 8
        %v2181 = vld [vmem:[%s2180] sm:$0xf]
        %v2182 = vld [vmem:[%s2180 + $0x4] sm:$0xf]
        %v2185 = vunpack.c.l.b16 %v2181
        %v2186 = vunpack.c.l.b16 %v2182
        %v2187 = vpack.c.b16 %v2186, %v2185
        %v2190 = vsel %vm1718, %v2164, 0
        %v2193 = vsel %vm1718, %v2165, 0
        %v2196 = vsel %vm1718, %v2166, 0
        %v2199 = vsel %vm1718, %v2167, 0
        %v2202 = vsel %vm1718, %v2168, 0
        %v2205 = vsel %vm1718, %v2169, 0
        %v2208 = vsel %vm1718, %v2170, 0
        %v2211 = vsel %vm1718, %v2171, 0
        %v2214 = vsel %vm1718, %v2172, 0
        %v2217 = vsel %vm1718, %v2173, 0
        %v2220 = vsel %vm1718, %v2174, 0
        %v2223 = vsel %vm1718, %v2175, 0
        %v2226 = vsel %vm1718, %v2176, 0
        %v2229 = vsel %vm1718, %v2177, 0
        %v2232 = vsel %vm1718, %v2178, 0
        %v2235 = vsel %vm1718, %v2179, 0
        %2237 = vmatprep.subr.bf16.mxu0 0
        %2238 = vmatpush1.bf16.msra.mxu0 0
        %2239 = vmatprep.subr.bf16.mxu0 0
        %2240 = vmatpush1.bf16.msra.mxu0 0
        %2241 = vmatprep.subr.bf16.mxu0 0
        %2242 = vmatpush1.bf16.msra.mxu0 0
        %2243 = vmatprep.subr.bf16.mxu0 0
        %2244 = vmatpush1.bf16.msra.mxu0 0
        %2245 = vmatprep.subr.bf16.mxu0 0
        %2246 = vmatpush1.bf16.msra.mxu0 0
        %2247 = vmatprep.subr.bf16.mxu0 0
        %2248 = vmatpush1.bf16.msra.mxu0 0
        %2249 = vmatprep.subr.bf16.mxu0 0
        %2250 = vmatpush1.bf16.msra.mxu0 0
        %2251 = vmatprep.subr.bf16.mxu0 0
        %2252 = vmatpush1.bf16.msra.mxu0 %v2187
        %2253 = vmatprep.subr.bf16.mxu0 0
        %2254 = vmatpush2.bf16.msra.mxu0 0
        %2255 = vmatprep.subr.bf16.mxu0 0
        %2256 = vmatpush2.bf16.msra.mxu0 0
        %2257 = vmatprep.subr.bf16.mxu0 0
        %2258 = vmatpush2.bf16.msra.mxu0 0
        %2259 = vmatprep.subr.bf16.mxu0 0
        %2260 = vmatpush2.bf16.msra.mxu0 0
        %2261 = vmatprep.subr.bf16.mxu0 0
        %2262 = vmatpush2.bf16.msra.mxu0 0
        %2263 = vmatprep.subr.bf16.mxu0 0
        %2264 = vmatpush2.bf16.msra.mxu0 0
        %2265 = vmatprep.subr.bf16.mxu0 0
        %2266 = vmatpush2.bf16.msra.mxu0 0
        %2267 = vmatprep.subr.bf16.mxu0 0
        %2268 = vmatpush2.bf16.msra.mxu0 0
        %2269 = vmatprep.mubr.bf16.mxu0 0
        %2270 = vmatmul.mubr.bf16.gmra.mxu0 %v2190
        %v2271 = vpop.f32.mrf.mxu0
        %v2272 = vadd.f32 0.0, %v2271
        %v2273 = vpop.f32.mrf.mxu0
        %v2274 = vpop.f32.mrf.mxu0
        %v2275 = vadd.f32 0.0, %v2274
        %v2276 = vpop.f32.mrf.mxu0
        %2277 = vmatprep.mubr.bf16.mxu0 0
        %2278 = vmatmul.mubr.bf16.gmra.mxu0 %v2193
        %v2279 = vpop.f32.mrf.mxu0
        %v2280 = vadd.f32 0.0, %v2279
        %v2281 = vpop.f32.mrf.mxu0
        %v2282 = vpop.f32.mrf.mxu0
        %v2283 = vadd.f32 0.0, %v2282
        %v2284 = vpop.f32.mrf.mxu0
        %2285 = vmatprep.mubr.bf16.mxu0 0
        %2286 = vmatmul.mubr.bf16.gmra.mxu0 %v2196
        %v2287 = vpop.f32.mrf.mxu0
        %v2288 = vadd.f32 0.0, %v2287
        %v2289 = vpop.f32.mrf.mxu0
        %v2290 = vpop.f32.mrf.mxu0
        %v2291 = vadd.f32 0.0, %v2290
        %v2292 = vpop.f32.mrf.mxu0
        %2293 = vmatprep.mubr.bf16.mxu0 0
        %2294 = vmatmul.mubr.bf16.gmra.mxu0 %v2199
        %v2295 = vpop.f32.mrf.mxu0
        %v2296 = vadd.f32 0.0, %v2295
        %v2297 = vpop.f32.mrf.mxu0
        %v2298 = vpop.f32.mrf.mxu0
        %v2299 = vadd.f32 0.0, %v2298
        %v2300 = vpop.f32.mrf.mxu0
        %2301 = vmatprep.mubr.bf16.mxu0 0
        %2302 = vmatmul.mubr.bf16.gmra.mxu0 %v2202
        %v2303 = vpop.f32.mrf.mxu0
        %v2304 = vadd.f32 0.0, %v2303
        %v2305 = vpop.f32.mrf.mxu0
        %v2306 = vpop.f32.mrf.mxu0
        %v2307 = vadd.f32 0.0, %v2306
        %v2308 = vpop.f32.mrf.mxu0
        %2309 = vmatprep.mubr.bf16.mxu0 0
        %2310 = vmatmul.mubr.bf16.gmra.mxu0 %v2205
        %v2311 = vpop.f32.mrf.mxu0
        %v2312 = vadd.f32 0.0, %v2311
        %v2313 = vpop.f32.mrf.mxu0
        %v2314 = vpop.f32.mrf.mxu0
        %v2315 = vadd.f32 0.0, %v2314
        %v2316 = vpop.f32.mrf.mxu0
        %2317 = vmatprep.mubr.bf16.mxu0 0
        %2318 = vmatmul.mubr.bf16.gmra.mxu0 %v2208
        %v2319 = vpop.f32.mrf.mxu0
        %v2320 = vadd.f32 0.0, %v2319
        %v2321 = vpop.f32.mrf.mxu0
        %v2322 = vpop.f32.mrf.mxu0
        %v2323 = vadd.f32 0.0, %v2322
        %v2324 = vpop.f32.mrf.mxu0
        %2325 = vmatprep.mubr.bf16.mxu0 0
        %2326 = vmatmul.mubr.bf16.gmra.mxu0 %v2211
        %v2327 = vpop.f32.mrf.mxu0
        %v2328 = vadd.f32 0.0, %v2327
        %v2329 = vpop.f32.mrf.mxu0
        %v2330 = vpop.f32.mrf.mxu0
        %v2331 = vadd.f32 0.0, %v2330
        %v2332 = vpop.f32.mrf.mxu0
        %2333 = vmatprep.mubr.bf16.mxu0 0
        %2334 = vmatmul.mubr.bf16.gmra.mxu0 %v2214
        %v2335 = vpop.f32.mrf.mxu0
        %v2336 = vadd.f32 0.0, %v2335
        %v2337 = vpop.f32.mrf.mxu0
        %v2338 = vpop.f32.mrf.mxu0
        %v2339 = vadd.f32 0.0, %v2338
        %v2340 = vpop.f32.mrf.mxu0
        %2341 = vmatprep.mubr.bf16.mxu0 0
        %2342 = vmatmul.mubr.bf16.gmra.mxu0 %v2217
        %v2343 = vpop.f32.mrf.mxu0
        %v2344 = vadd.f32 0.0, %v2343
        %v2345 = vpop.f32.mrf.mxu0
        %v2346 = vpop.f32.mrf.mxu0
        %v2347 = vadd.f32 0.0, %v2346
        %v2348 = vpop.f32.mrf.mxu0
        %2349 = vmatprep.mubr.bf16.mxu0 0
        %2350 = vmatmul.mubr.bf16.gmra.mxu0 %v2220
        %v2351 = vpop.f32.mrf.mxu0
        %v2352 = vadd.f32 0.0, %v2351
        %v2353 = vpop.f32.mrf.mxu0
        %v2354 = vpop.f32.mrf.mxu0
        %v2355 = vadd.f32 0.0, %v2354
        %v2356 = vpop.f32.mrf.mxu0
        %2357 = vmatprep.mubr.bf16.mxu0 0
        %2358 = vmatmul.mubr.bf16.gmra.mxu0 %v2223
        %v2359 = vpop.f32.mrf.mxu0
        %v2360 = vadd.f32 0.0, %v2359
        %v2361 = vpop.f32.mrf.mxu0
        %v2362 = vpop.f32.mrf.mxu0
        %v2363 = vadd.f32 0.0, %v2362
        %v2364 = vpop.f32.mrf.mxu0
        %2365 = vmatprep.mubr.bf16.mxu0 0
        %2366 = vmatmul.mubr.bf16.gmra.mxu0 %v2226
        %v2367 = vpop.f32.mrf.mxu0
        %v2368 = vadd.f32 0.0, %v2367
        %v2369 = vpop.f32.mrf.mxu0
        %v2370 = vpop.f32.mrf.mxu0
        %v2371 = vadd.f32 0.0, %v2370
        %v2372 = vpop.f32.mrf.mxu0
        %2373 = vmatprep.mubr.bf16.mxu0 0
        %2374 = vmatmul.mubr.bf16.gmra.mxu0 %v2229
        %v2375 = vpop.f32.mrf.mxu0
        %v2376 = vadd.f32 0.0, %v2375
        %v2377 = vpop.f32.mrf.mxu0
        %v2378 = vpop.f32.mrf.mxu0
        %v2379 = vadd.f32 0.0, %v2378
        %v2380 = vpop.f32.mrf.mxu0
        %2381 = vmatprep.mubr.bf16.mxu0 0
        %2382 = vmatmul.mubr.bf16.gmra.mxu0 %v2232
        %v2383 = vpop.f32.mrf.mxu0
        %v2384 = vadd.f32 0.0, %v2383
        %v2385 = vpop.f32.mrf.mxu0
        %v2386 = vpop.f32.mrf.mxu0
        %v2387 = vadd.f32 0.0, %v2386
        %v2388 = vpop.f32.mrf.mxu0
        %2389 = vmatprep.mubr.bf16.mxu0 0
        %2390 = vmatmul.mubr.bf16.gmra.mxu0 %v2235
        %v2391 = vpop.f32.mrf.mxu0
        %v2392 = vadd.f32 0.0, %v2391
        %v2393 = vpop.f32.mrf.mxu0
        %v2394 = vpop.f32.mrf.mxu0
        %v2395 = vadd.f32 0.0, %v2394
        %v2396 = vpop.f32.mrf.mxu0
        %2397 = vdwg.mxu0
        %v2400 = vunpack.c.l.b16 %v2098
        %v2401 = vunpack.c.l.b16 %v2099
        %v2402 = vpack.c.b16 %v2401, %v2400
        %v2405 = vsel %vm1718, %v2082, 0
        %v2408 = vsel %vm1718, %v2083, 0
        %v2411 = vsel %vm1718, %v2084, 0
        %v2414 = vsel %vm1718, %v2085, 0
        %v2417 = vsel %vm1718, %v2086, 0
        %v2420 = vsel %vm1718, %v2087, 0
        %v2423 = vsel %vm1718, %v2088, 0
        %v2426 = vsel %vm1718, %v2089, 0
        %v2429 = vsel %vm1718, %v2090, 0
        %v2432 = vsel %vm1718, %v2091, 0
        %v2435 = vsel %vm1718, %v2092, 0
        %v2438 = vsel %vm1718, %v2093, 0
        %v2441 = vsel %vm1718, %v2094, 0
        %v2444 = vsel %vm1718, %v2095, 0
        %v2447 = vsel %vm1718, %v2096, 0
        %v2450 = vsel %vm1718, %v2097, 0
        %2452 = vmatprep.subr.bf16.mxu0 0
        %2453 = vmatpush1.bf16.msra.mxu0 0
        %2454 = vmatprep.subr.bf16.mxu0 0
        %2455 = vmatpush1.bf16.msra.mxu0 0
        %2456 = vmatprep.subr.bf16.mxu0 0
        %2457 = vmatpush1.bf16.msra.mxu0 0
        %2458 = vmatprep.subr.bf16.mxu0 0
        %2459 = vmatpush1.bf16.msra.mxu0 0
        %2460 = vmatprep.subr.bf16.mxu0 0
        %2461 = vmatpush1.bf16.msra.mxu0 0
        %2462 = vmatprep.subr.bf16.mxu0 0
        %2463 = vmatpush1.bf16.msra.mxu0 0
        %2464 = vmatprep.subr.bf16.mxu0 0
        %2465 = vmatpush1.bf16.msra.mxu0 0
        %2466 = vmatprep.subr.bf16.mxu0 0
        %2467 = vmatpush1.bf16.msra.mxu0 %v2402
        %2468 = vmatprep.subr.bf16.mxu0 0
        %2469 = vmatpush2.bf16.msra.mxu0 0
        %2470 = vmatprep.subr.bf16.mxu0 0
        %2471 = vmatpush2.bf16.msra.mxu0 0
        %2472 = vmatprep.subr.bf16.mxu0 0
        %2473 = vmatpush2.bf16.msra.mxu0 0
        %2474 = vmatprep.subr.bf16.mxu0 0
        %2475 = vmatpush2.bf16.msra.mxu0 0
        %2476 = vmatprep.subr.bf16.mxu0 0
        %2477 = vmatpush2.bf16.msra.mxu0 0
        %2478 = vmatprep.subr.bf16.mxu0 0
        %2479 = vmatpush2.bf16.msra.mxu0 0
        %2480 = vmatprep.subr.bf16.mxu0 0
        %2481 = vmatpush2.bf16.msra.mxu0 0
        %2482 = vmatprep.subr.bf16.mxu0 0
        %2483 = vmatpush2.bf16.msra.mxu0 0
        %2484 = vmatprep.mubr.bf16.mxu0 0
        %2485 = vmatmul.mubr.bf16.gmra.mxu0 %v2405
        %v2486 = vpop.f32.mrf.mxu0
        %v2487 = vadd.f32 %v2272, %v2486
        %v2488 = vpop.f32.mrf.mxu0
        %v2489 = vpop.f32.mrf.mxu0
        %v2490 = vadd.f32 %v2275, %v2489
        %v2491 = vpop.f32.mrf.mxu0
        %2492 = vmatprep.mubr.bf16.mxu0 0
        %2493 = vmatmul.mubr.bf16.gmra.mxu0 %v2408
        %v2494 = vpop.f32.mrf.mxu0
        %v2495 = vadd.f32 %v2280, %v2494
        %v2496 = vpop.f32.mrf.mxu0
        %v2497 = vpop.f32.mrf.mxu0
        %v2498 = vadd.f32 %v2283, %v2497
        %v2499 = vpop.f32.mrf.mxu0
        %2500 = vmatprep.mubr.bf16.mxu0 0
        %2501 = vmatmul.mubr.bf16.gmra.mxu0 %v2411
        %v2502 = vpop.f32.mrf.mxu0
        %v2503 = vadd.f32 %v2288, %v2502
        %v2504 = vpop.f32.mrf.mxu0
        %v2505 = vpop.f32.mrf.mxu0
        %v2506 = vadd.f32 %v2291, %v2505
        %v2507 = vpop.f32.mrf.mxu0
        %2508 = vmatprep.mubr.bf16.mxu0 0
        %2509 = vmatmul.mubr.bf16.gmra.mxu0 %v2414
        %v2510 = vpop.f32.mrf.mxu0
        %v2511 = vadd.f32 %v2296, %v2510
        %v2512 = vpop.f32.mrf.mxu0
        %v2513 = vpop.f32.mrf.mxu0
        %v2514 = vadd.f32 %v2299, %v2513
        %v2515 = vpop.f32.mrf.mxu0
        %2516 = vmatprep.mubr.bf16.mxu0 0
        %2517 = vmatmul.mubr.bf16.gmra.mxu0 %v2417
        %v2518 = vpop.f32.mrf.mxu0
        %v2519 = vadd.f32 %v2304, %v2518
        %v2520 = vpop.f32.mrf.mxu0
        %v2521 = vpop.f32.mrf.mxu0
        %v2522 = vadd.f32 %v2307, %v2521
        %v2523 = vpop.f32.mrf.mxu0
        %2524 = vmatprep.mubr.bf16.mxu0 0
        %2525 = vmatmul.mubr.bf16.gmra.mxu0 %v2420
        %v2526 = vpop.f32.mrf.mxu0
        %v2527 = vadd.f32 %v2312, %v2526
        %v2528 = vpop.f32.mrf.mxu0
        %v2529 = vpop.f32.mrf.mxu0
        %v2530 = vadd.f32 %v2315, %v2529
        %v2531 = vpop.f32.mrf.mxu0
        %2532 = vmatprep.mubr.bf16.mxu0 0
        %2533 = vmatmul.mubr.bf16.gmra.mxu0 %v2423
        %v2534 = vpop.f32.mrf.mxu0
        %v2535 = vadd.f32 %v2320, %v2534
        %v2536 = vpop.f32.mrf.mxu0
        %v2537 = vpop.f32.mrf.mxu0
        %v2538 = vadd.f32 %v2323, %v2537
        %v2539 = vpop.f32.mrf.mxu0
        %2540 = vmatprep.mubr.bf16.mxu0 0
        %2541 = vmatmul.mubr.bf16.gmra.mxu0 %v2426
        %v2542 = vpop.f32.mrf.mxu0
        %v2543 = vadd.f32 %v2328, %v2542
        %v2544 = vpop.f32.mrf.mxu0
        %v2545 = vpop.f32.mrf.mxu0
        %v2546 = vadd.f32 %v2331, %v2545
        %v2547 = vpop.f32.mrf.mxu0
        %2548 = vmatprep.mubr.bf16.mxu0 0
        %2549 = vmatmul.mubr.bf16.gmra.mxu0 %v2429
        %v2550 = vpop.f32.mrf.mxu0
        %v2551 = vadd.f32 %v2336, %v2550
        %v2552 = vpop.f32.mrf.mxu0
        %v2553 = vpop.f32.mrf.mxu0
        %v2554 = vadd.f32 %v2339, %v2553
        %v2555 = vpop.f32.mrf.mxu0
        %2556 = vmatprep.mubr.bf16.mxu0 0
        %2557 = vmatmul.mubr.bf16.gmra.mxu0 %v2432
        %v2558 = vpop.f32.mrf.mxu0
        %v2559 = vadd.f32 %v2344, %v2558
        %v2560 = vpop.f32.mrf.mxu0
        %v2561 = vpop.f32.mrf.mxu0
        %v2562 = vadd.f32 %v2347, %v2561
        %v2563 = vpop.f32.mrf.mxu0
        %2564 = vmatprep.mubr.bf16.mxu0 0
        %2565 = vmatmul.mubr.bf16.gmra.mxu0 %v2435
        %v2566 = vpop.f32.mrf.mxu0
        %v2567 = vadd.f32 %v2352, %v2566
        %v2568 = vpop.f32.mrf.mxu0
        %v2569 = vpop.f32.mrf.mxu0
        %v2570 = vadd.f32 %v2355, %v2569
        %v2571 = vpop.f32.mrf.mxu0
        %2572 = vmatprep.mubr.bf16.mxu0 0
        %2573 = vmatmul.mubr.bf16.gmra.mxu0 %v2438
        %v2574 = vpop.f32.mrf.mxu0
        %v2575 = vadd.f32 %v2360, %v2574
        %v2576 = vpop.f32.mrf.mxu0
        %v2577 = vpop.f32.mrf.mxu0
        %v2578 = vadd.f32 %v2363, %v2577
        %v2579 = vpop.f32.mrf.mxu0
        %2580 = vmatprep.mubr.bf16.mxu0 0
        %2581 = vmatmul.mubr.bf16.gmra.mxu0 %v2441
        %v2582 = vpop.f32.mrf.mxu0
        %v2583 = vadd.f32 %v2368, %v2582
        %v2584 = vpop.f32.mrf.mxu0
        %v2585 = vpop.f32.mrf.mxu0
        %v2586 = vadd.f32 %v2371, %v2585
        %v2587 = vpop.f32.mrf.mxu0
        %2588 = vmatprep.mubr.bf16.mxu0 0
        %2589 = vmatmul.mubr.bf16.gmra.mxu0 %v2444
        %v2590 = vpop.f32.mrf.mxu0
        %v2591 = vadd.f32 %v2376, %v2590
        %v2592 = vpop.f32.mrf.mxu0
        %v2593 = vpop.f32.mrf.mxu0
        %v2594 = vadd.f32 %v2379, %v2593
        %v2595 = vpop.f32.mrf.mxu0
        %2596 = vmatprep.mubr.bf16.mxu0 0
        %2597 = vmatmul.mubr.bf16.gmra.mxu0 %v2447
        %v2598 = vpop.f32.mrf.mxu0
        %v2599 = vadd.f32 %v2384, %v2598
        %v2600 = vpop.f32.mrf.mxu0
        %v2601 = vpop.f32.mrf.mxu0
        %v2602 = vadd.f32 %v2387, %v2601
        %v2603 = vpop.f32.mrf.mxu0
        %2604 = vmatprep.mubr.bf16.mxu0 0
        %2605 = vmatmul.mubr.bf16.gmra.mxu0 %v2450
        %v2606 = vpop.f32.mrf.mxu0
        %v2607 = vadd.f32 %v2392, %v2606
        %v2608 = vpop.f32.mrf.mxu0
        %v2609 = vpop.f32.mrf.mxu0
        %v2610 = vadd.f32 %v2395, %v2609
        %v2611 = vpop.f32.mrf.mxu0
        %2612 = vdwg.mxu0
        %s2613 = scalar_lea.vmem [#allocation2], 2
        %v2614 = vld [vmem:[%s2613] ss:$2 sm:$0xff]
        %s2615 = scalar_lea.vmem [#allocation2], 50
        %v2616 = vld [vmem:[%s2615] ss:$2 sm:$0xff]
        %s2617 = scalar_lea.vmem [#allocation2], 98
        %v2618 = vld [vmem:[%s2617] ss:$2 sm:$0xff]
        %s2619 = scalar_lea.vmem [#allocation2], 146
        %v2620 = vld [vmem:[%s2619] ss:$2 sm:$0xff]
        %s2621 = scalar_lea.vmem [#allocation2], 194
        %v2622 = vld [vmem:[%s2621] ss:$2 sm:$0xff]
        %s2623 = scalar_lea.vmem [#allocation2], 242
        %v2624 = vld [vmem:[%s2623] ss:$2 sm:$0xff]
        %s2625 = scalar_lea.vmem [#allocation2], 290
        %v2626 = vld [vmem:[%s2625] ss:$2 sm:$0xff]
        %s2627 = scalar_lea.vmem [#allocation2], 338
        %v2628 = vld [vmem:[%s2627] ss:$2 sm:$0xff]
        %s2629 = scalar_lea.vmem [#allocation2], 434
        %v2630 = vld [vmem:[%s2629] ss:$2 sm:$0xff]
        %s2631 = scalar_lea.vmem [#allocation2], 482
        %v2632 = vld [vmem:[%s2631] ss:$2 sm:$0xff]
        %s2633 = scalar_lea.vmem [#allocation2], 530
        %v2634 = vld [vmem:[%s2633] ss:$2 sm:$0xff]
        %s2635 = scalar_lea.vmem [#allocation2], 578
        %v2636 = vld [vmem:[%s2635] ss:$2 sm:$0xff]
        %s2637 = scalar_lea.vmem [#allocation2], 626
        %v2638 = vld [vmem:[%s2637] ss:$2 sm:$0xff]
        %s2639 = scalar_lea.vmem [#allocation2], 674
        %v2640 = vld [vmem:[%s2639] ss:$2 sm:$0xff]
        %s2641 = scalar_lea.vmem [#allocation2], 722
        %v2642 = vld [vmem:[%s2641] ss:$2 sm:$0xff]
        %s2643 = scalar_lea.vmem [#allocation2], 770
        %v2644 = vld [vmem:[%s2643] ss:$2 sm:$0xff]
        %s2645 = scalar_lea.vmem [#allocation2], 866
        %v2646 = vld [vmem:[%s2645] ss:$2 sm:$0xff]
        %s2647 = scalar_lea.vmem [#allocation2], 914
        %v2648 = vld [vmem:[%s2647] ss:$2 sm:$0xff]
        %s2649 = scalar_lea.vmem [#allocation2], 962
        %v2650 = vld [vmem:[%s2649] ss:$2 sm:$0xff]
        %s2651 = scalar_lea.vmem [#allocation2], 1010
        %v2652 = vld [vmem:[%s2651] ss:$2 sm:$0xff]
        %s2653 = scalar_lea.vmem [#allocation2], 1058
        %v2654 = vld [vmem:[%s2653] ss:$2 sm:$0xff]
        %s2655 = scalar_lea.vmem [#allocation2], 1106
        %v2656 = vld [vmem:[%s2655] ss:$2 sm:$0xff]
        %s2657 = scalar_lea.vmem [#allocation2], 1154
        %v2658 = vld [vmem:[%s2657] ss:$2 sm:$0xff]
        %s2659 = scalar_lea.vmem [#allocation2], 1202
        %v2660 = vld [vmem:[%s2659] ss:$2 sm:$0xff]
        %s2661 = scalar_lea.vmem [#allocation2], 1298
        %v2662 = vld [vmem:[%s2661] ss:$2 sm:$0xff]
        %s2663 = scalar_lea.vmem [#allocation2], 1346
        %v2664 = vld [vmem:[%s2663] ss:$2 sm:$0xff]
        %s2665 = scalar_lea.vmem [#allocation2], 1394
        %v2666 = vld [vmem:[%s2665] ss:$2 sm:$0xff]
        %s2667 = scalar_lea.vmem [#allocation2], 1442
        %v2668 = vld [vmem:[%s2667] ss:$2 sm:$0xff]
        %s2669 = scalar_lea.vmem [#allocation2], 1490
        %v2670 = vld [vmem:[%s2669] ss:$2 sm:$0xff]
        %s2671 = scalar_lea.vmem [#allocation2], 1538
        %v2672 = vld [vmem:[%s2671] ss:$2 sm:$0xff]
        %s2673 = scalar_lea.vmem [#allocation2], 1586
        %v2674 = vld [vmem:[%s2673] ss:$2 sm:$0xff]
        %s2675 = scalar_lea.vmem [#allocation2], 1634
        %v2676 = vld [vmem:[%s2675] ss:$2 sm:$0xff]
        %v2677 = vpack.c.bf16 %v2616, %v2614
        %v2678 = vpack.c.bf16 %v2620, %v2618
        %v2679 = vpack.c.bf16 %v2624, %v2622
        %v2680 = vpack.c.bf16 %v2628, %v2626
        %v2681 = vpack.c.bf16 %v2632, %v2630
        %v2682 = vpack.c.bf16 %v2636, %v2634
        %v2683 = vpack.c.bf16 %v2640, %v2638
        %v2684 = vpack.c.bf16 %v2644, %v2642
        %v2685 = vpack.c.bf16 %v2648, %v2646
        %v2686 = vpack.c.bf16 %v2652, %v2650
        %v2687 = vpack.c.bf16 %v2656, %v2654
        %v2688 = vpack.c.bf16 %v2660, %v2658
        %v2689 = vpack.c.bf16 %v2664, %v2662
        %v2690 = vpack.c.bf16 %v2668, %v2666
        %v2691 = vpack.c.bf16 %v2672, %v2670
        %v2692 = vpack.c.bf16 %v2676, %v2674
        %s2693 = scalar_lea.vmem %s2, 16
        %v2694 = vld [vmem:[%s2693] sm:$0xf]
        %v2695 = vld [vmem:[%s2693 + $0x4] sm:$0xf]
        %v2698 = vunpack.c.l.b16 %v2694
        %v2699 = vunpack.c.l.b16 %v2695
        %v2700 = vpack.c.b16 %v2699, %v2698
        %v2703 = vsel %vm1718, %v2677, 0
        %v2706 = vsel %vm1718, %v2678, 0
        %v2709 = vsel %vm1718, %v2679, 0
        %v2712 = vsel %vm1718, %v2680, 0
        %v2715 = vsel %vm1718, %v2681, 0
        %v2718 = vsel %vm1718, %v2682, 0
        %v2721 = vsel %vm1718, %v2683, 0
        %v2724 = vsel %vm1718, %v2684, 0
        %v2727 = vsel %vm1718, %v2685, 0
        %v2730 = vsel %vm1718, %v2686, 0
        %v2733 = vsel %vm1718, %v2687, 0
        %v2736 = vsel %vm1718, %v2688, 0
        %v2739 = vsel %vm1718, %v2689, 0
        %v2742 = vsel %vm1718, %v2690, 0
        %v2745 = vsel %vm1718, %v2691, 0
        %v2748 = vsel %vm1718, %v2692, 0
        %2750 = vmatprep.subr.bf16.mxu0 0
        %2751 = vmatpush1.bf16.msra.mxu0 0
        %2752 = vmatprep.subr.bf16.mxu0 0
        %2753 = vmatpush1.bf16.msra.mxu0 0
        %2754 = vmatprep.subr.bf16.mxu0 0
        %2755 = vmatpush1.bf16.msra.mxu0 0
        %2756 = vmatprep.subr.bf16.mxu0 0
        %2757 = vmatpush1.bf16.msra.mxu0 0
        %2758 = vmatprep.subr.bf16.mxu0 0
        %2759 = vmatpush1.bf16.msra.mxu0 0
        %2760 = vmatprep.subr.bf16.mxu0 0
        %2761 = vmatpush1.bf16.msra.mxu0 0
        %2762 = vmatprep.subr.bf16.mxu0 0
        %2763 = vmatpush1.bf16.msra.mxu0 0
        %2764 = vmatprep.subr.bf16.mxu0 0
        %2765 = vmatpush1.bf16.msra.mxu0 %v2700
        %2766 = vmatprep.subr.bf16.mxu0 0
        %2767 = vmatpush2.bf16.msra.mxu0 0
        %2768 = vmatprep.subr.bf16.mxu0 0
        %2769 = vmatpush2.bf16.msra.mxu0 0
        %2770 = vmatprep.subr.bf16.mxu0 0
        %2771 = vmatpush2.bf16.msra.mxu0 0
        %2772 = vmatprep.subr.bf16.mxu0 0
        %2773 = vmatpush2.bf16.msra.mxu0 0
        %2774 = vmatprep.subr.bf16.mxu0 0
        %2775 = vmatpush2.bf16.msra.mxu0 0
        %2776 = vmatprep.subr.bf16.mxu0 0
        %2777 = vmatpush2.bf16.msra.mxu0 0
        %2778 = vmatprep.subr.bf16.mxu0 0
        %2779 = vmatpush2.bf16.msra.mxu0 0
        %2780 = vmatprep.subr.bf16.mxu0 0
        %2781 = vmatpush2.bf16.msra.mxu0 0
        %2782 = vmatprep.mubr.bf16.mxu0 0
        %2783 = vmatmul.mubr.bf16.gmra.mxu0 %v2703
        %v2784 = vpop.f32.mrf.mxu0
        %v2785 = vadd.f32 0.0, %v2784
        %v2786 = vpop.f32.mrf.mxu0
        %v2787 = vpop.f32.mrf.mxu0
        %v2788 = vadd.f32 0.0, %v2787
        %v2789 = vpop.f32.mrf.mxu0
        %2790 = vmatprep.mubr.bf16.mxu0 0
        %2791 = vmatmul.mubr.bf16.gmra.mxu0 %v2706
        %v2792 = vpop.f32.mrf.mxu0
        %v2793 = vadd.f32 0.0, %v2792
        %v2794 = vpop.f32.mrf.mxu0
        %v2795 = vpop.f32.mrf.mxu0
        %v2796 = vadd.f32 0.0, %v2795
        %v2797 = vpop.f32.mrf.mxu0
        %2798 = vmatprep.mubr.bf16.mxu0 0
        %2799 = vmatmul.mubr.bf16.gmra.mxu0 %v2709
        %v2800 = vpop.f32.mrf.mxu0
        %v2801 = vadd.f32 0.0, %v2800
        %v2802 = vpop.f32.mrf.mxu0
        %v2803 = vpop.f32.mrf.mxu0
        %v2804 = vadd.f32 0.0, %v2803
        %v2805 = vpop.f32.mrf.mxu0
        %2806 = vmatprep.mubr.bf16.mxu0 0
        %2807 = vmatmul.mubr.bf16.gmra.mxu0 %v2712
        %v2808 = vpop.f32.mrf.mxu0
        %v2809 = vadd.f32 0.0, %v2808
        %v2810 = vpop.f32.mrf.mxu0
        %v2811 = vpop.f32.mrf.mxu0
        %v2812 = vadd.f32 0.0, %v2811
        %v2813 = vpop.f32.mrf.mxu0
        %2814 = vmatprep.mubr.bf16.mxu0 0
        %2815 = vmatmul.mubr.bf16.gmra.mxu0 %v2715
        %v2816 = vpop.f32.mrf.mxu0
        %v2817 = vadd.f32 0.0, %v2816
        %v2818 = vpop.f32.mrf.mxu0
        %v2819 = vpop.f32.mrf.mxu0
        %v2820 = vadd.f32 0.0, %v2819
        %v2821 = vpop.f32.mrf.mxu0
        %2822 = vmatprep.mubr.bf16.mxu0 0
        %2823 = vmatmul.mubr.bf16.gmra.mxu0 %v2718
        %v2824 = vpop.f32.mrf.mxu0
        %v2825 = vadd.f32 0.0, %v2824
        %v2826 = vpop.f32.mrf.mxu0
        %v2827 = vpop.f32.mrf.mxu0
        %v2828 = vadd.f32 0.0, %v2827
        %v2829 = vpop.f32.mrf.mxu0
        %2830 = vmatprep.mubr.bf16.mxu0 0
        %2831 = vmatmul.mubr.bf16.gmra.mxu0 %v2721
        %v2832 = vpop.f32.mrf.mxu0
        %v2833 = vadd.f32 0.0, %v2832
        %v2834 = vpop.f32.mrf.mxu0
        %v2835 = vpop.f32.mrf.mxu0
        %v2836 = vadd.f32 0.0, %v2835
        %v2837 = vpop.f32.mrf.mxu0
        %2838 = vmatprep.mubr.bf16.mxu0 0
        %2839 = vmatmul.mubr.bf16.gmra.mxu0 %v2724
        %v2840 = vpop.f32.mrf.mxu0
        %v2841 = vadd.f32 0.0, %v2840
        %v2842 = vpop.f32.mrf.mxu0
        %v2843 = vpop.f32.mrf.mxu0
        %v2844 = vadd.f32 0.0, %v2843
        %v2845 = vpop.f32.mrf.mxu0
        %2846 = vmatprep.mubr.bf16.mxu0 0
        %2847 = vmatmul.mubr.bf16.gmra.mxu0 %v2727
        %v2848 = vpop.f32.mrf.mxu0
        %v2849 = vadd.f32 0.0, %v2848
        %v2850 = vpop.f32.mrf.mxu0
        %v2851 = vpop.f32.mrf.mxu0
        %v2852 = vadd.f32 0.0, %v2851
        %v2853 = vpop.f32.mrf.mxu0
        %2854 = vmatprep.mubr.bf16.mxu0 0
        %2855 = vmatmul.mubr.bf16.gmra.mxu0 %v2730
        %v2856 = vpop.f32.mrf.mxu0
        %v2857 = vadd.f32 0.0, %v2856
        %v2858 = vpop.f32.mrf.mxu0
        %v2859 = vpop.f32.mrf.mxu0
        %v2860 = vadd.f32 0.0, %v2859
        %v2861 = vpop.f32.mrf.mxu0
        %2862 = vmatprep.mubr.bf16.mxu0 0
        %2863 = vmatmul.mubr.bf16.gmra.mxu0 %v2733
        %v2864 = vpop.f32.mrf.mxu0
        %v2865 = vadd.f32 0.0, %v2864
        %v2866 = vpop.f32.mrf.mxu0
        %v2867 = vpop.f32.mrf.mxu0
        %v2868 = vadd.f32 0.0, %v2867
        %v2869 = vpop.f32.mrf.mxu0
        %2870 = vmatprep.mubr.bf16.mxu0 0
        %2871 = vmatmul.mubr.bf16.gmra.mxu0 %v2736
        %v2872 = vpop.f32.mrf.mxu0
        %v2873 = vadd.f32 0.0, %v2872
        %v2874 = vpop.f32.mrf.mxu0
        %v2875 = vpop.f32.mrf.mxu0
        %v2876 = vadd.f32 0.0, %v2875
        %v2877 = vpop.f32.mrf.mxu0
        %2878 = vmatprep.mubr.bf16.mxu0 0
        %2879 = vmatmul.mubr.bf16.gmra.mxu0 %v2739
        %v2880 = vpop.f32.mrf.mxu0
        %v2881 = vadd.f32 0.0, %v2880
        %v2882 = vpop.f32.mrf.mxu0
        %v2883 = vpop.f32.mrf.mxu0
        %v2884 = vadd.f32 0.0, %v2883
        %v2885 = vpop.f32.mrf.mxu0
        %2886 = vmatprep.mubr.bf16.mxu0 0
        %2887 = vmatmul.mubr.bf16.gmra.mxu0 %v2742
        %v2888 = vpop.f32.mrf.mxu0
        %v2889 = vadd.f32 0.0, %v2888
        %v2890 = vpop.f32.mrf.mxu0
        %v2891 = vpop.f32.mrf.mxu0
        %v2892 = vadd.f32 0.0, %v2891
        %v2893 = vpop.f32.mrf.mxu0
        %2894 = vmatprep.mubr.bf16.mxu0 0
        %2895 = vmatmul.mubr.bf16.gmra.mxu0 %v2745
        %v2896 = vpop.f32.mrf.mxu0
        %v2897 = vadd.f32 0.0, %v2896
        %v2898 = vpop.f32.mrf.mxu0
        %v2899 = vpop.f32.mrf.mxu0
        %v2900 = vadd.f32 0.0, %v2899
        %v2901 = vpop.f32.mrf.mxu0
        %2902 = vmatprep.mubr.bf16.mxu0 0
        %2903 = vmatmul.mubr.bf16.gmra.mxu0 %v2748
        %v2904 = vpop.f32.mrf.mxu0
        %v2905 = vadd.f32 0.0, %v2904
        %v2906 = vpop.f32.mrf.mxu0
        %v2907 = vpop.f32.mrf.mxu0
        %v2908 = vadd.f32 0.0, %v2907
        %v2909 = vpop.f32.mrf.mxu0
        %2910 = vdwg.mxu0
        %v2911 = vadd.f32 %v2487, %v2785
        %v2912 = vadd.f32 %v2490, %v2788
        %v2913 = vadd.f32 %v2495, %v2793
        %v2914 = vadd.f32 %v2498, %v2796
        %v2915 = vadd.f32 %v2503, %v2801
        %v2916 = vadd.f32 %v2506, %v2804
        %v2917 = vadd.f32 %v2511, %v2809
        %v2918 = vadd.f32 %v2514, %v2812
        %v2919 = vadd.f32 %v2519, %v2817
        %v2920 = vadd.f32 %v2522, %v2820
        %v2921 = vadd.f32 %v2527, %v2825
        %v2922 = vadd.f32 %v2530, %v2828
        %v2923 = vadd.f32 %v2535, %v2833
        %v2924 = vadd.f32 %v2538, %v2836
        %v2925 = vadd.f32 %v2543, %v2841
        %v2926 = vadd.f32 %v2546, %v2844
        %v2927 = vadd.f32 %v2551, %v2849
        %v2928 = vadd.f32 %v2554, %v2852
        %v2929 = vadd.f32 %v2559, %v2857
        %v2930 = vadd.f32 %v2562, %v2860
        %v2931 = vadd.f32 %v2567, %v2865
        %v2932 = vadd.f32 %v2570, %v2868
        %v2933 = vadd.f32 %v2575, %v2873
        %v2934 = vadd.f32 %v2578, %v2876
        %v2935 = vadd.f32 %v2583, %v2881
        %v2936 = vadd.f32 %v2586, %v2884
        %v2937 = vadd.f32 %v2591, %v2889
        %v2938 = vadd.f32 %v2594, %v2892
        %v2939 = vadd.f32 %v2599, %v2897
        %v2940 = vadd.f32 %v2602, %v2900
        %v2941 = vadd.f32 %v2607, %v2905
        %v2942 = vadd.f32 %v2610, %v2908
        %v2943 = vld [vmem:[%s1890] ss:$2 sm:$0xff]
        %s2944 = scalar_lea.vmem %s1890, 48 [#allocation2]
        %v2945 = vld [vmem:[%s2944] ss:$2 sm:$0xff]
        %s2946 = scalar_lea.vmem %s1890, 96 [#allocation2]
        %v2947 = vld [vmem:[%s2946] ss:$2 sm:$0xff]
        %s2948 = scalar_lea.vmem %s1890, 144 [#allocation2]
        %v2949 = vld [vmem:[%s2948] ss:$2 sm:$0xff]
        %s2950 = scalar_lea.vmem %s1890, 192 [#allocation2]
        %v2951 = vld [vmem:[%s2950] ss:$2 sm:$0xff]
        %s2952 = scalar_lea.vmem %s1890, 240 [#allocation2]
        %v2953 = vld [vmem:[%s2952] ss:$2 sm:$0xff]
        %s2954 = scalar_lea.vmem %s1890, 288 [#allocation2]
        %v2955 = vld [vmem:[%s2954] ss:$2 sm:$0xff]
        %s2956 = scalar_lea.vmem %s1890, 336 [#allocation2]
        %v2957 = vld [vmem:[%s2956] ss:$2 sm:$0xff]
        %s2958 = scalar_lea.vmem %s1890, 432 [#allocation2]
        %v2959 = vld [vmem:[%s2958] ss:$2 sm:$0xff]
        %s2960 = scalar_lea.vmem %s1890, 480 [#allocation2]
        %v2961 = vld [vmem:[%s2960] ss:$2 sm:$0xff]
        %s2962 = scalar_lea.vmem %s1890, 528 [#allocation2]
        %v2963 = vld [vmem:[%s2962] ss:$2 sm:$0xff]
        %s2964 = scalar_lea.vmem %s1890, 576 [#allocation2]
        %v2965 = vld [vmem:[%s2964] ss:$2 sm:$0xff]
        %s2966 = scalar_lea.vmem %s1890, 624 [#allocation2]
        %v2967 = vld [vmem:[%s2966] ss:$2 sm:$0xff]
        %s2968 = scalar_lea.vmem %s1890, 672 [#allocation2]
        %v2969 = vld [vmem:[%s2968] ss:$2 sm:$0xff]
        %s2970 = scalar_lea.vmem %s1890, 720 [#allocation2]
        %v2971 = vld [vmem:[%s2970] ss:$2 sm:$0xff]
        %s2972 = scalar_lea.vmem %s1890, 768 [#allocation2]
        %v2973 = vld [vmem:[%s2972] ss:$2 sm:$0xff]
        %s2974 = scalar_lea.vmem %s1890, 864 [#allocation2]
        %v2975 = vld [vmem:[%s2974] ss:$2 sm:$0xff]
        %s2976 = scalar_lea.vmem %s1890, 912 [#allocation2]
        %v2977 = vld [vmem:[%s2976] ss:$2 sm:$0xff]
        %s2978 = scalar_lea.vmem %s1890, 960 [#allocation2]
        %v2979 = vld [vmem:[%s2978] ss:$2 sm:$0xff]
        %s2980 = scalar_lea.vmem %s1890, 1008 [#allocation2]
        %v2981 = vld [vmem:[%s2980] ss:$2 sm:$0xff]
        %s2982 = scalar_lea.vmem %s1890, 1056 [#allocation2]
        %v2983 = vld [vmem:[%s2982] ss:$2 sm:$0xff]
        %s2984 = scalar_lea.vmem %s1890, 1104 [#allocation2]
        %v2985 = vld [vmem:[%s2984] ss:$2 sm:$0xff]
        %s2986 = scalar_lea.vmem %s1890, 1152 [#allocation2]
        %v2987 = vld [vmem:[%s2986] ss:$2 sm:$0xff]
        %s2988 = scalar_lea.vmem %s1890, 1200 [#allocation2]
        %v2989 = vld [vmem:[%s2988] ss:$2 sm:$0xff]
        %s2990 = scalar_lea.vmem %s1890, 1296 [#allocation2]
        %v2991 = vld [vmem:[%s2990] ss:$2 sm:$0xff]
        %s2992 = scalar_lea.vmem %s1890, 1344 [#allocation2]
        %v2993 = vld [vmem:[%s2992] ss:$2 sm:$0xff]
        %s2994 = scalar_lea.vmem %s1890, 1392 [#allocation2]
        %v2995 = vld [vmem:[%s2994] ss:$2 sm:$0xff]
        %s2996 = scalar_lea.vmem %s1890, 1440 [#allocation2]
        %v2997 = vld [vmem:[%s2996] ss:$2 sm:$0xff]
        %s2998 = scalar_lea.vmem %s1890, 1488 [#allocation2]
        %v2999 = vld [vmem:[%s2998] ss:$2 sm:$0xff]
        %s3000 = scalar_lea.vmem %s1890, 1536 [#allocation2]
        %v3001 = vld [vmem:[%s3000] ss:$2 sm:$0xff]
        %s3002 = scalar_lea.vmem %s1890, 1584 [#allocation2]
        %v3003 = vld [vmem:[%s3002] ss:$2 sm:$0xff]
        %s3004 = scalar_lea.vmem %s1890, 1632 [#allocation2]
        %v3005 = vld [vmem:[%s3004] ss:$2 sm:$0xff]
        %v3006 = vpack.c.bf16 %v2945, %v2943
        %v3007 = vpack.c.bf16 %v2949, %v2947
        %v3008 = vpack.c.bf16 %v2953, %v2951
        %v3009 = vpack.c.bf16 %v2957, %v2955
        %v3010 = vpack.c.bf16 %v2961, %v2959
        %v3011 = vpack.c.bf16 %v2965, %v2963
        %v3012 = vpack.c.bf16 %v2969, %v2967
        %v3013 = vpack.c.bf16 %v2973, %v2971
        %v3014 = vpack.c.bf16 %v2977, %v2975
        %v3015 = vpack.c.bf16 %v2981, %v2979
        %v3016 = vpack.c.bf16 %v2985, %v2983
        %v3017 = vpack.c.bf16 %v2989, %v2987
        %v3018 = vpack.c.bf16 %v2993, %v2991
        %v3019 = vpack.c.bf16 %v2997, %v2995
        %v3020 = vpack.c.bf16 %v3001, %v2999
        %v3021 = vpack.c.bf16 %v3005, %v3003
        %s3022 = scalar_lea.vmem %s2, 24
        %v3023 = vld [vmem:[%s3022] sm:$0xf]
        %v3024 = vld [vmem:[%s3022 + $0x4] sm:$0xf]
        %v3027 = vunpack.c.l.b16 %v3023
        %v3028 = vunpack.c.l.b16 %v3024
        %v3029 = vpack.c.b16 %v3028, %v3027
        %v3032 = vsel %vm1718, %v3006, 0
        %v3035 = vsel %vm1718, %v3007, 0
        %v3038 = vsel %vm1718, %v3008, 0
        %v3041 = vsel %vm1718, %v3009, 0
        %v3044 = vsel %vm1718, %v3010, 0
        %v3047 = vsel %vm1718, %v3011, 0
        %v3050 = vsel %vm1718, %v3012, 0
        %v3053 = vsel %vm1718, %v3013, 0
        %v3056 = vsel %vm1718, %v3014, 0
        %v3059 = vsel %vm1718, %v3015, 0
        %v3062 = vsel %vm1718, %v3016, 0
        %v3065 = vsel %vm1718, %v3017, 0
        %v3068 = vsel %vm1718, %v3018, 0
        %v3071 = vsel %vm1718, %v3019, 0
        %v3074 = vsel %vm1718, %v3020, 0
        %v3077 = vsel %vm1718, %v3021, 0
        %3079 = vmatprep.subr.bf16.mxu0 0
        %3080 = vmatpush1.bf16.msra.mxu0 0
        %3081 = vmatprep.subr.bf16.mxu0 0
        %3082 = vmatpush1.bf16.msra.mxu0 0
        %3083 = vmatprep.subr.bf16.mxu0 0
        %3084 = vmatpush1.bf16.msra.mxu0 0
        %3085 = vmatprep.subr.bf16.mxu0 0
        %3086 = vmatpush1.bf16.msra.mxu0 0
        %3087 = vmatprep.subr.bf16.mxu0 0
        %3088 = vmatpush1.bf16.msra.mxu0 0
        %3089 = vmatprep.subr.bf16.mxu0 0
        %3090 = vmatpush1.bf16.msra.mxu0 0
        %3091 = vmatprep.subr.bf16.mxu0 0
        %3092 = vmatpush1.bf16.msra.mxu0 0
        %3093 = vmatprep.subr.bf16.mxu0 0
        %3094 = vmatpush1.bf16.msra.mxu0 %v3029
        %3095 = vmatprep.subr.bf16.mxu0 0
        %3096 = vmatpush2.bf16.msra.mxu0 0
        %3097 = vmatprep.subr.bf16.mxu0 0
        %3098 = vmatpush2.bf16.msra.mxu0 0
        %3099 = vmatprep.subr.bf16.mxu0 0
        %3100 = vmatpush2.bf16.msra.mxu0 0
        %3101 = vmatprep.subr.bf16.mxu0 0
        %3102 = vmatpush2.bf16.msra.mxu0 0
        %3103 = vmatprep.subr.bf16.mxu0 0
        %3104 = vmatpush2.bf16.msra.mxu0 0
        %3105 = vmatprep.subr.bf16.mxu0 0
        %3106 = vmatpush2.bf16.msra.mxu0 0
        %3107 = vmatprep.subr.bf16.mxu0 0
        %3108 = vmatpush2.bf16.msra.mxu0 0
        %3109 = vmatprep.subr.bf16.mxu0 0
        %3110 = vmatpush2.bf16.msra.mxu0 0
        %3111 = vmatprep.mubr.bf16.mxu0 0
        %3112 = vmatmul.mubr.bf16.gmra.mxu0 %v3032
        %v3113 = vpop.f32.mrf.mxu0
        %v3114 = vadd.f32 0.0, %v3113
        %v3115 = vpop.f32.mrf.mxu0
        %v3116 = vpop.f32.mrf.mxu0
        %v3117 = vadd.f32 0.0, %v3116
        %v3118 = vpop.f32.mrf.mxu0
        %3119 = vmatprep.mubr.bf16.mxu0 0
        %3120 = vmatmul.mubr.bf16.gmra.mxu0 %v3035
        %v3121 = vpop.f32.mrf.mxu0
        %v3122 = vadd.f32 0.0, %v3121
        %v3123 = vpop.f32.mrf.mxu0
        %v3124 = vpop.f32.mrf.mxu0
        %v3125 = vadd.f32 0.0, %v3124
        %v3126 = vpop.f32.mrf.mxu0
        %3127 = vmatprep.mubr.bf16.mxu0 0
        %3128 = vmatmul.mubr.bf16.gmra.mxu0 %v3038
        %v3129 = vpop.f32.mrf.mxu0
        %v3130 = vadd.f32 0.0, %v3129
        %v3131 = vpop.f32.mrf.mxu0
        %v3132 = vpop.f32.mrf.mxu0
        %v3133 = vadd.f32 0.0, %v3132
        %v3134 = vpop.f32.mrf.mxu0
        %3135 = vmatprep.mubr.bf16.mxu0 0
        %3136 = vmatmul.mubr.bf16.gmra.mxu0 %v3041
        %v3137 = vpop.f32.mrf.mxu0
        %v3138 = vadd.f32 0.0, %v3137
        %v3139 = vpop.f32.mrf.mxu0
        %v3140 = vpop.f32.mrf.mxu0
        %v3141 = vadd.f32 0.0, %v3140
        %v3142 = vpop.f32.mrf.mxu0
        %3143 = vmatprep.mubr.bf16.mxu0 0
        %3144 = vmatmul.mubr.bf16.gmra.mxu0 %v3044
        %v3145 = vpop.f32.mrf.mxu0
        %v3146 = vadd.f32 0.0, %v3145
        %v3147 = vpop.f32.mrf.mxu0
        %v3148 = vpop.f32.mrf.mxu0
        %v3149 = vadd.f32 0.0, %v3148
        %v3150 = vpop.f32.mrf.mxu0
        %3151 = vmatprep.mubr.bf16.mxu0 0
        %3152 = vmatmul.mubr.bf16.gmra.mxu0 %v3047
        %v3153 = vpop.f32.mrf.mxu0
        %v3154 = vadd.f32 0.0, %v3153
        %v3155 = vpop.f32.mrf.mxu0
        %v3156 = vpop.f32.mrf.mxu0
        %v3157 = vadd.f32 0.0, %v3156
        %v3158 = vpop.f32.mrf.mxu0
        %3159 = vmatprep.mubr.bf16.mxu0 0
        %3160 = vmatmul.mubr.bf16.gmra.mxu0 %v3050
        %v3161 = vpop.f32.mrf.mxu0
        %v3162 = vadd.f32 0.0, %v3161
        %v3163 = vpop.f32.mrf.mxu0
        %v3164 = vpop.f32.mrf.mxu0
        %v3165 = vadd.f32 0.0, %v3164
        %v3166 = vpop.f32.mrf.mxu0
        %3167 = vmatprep.mubr.bf16.mxu0 0
        %3168 = vmatmul.mubr.bf16.gmra.mxu0 %v3053
        %v3169 = vpop.f32.mrf.mxu0
        %v3170 = vadd.f32 0.0, %v3169
        %v3171 = vpop.f32.mrf.mxu0
        %v3172 = vpop.f32.mrf.mxu0
        %v3173 = vadd.f32 0.0, %v3172
        %v3174 = vpop.f32.mrf.mxu0
        %3175 = vmatprep.mubr.bf16.mxu0 0
        %3176 = vmatmul.mubr.bf16.gmra.mxu0 %v3056
        %v3177 = vpop.f32.mrf.mxu0
        %v3178 = vadd.f32 0.0, %v3177
        %v3179 = vpop.f32.mrf.mxu0
        %v3180 = vpop.f32.mrf.mxu0
        %v3181 = vadd.f32 0.0, %v3180
        %v3182 = vpop.f32.mrf.mxu0
        %3183 = vmatprep.mubr.bf16.mxu0 0
        %3184 = vmatmul.mubr.bf16.gmra.mxu0 %v3059
        %v3185 = vpop.f32.mrf.mxu0
        %v3186 = vadd.f32 0.0, %v3185
        %v3187 = vpop.f32.mrf.mxu0
        %v3188 = vpop.f32.mrf.mxu0
        %v3189 = vadd.f32 0.0, %v3188
        %v3190 = vpop.f32.mrf.mxu0
        %3191 = vmatprep.mubr.bf16.mxu0 0
        %3192 = vmatmul.mubr.bf16.gmra.mxu0 %v3062
        %v3193 = vpop.f32.mrf.mxu0
        %v3194 = vadd.f32 0.0, %v3193
        %v3195 = vpop.f32.mrf.mxu0
        %v3196 = vpop.f32.mrf.mxu0
        %v3197 = vadd.f32 0.0, %v3196
        %v3198 = vpop.f32.mrf.mxu0
        %3199 = vmatprep.mubr.bf16.mxu0 0
        %3200 = vmatmul.mubr.bf16.gmra.mxu0 %v3065
        %v3201 = vpop.f32.mrf.mxu0
        %v3202 = vadd.f32 0.0, %v3201
        %v3203 = vpop.f32.mrf.mxu0
        %v3204 = vpop.f32.mrf.mxu0
        %v3205 = vadd.f32 0.0, %v3204
        %v3206 = vpop.f32.mrf.mxu0
        %3207 = vmatprep.mubr.bf16.mxu0 0
        %3208 = vmatmul.mubr.bf16.gmra.mxu0 %v3068
        %v3209 = vpop.f32.mrf.mxu0
        %v3210 = vadd.f32 0.0, %v3209
        %v3211 = vpop.f32.mrf.mxu0
        %v3212 = vpop.f32.mrf.mxu0
        %v3213 = vadd.f32 0.0, %v3212
        %v3214 = vpop.f32.mrf.mxu0
        %3215 = vmatprep.mubr.bf16.mxu0 0
        %3216 = vmatmul.mubr.bf16.gmra.mxu0 %v3071
        %v3217 = vpop.f32.mrf.mxu0
        %v3218 = vadd.f32 0.0, %v3217
        %v3219 = vpop.f32.mrf.mxu0
        %v3220 = vpop.f32.mrf.mxu0
        %v3221 = vadd.f32 0.0, %v3220
        %v3222 = vpop.f32.mrf.mxu0
        %3223 = vmatprep.mubr.bf16.mxu0 0
        %3224 = vmatmul.mubr.bf16.gmra.mxu0 %v3074
        %v3225 = vpop.f32.mrf.mxu0
        %v3226 = vadd.f32 0.0, %v3225
        %v3227 = vpop.f32.mrf.mxu0
        %v3228 = vpop.f32.mrf.mxu0
        %v3229 = vadd.f32 0.0, %v3228
        %v3230 = vpop.f32.mrf.mxu0
        %3231 = vmatprep.mubr.bf16.mxu0 0
        %3232 = vmatmul.mubr.bf16.gmra.mxu0 %v3077
        %v3233 = vpop.f32.mrf.mxu0
        %v3234 = vadd.f32 0.0, %v3233
        %v3235 = vpop.f32.mrf.mxu0
        %v3236 = vpop.f32.mrf.mxu0
        %v3237 = vadd.f32 0.0, %v3236
        %v3238 = vpop.f32.mrf.mxu0
        %3239 = vdwg.mxu0
        %v3240 = vadd.f32 %v2911, %v3114
        %v3241 = vadd.f32 %v2912, %v3117
        %v3242 = vadd.f32 %v2913, %v3122
        %v3243 = vadd.f32 %v2914, %v3125
        %v3244 = vadd.f32 %v2915, %v3130
        %v3245 = vadd.f32 %v2916, %v3133
        %v3246 = vadd.f32 %v2917, %v3138
        %v3247 = vadd.f32 %v2918, %v3141
        %v3248 = vadd.f32 %v2919, %v3146
        %v3249 = vadd.f32 %v2920, %v3149
        %v3250 = vadd.f32 %v2921, %v3154
        %v3251 = vadd.f32 %v2922, %v3157
        %v3252 = vadd.f32 %v2923, %v3162
        %v3253 = vadd.f32 %v2924, %v3165
        %v3254 = vadd.f32 %v2925, %v3170
        %v3255 = vadd.f32 %v2926, %v3173
        %v3256 = vadd.f32 %v2927, %v3178
        %v3257 = vadd.f32 %v2928, %v3181
        %v3258 = vadd.f32 %v2929, %v3186
        %v3259 = vadd.f32 %v2930, %v3189
        %v3260 = vadd.f32 %v2931, %v3194
        %v3261 = vadd.f32 %v2932, %v3197
        %v3262 = vadd.f32 %v2933, %v3202
        %v3263 = vadd.f32 %v2934, %v3205
        %v3264 = vadd.f32 %v2935, %v3210
        %v3265 = vadd.f32 %v2936, %v3213
        %v3266 = vadd.f32 %v2937, %v3218
        %v3267 = vadd.f32 %v2938, %v3221
        %v3268 = vadd.f32 %v2939, %v3226
        %v3269 = vadd.f32 %v2940, %v3229
        %v3270 = vadd.f32 %v2941, %v3234
        %v3271 = vadd.f32 %v2942, %v3237
        %s3272 = scalar_lea.vmem %s1890, 1 [#allocation2]
        %v3273 = vld [vmem:[%s3272] ss:$2 sm:$0xff]
        %s3274 = scalar_lea.vmem %s1890, 49 [#allocation2]
        %v3275 = vld [vmem:[%s3274] ss:$2 sm:$0xff]
        %s3276 = scalar_lea.vmem %s1890, 97 [#allocation2]
        %v3277 = vld [vmem:[%s3276] ss:$2 sm:$0xff]
        %s3278 = scalar_lea.vmem %s1890, 145 [#allocation2]
        %v3279 = vld [vmem:[%s3278] ss:$2 sm:$0xff]
        %s3280 = scalar_lea.vmem %s1890, 193 [#allocation2]
        %v3281 = vld [vmem:[%s3280] ss:$2 sm:$0xff]
        %s3282 = scalar_lea.vmem %s1890, 241 [#allocation2]
        %v3283 = vld [vmem:[%s3282] ss:$2 sm:$0xff]
        %s3284 = scalar_lea.vmem %s1890, 289 [#allocation2]
        %v3285 = vld [vmem:[%s3284] ss:$2 sm:$0xff]
        %s3286 = scalar_lea.vmem %s1890, 337 [#allocation2]
        %v3287 = vld [vmem:[%s3286] ss:$2 sm:$0xff]
        %s3288 = scalar_lea.vmem %s1890, 433 [#allocation2]
        %v3289 = vld [vmem:[%s3288] ss:$2 sm:$0xff]
        %s3290 = scalar_lea.vmem %s1890, 481 [#allocation2]
        %v3291 = vld [vmem:[%s3290] ss:$2 sm:$0xff]
        %s3292 = scalar_lea.vmem %s1890, 529 [#allocation2]
        %v3293 = vld [vmem:[%s3292] ss:$2 sm:$0xff]
        %s3294 = scalar_lea.vmem %s1890, 577 [#allocation2]
        %v3295 = vld [vmem:[%s3294] ss:$2 sm:$0xff]
        %s3296 = scalar_lea.vmem %s1890, 625 [#allocation2]
        %v3297 = vld [vmem:[%s3296] ss:$2 sm:$0xff]
        %s3298 = scalar_lea.vmem %s1890, 673 [#allocation2]
        %v3299 = vld [vmem:[%s3298] ss:$2 sm:$0xff]
        %s3300 = scalar_lea.vmem %s1890, 721 [#allocation2]
        %v3301 = vld [vmem:[%s3300] ss:$2 sm:$0xff]
        %s3302 = scalar_lea.vmem %s1890, 769 [#allocation2]
        %v3303 = vld [vmem:[%s3302] ss:$2 sm:$0xff]
        %s3304 = scalar_lea.vmem %s1890, 865 [#allocation2]
        %v3305 = vld [vmem:[%s3304] ss:$2 sm:$0xff]
        %s3306 = scalar_lea.vmem %s1890, 913 [#allocation2]
        %v3307 = vld [vmem:[%s3306] ss:$2 sm:$0xff]
        %s3308 = scalar_lea.vmem %s1890, 961 [#allocation2]
        %v3309 = vld [vmem:[%s3308] ss:$2 sm:$0xff]
        %s3310 = scalar_lea.vmem %s1890, 1009 [#allocation2]
        %v3311 = vld [vmem:[%s3310] ss:$2 sm:$0xff]
        %s3312 = scalar_lea.vmem %s1890, 1057 [#allocation2]
        %v3313 = vld [vmem:[%s3312] ss:$2 sm:$0xff]
        %s3314 = scalar_lea.vmem %s1890, 1105 [#allocation2]
        %v3315 = vld [vmem:[%s3314] ss:$2 sm:$0xff]
        %s3316 = scalar_lea.vmem %s1890, 1153 [#allocation2]
        %v3317 = vld [vmem:[%s3316] ss:$2 sm:$0xff]
        %s3318 = scalar_lea.vmem %s1890, 1201 [#allocation2]
        %v3319 = vld [vmem:[%s3318] ss:$2 sm:$0xff]
        %s3320 = scalar_lea.vmem %s1890, 1297 [#allocation2]
        %v3321 = vld [vmem:[%s3320] ss:$2 sm:$0xff]
        %s3322 = scalar_lea.vmem %s1890, 1345 [#allocation2]
        %v3323 = vld [vmem:[%s3322] ss:$2 sm:$0xff]
        %s3324 = scalar_lea.vmem %s1890, 1393 [#allocation2]
        %v3325 = vld [vmem:[%s3324] ss:$2 sm:$0xff]
        %s3326 = scalar_lea.vmem %s1890, 1441 [#allocation2]
        %v3327 = vld [vmem:[%s3326] ss:$2 sm:$0xff]
        %s3328 = scalar_lea.vmem %s1890, 1489 [#allocation2]
        %v3329 = vld [vmem:[%s3328] ss:$2 sm:$0xff]
        %s3330 = scalar_lea.vmem %s1890, 1537 [#allocation2]
        %v3331 = vld [vmem:[%s3330] ss:$2 sm:$0xff]
        %s3332 = scalar_lea.vmem %s1890, 1585 [#allocation2]
        %v3333 = vld [vmem:[%s3332] ss:$2 sm:$0xff]
        %s3334 = scalar_lea.vmem %s1890, 1633 [#allocation2]
        %v3335 = vld [vmem:[%s3334] ss:$2 sm:$0xff]
        %v3336 = vpack.c.bf16 %v3275, %v3273
        %v3337 = vpack.c.bf16 %v3279, %v3277
        %v3338 = vpack.c.bf16 %v3283, %v3281
        %v3339 = vpack.c.bf16 %v3287, %v3285
        %v3340 = vpack.c.bf16 %v3291, %v3289
        %v3341 = vpack.c.bf16 %v3295, %v3293
        %v3342 = vpack.c.bf16 %v3299, %v3297
        %v3343 = vpack.c.bf16 %v3303, %v3301
        %v3344 = vpack.c.bf16 %v3307, %v3305
        %v3345 = vpack.c.bf16 %v3311, %v3309
        %v3346 = vpack.c.bf16 %v3315, %v3313
        %v3347 = vpack.c.bf16 %v3319, %v3317
        %v3348 = vpack.c.bf16 %v3323, %v3321
        %v3349 = vpack.c.bf16 %v3327, %v3325
        %v3350 = vpack.c.bf16 %v3331, %v3329
        %v3351 = vpack.c.bf16 %v3335, %v3333
        %s3352 = scalar_lea.vmem %s2, 32
        %v3353 = vld [vmem:[%s3352] sm:$0xf]
        %v3354 = vld [vmem:[%s3352 + $0x4] sm:$0xf]
        %v3357 = vunpack.c.l.b16 %v3353
        %v3358 = vunpack.c.l.b16 %v3354
        %v3359 = vpack.c.b16 %v3358, %v3357
        %v3362 = vsel %vm1718, %v3336, 0
        %v3365 = vsel %vm1718, %v3337, 0
        %v3368 = vsel %vm1718, %v3338, 0
        %v3371 = vsel %vm1718, %v3339, 0
        %v3374 = vsel %vm1718, %v3340, 0
        %v3377 = vsel %vm1718, %v3341, 0
        %v3380 = vsel %vm1718, %v3342, 0
        %v3383 = vsel %vm1718, %v3343, 0
        %v3386 = vsel %vm1718, %v3344, 0
        %v3389 = vsel %vm1718, %v3345, 0
        %v3392 = vsel %vm1718, %v3346, 0
        %v3395 = vsel %vm1718, %v3347, 0
        %v3398 = vsel %vm1718, %v3348, 0
        %v3401 = vsel %vm1718, %v3349, 0
        %v3404 = vsel %vm1718, %v3350, 0
        %v3407 = vsel %vm1718, %v3351, 0
        %3409 = vmatprep.subr.bf16.mxu0 0
        %3410 = vmatpush1.bf16.msra.mxu0 0
        %3411 = vmatprep.subr.bf16.mxu0 0
        %3412 = vmatpush1.bf16.msra.mxu0 0
        %3413 = vmatprep.subr.bf16.mxu0 0
        %3414 = vmatpush1.bf16.msra.mxu0 0
        %3415 = vmatprep.subr.bf16.mxu0 0
        %3416 = vmatpush1.bf16.msra.mxu0 0
        %3417 = vmatprep.subr.bf16.mxu0 0
        %3418 = vmatpush1.bf16.msra.mxu0 0
        %3419 = vmatprep.subr.bf16.mxu0 0
        %3420 = vmatpush1.bf16.msra.mxu0 0
        %3421 = vmatprep.subr.bf16.mxu0 0
        %3422 = vmatpush1.bf16.msra.mxu0 0
        %3423 = vmatprep.subr.bf16.mxu0 0
        %3424 = vmatpush1.bf16.msra.mxu0 %v3359
        %3425 = vmatprep.subr.bf16.mxu0 0
        %3426 = vmatpush2.bf16.msra.mxu0 0
        %3427 = vmatprep.subr.bf16.mxu0 0
        %3428 = vmatpush2.bf16.msra.mxu0 0
        %3429 = vmatprep.subr.bf16.mxu0 0
        %3430 = vmatpush2.bf16.msra.mxu0 0
        %3431 = vmatprep.subr.bf16.mxu0 0
        %3432 = vmatpush2.bf16.msra.mxu0 0
        %3433 = vmatprep.subr.bf16.mxu0 0
        %3434 = vmatpush2.bf16.msra.mxu0 0
        %3435 = vmatprep.subr.bf16.mxu0 0
        %3436 = vmatpush2.bf16.msra.mxu0 0
        %3437 = vmatprep.subr.bf16.mxu0 0
        %3438 = vmatpush2.bf16.msra.mxu0 0
        %3439 = vmatprep.subr.bf16.mxu0 0
        %3440 = vmatpush2.bf16.msra.mxu0 0
        %3441 = vmatprep.mubr.bf16.mxu0 0
        %3442 = vmatmul.mubr.bf16.gmra.mxu0 %v3362
        %v3443 = vpop.f32.mrf.mxu0
        %v3444 = vadd.f32 0.0, %v3443
        %v3445 = vpop.f32.mrf.mxu0
        %v3446 = vpop.f32.mrf.mxu0
        %v3447 = vadd.f32 0.0, %v3446
        %v3448 = vpop.f32.mrf.mxu0
        %3449 = vmatprep.mubr.bf16.mxu0 0
        %3450 = vmatmul.mubr.bf16.gmra.mxu0 %v3365
        %v3451 = vpop.f32.mrf.mxu0
        %v3452 = vadd.f32 0.0, %v3451
        %v3453 = vpop.f32.mrf.mxu0
        %v3454 = vpop.f32.mrf.mxu0
        %v3455 = vadd.f32 0.0, %v3454
        %v3456 = vpop.f32.mrf.mxu0
        %3457 = vmatprep.mubr.bf16.mxu0 0
        %3458 = vmatmul.mubr.bf16.gmra.mxu0 %v3368
        %v3459 = vpop.f32.mrf.mxu0
        %v3460 = vadd.f32 0.0, %v3459
        %v3461 = vpop.f32.mrf.mxu0
        %v3462 = vpop.f32.mrf.mxu0
        %v3463 = vadd.f32 0.0, %v3462
        %v3464 = vpop.f32.mrf.mxu0
        %3465 = vmatprep.mubr.bf16.mxu0 0
        %3466 = vmatmul.mubr.bf16.gmra.mxu0 %v3371
        %v3467 = vpop.f32.mrf.mxu0
        %v3468 = vadd.f32 0.0, %v3467
        %v3469 = vpop.f32.mrf.mxu0
        %v3470 = vpop.f32.mrf.mxu0
        %v3471 = vadd.f32 0.0, %v3470
        %v3472 = vpop.f32.mrf.mxu0
        %3473 = vmatprep.mubr.bf16.mxu0 0
        %3474 = vmatmul.mubr.bf16.gmra.mxu0 %v3374
        %v3475 = vpop.f32.mrf.mxu0
        %v3476 = vadd.f32 0.0, %v3475
        %v3477 = vpop.f32.mrf.mxu0
        %v3478 = vpop.f32.mrf.mxu0
        %v3479 = vadd.f32 0.0, %v3478
        %v3480 = vpop.f32.mrf.mxu0
        %3481 = vmatprep.mubr.bf16.mxu0 0
        %3482 = vmatmul.mubr.bf16.gmra.mxu0 %v3377
        %v3483 = vpop.f32.mrf.mxu0
        %v3484 = vadd.f32 0.0, %v3483
        %v3485 = vpop.f32.mrf.mxu0
        %v3486 = vpop.f32.mrf.mxu0
        %v3487 = vadd.f32 0.0, %v3486
        %v3488 = vpop.f32.mrf.mxu0
        %3489 = vmatprep.mubr.bf16.mxu0 0
        %3490 = vmatmul.mubr.bf16.gmra.mxu0 %v3380
        %v3491 = vpop.f32.mrf.mxu0
        %v3492 = vadd.f32 0.0, %v3491
        %v3493 = vpop.f32.mrf.mxu0
        %v3494 = vpop.f32.mrf.mxu0
        %v3495 = vadd.f32 0.0, %v3494
        %v3496 = vpop.f32.mrf.mxu0
        %3497 = vmatprep.mubr.bf16.mxu0 0
        %3498 = vmatmul.mubr.bf16.gmra.mxu0 %v3383
        %v3499 = vpop.f32.mrf.mxu0
        %v3500 = vadd.f32 0.0, %v3499
        %v3501 = vpop.f32.mrf.mxu0
        %v3502 = vpop.f32.mrf.mxu0
        %v3503 = vadd.f32 0.0, %v3502
        %v3504 = vpop.f32.mrf.mxu0
        %3505 = vmatprep.mubr.bf16.mxu0 0
        %3506 = vmatmul.mubr.bf16.gmra.mxu0 %v3386
        %v3507 = vpop.f32.mrf.mxu0
        %v3508 = vadd.f32 0.0, %v3507
        %v3509 = vpop.f32.mrf.mxu0
        %v3510 = vpop.f32.mrf.mxu0
        %v3511 = vadd.f32 0.0, %v3510
        %v3512 = vpop.f32.mrf.mxu0
        %3513 = vmatprep.mubr.bf16.mxu0 0
        %3514 = vmatmul.mubr.bf16.gmra.mxu0 %v3389
        %v3515 = vpop.f32.mrf.mxu0
        %v3516 = vadd.f32 0.0, %v3515
        %v3517 = vpop.f32.mrf.mxu0
        %v3518 = vpop.f32.mrf.mxu0
        %v3519 = vadd.f32 0.0, %v3518
        %v3520 = vpop.f32.mrf.mxu0
        %3521 = vmatprep.mubr.bf16.mxu0 0
        %3522 = vmatmul.mubr.bf16.gmra.mxu0 %v3392
        %v3523 = vpop.f32.mrf.mxu0
        %v3524 = vadd.f32 0.0, %v3523
        %v3525 = vpop.f32.mrf.mxu0
        %v3526 = vpop.f32.mrf.mxu0
        %v3527 = vadd.f32 0.0, %v3526
        %v3528 = vpop.f32.mrf.mxu0
        %3529 = vmatprep.mubr.bf16.mxu0 0
        %3530 = vmatmul.mubr.bf16.gmra.mxu0 %v3395
        %v3531 = vpop.f32.mrf.mxu0
        %v3532 = vadd.f32 0.0, %v3531
        %v3533 = vpop.f32.mrf.mxu0
        %v3534 = vpop.f32.mrf.mxu0
        %v3535 = vadd.f32 0.0, %v3534
        %v3536 = vpop.f32.mrf.mxu0
        %3537 = vmatprep.mubr.bf16.mxu0 0
        %3538 = vmatmul.mubr.bf16.gmra.mxu0 %v3398
        %v3539 = vpop.f32.mrf.mxu0
        %v3540 = vadd.f32 0.0, %v3539
        %v3541 = vpop.f32.mrf.mxu0
        %v3542 = vpop.f32.mrf.mxu0
        %v3543 = vadd.f32 0.0, %v3542
        %v3544 = vpop.f32.mrf.mxu0
        %3545 = vmatprep.mubr.bf16.mxu0 0
        %3546 = vmatmul.mubr.bf16.gmra.mxu0 %v3401
        %v3547 = vpop.f32.mrf.mxu0
        %v3548 = vadd.f32 0.0, %v3547
        %v3549 = vpop.f32.mrf.mxu0
        %v3550 = vpop.f32.mrf.mxu0
        %v3551 = vadd.f32 0.0, %v3550
        %v3552 = vpop.f32.mrf.mxu0
        %3553 = vmatprep.mubr.bf16.mxu0 0
        %3554 = vmatmul.mubr.bf16.gmra.mxu0 %v3404
        %v3555 = vpop.f32.mrf.mxu0
        %v3556 = vadd.f32 0.0, %v3555
        %v3557 = vpop.f32.mrf.mxu0
        %v3558 = vpop.f32.mrf.mxu0
        %v3559 = vadd.f32 0.0, %v3558
        %v3560 = vpop.f32.mrf.mxu0
        %3561 = vmatprep.mubr.bf16.mxu0 0
        %3562 = vmatmul.mubr.bf16.gmra.mxu0 %v3407
        %v3563 = vpop.f32.mrf.mxu0
        %v3564 = vadd.f32 0.0, %v3563
        %v3565 = vpop.f32.mrf.mxu0
        %v3566 = vpop.f32.mrf.mxu0
        %v3567 = vadd.f32 0.0, %v3566
        %v3568 = vpop.f32.mrf.mxu0
        %3569 = vdwg.mxu0
        %v3570 = vadd.f32 %v3240, %v3444
        %v3571 = vadd.f32 %v3241, %v3447
        %v3572 = vadd.f32 %v3242, %v3452
        %v3573 = vadd.f32 %v3243, %v3455
        %v3574 = vadd.f32 %v3244, %v3460
        %v3575 = vadd.f32 %v3245, %v3463
        %v3576 = vadd.f32 %v3246, %v3468
        %v3577 = vadd.f32 %v3247, %v3471
        %v3578 = vadd.f32 %v3248, %v3476
        %v3579 = vadd.f32 %v3249, %v3479
        %v3580 = vadd.f32 %v3250, %v3484
        %v3581 = vadd.f32 %v3251, %v3487
        %v3582 = vadd.f32 %v3252, %v3492
        %v3583 = vadd.f32 %v3253, %v3495
        %v3584 = vadd.f32 %v3254, %v3500
        %v3585 = vadd.f32 %v3255, %v3503
        %v3586 = vadd.f32 %v3256, %v3508
        %v3587 = vadd.f32 %v3257, %v3511
        %v3588 = vadd.f32 %v3258, %v3516
        %v3589 = vadd.f32 %v3259, %v3519
        %v3590 = vadd.f32 %v3260, %v3524
        %v3591 = vadd.f32 %v3261, %v3527
        %v3592 = vadd.f32 %v3262, %v3532
        %v3593 = vadd.f32 %v3263, %v3535
        %v3594 = vadd.f32 %v3264, %v3540
        %v3595 = vadd.f32 %v3265, %v3543
        %v3596 = vadd.f32 %v3266, %v3548
        %v3597 = vadd.f32 %v3267, %v3551
        %v3598 = vadd.f32 %v3268, %v3556
        %v3599 = vadd.f32 %v3269, %v3559
        %v3600 = vadd.f32 %v3270, %v3564
        %v3601 = vadd.f32 %v3271, %v3567
        %s3602 = scalar_lea.vmem %s1890, 2 [#allocation2]
        %v3603 = vld [vmem:[%s3602] ss:$2 sm:$0xff]
        %s3604 = scalar_lea.vmem %s1890, 50 [#allocation2]
        %v3605 = vld [vmem:[%s3604] ss:$2 sm:$0xff]
        %s3606 = scalar_lea.vmem %s1890, 98 [#allocation2]
        %v3607 = vld [vmem:[%s3606] ss:$2 sm:$0xff]
        %s3608 = scalar_lea.vmem %s1890, 146 [#allocation2]
        %v3609 = vld [vmem:[%s3608] ss:$2 sm:$0xff]
        %s3610 = scalar_lea.vmem %s1890, 194 [#allocation2]
        %v3611 = vld [vmem:[%s3610] ss:$2 sm:$0xff]
        %s3612 = scalar_lea.vmem %s1890, 242 [#allocation2]
        %v3613 = vld [vmem:[%s3612] ss:$2 sm:$0xff]
        %s3614 = scalar_lea.vmem %s1890, 290 [#allocation2]
        %v3615 = vld [vmem:[%s3614] ss:$2 sm:$0xff]
        %s3616 = scalar_lea.vmem %s1890, 338 [#allocation2]
        %v3617 = vld [vmem:[%s3616] ss:$2 sm:$0xff]
        %s3618 = scalar_lea.vmem %s1890, 434 [#allocation2]
        %v3619 = vld [vmem:[%s3618] ss:$2 sm:$0xff]
        %s3620 = scalar_lea.vmem %s1890, 482 [#allocation2]
        %v3621 = vld [vmem:[%s3620] ss:$2 sm:$0xff]
        %s3622 = scalar_lea.vmem %s1890, 530 [#allocation2]
        %v3623 = vld [vmem:[%s3622] ss:$2 sm:$0xff]
        %s3624 = scalar_lea.vmem %s1890, 578 [#allocation2]
        %v3625 = vld [vmem:[%s3624] ss:$2 sm:$0xff]
        %s3626 = scalar_lea.vmem %s1890, 626 [#allocation2]
        %v3627 = vld [vmem:[%s3626] ss:$2 sm:$0xff]
        %s3628 = scalar_lea.vmem %s1890, 674 [#allocation2]
        %v3629 = vld [vmem:[%s3628] ss:$2 sm:$0xff]
        %s3630 = scalar_lea.vmem %s1890, 722 [#allocation2]
        %v3631 = vld [vmem:[%s3630] ss:$2 sm:$0xff]
        %s3632 = scalar_lea.vmem %s1890, 770 [#allocation2]
        %v3633 = vld [vmem:[%s3632] ss:$2 sm:$0xff]
        %s3634 = scalar_lea.vmem %s1890, 866 [#allocation2]
        %v3635 = vld [vmem:[%s3634] ss:$2 sm:$0xff]
        %s3636 = scalar_lea.vmem %s1890, 914 [#allocation2]
        %v3637 = vld [vmem:[%s3636] ss:$2 sm:$0xff]
        %s3638 = scalar_lea.vmem %s1890, 962 [#allocation2]
        %v3639 = vld [vmem:[%s3638] ss:$2 sm:$0xff]
        %s3640 = scalar_lea.vmem %s1890, 1010 [#allocation2]
        %v3641 = vld [vmem:[%s3640] ss:$2 sm:$0xff]
        %s3642 = scalar_lea.vmem %s1890, 1058 [#allocation2]
        %v3643 = vld [vmem:[%s3642] ss:$2 sm:$0xff]
        %s3644 = scalar_lea.vmem %s1890, 1106 [#allocation2]
        %v3645 = vld [vmem:[%s3644] ss:$2 sm:$0xff]
        %s3646 = scalar_lea.vmem %s1890, 1154 [#allocation2]
        %v3647 = vld [vmem:[%s3646] ss:$2 sm:$0xff]
        %s3648 = scalar_lea.vmem %s1890, 1202 [#allocation2]
        %v3649 = vld [vmem:[%s3648] ss:$2 sm:$0xff]
        %s3650 = scalar_lea.vmem %s1890, 1298 [#allocation2]
        %v3651 = vld [vmem:[%s3650] ss:$2 sm:$0xff]
        %s3652 = scalar_lea.vmem %s1890, 1346 [#allocation2]
        %v3653 = vld [vmem:[%s3652] ss:$2 sm:$0xff]
        %s3654 = scalar_lea.vmem %s1890, 1394 [#allocation2]
        %v3655 = vld [vmem:[%s3654] ss:$2 sm:$0xff]
        %s3656 = scalar_lea.vmem %s1890, 1442 [#allocation2]
        %v3657 = vld [vmem:[%s3656] ss:$2 sm:$0xff]
        %s3658 = scalar_lea.vmem %s1890, 1490 [#allocation2]
        %v3659 = vld [vmem:[%s3658] ss:$2 sm:$0xff]
        %s3660 = scalar_lea.vmem %s1890, 1538 [#allocation2]
        %v3661 = vld [vmem:[%s3660] ss:$2 sm:$0xff]
        %s3662 = scalar_lea.vmem %s1890, 1586 [#allocation2]
        %v3663 = vld [vmem:[%s3662] ss:$2 sm:$0xff]
        %s3664 = scalar_lea.vmem %s1890, 1634 [#allocation2]
        %v3665 = vld [vmem:[%s3664] ss:$2 sm:$0xff]
        %v3666 = vpack.c.bf16 %v3605, %v3603
        %v3667 = vpack.c.bf16 %v3609, %v3607
        %v3668 = vpack.c.bf16 %v3613, %v3611
        %v3669 = vpack.c.bf16 %v3617, %v3615
        %v3670 = vpack.c.bf16 %v3621, %v3619
        %v3671 = vpack.c.bf16 %v3625, %v3623
        %v3672 = vpack.c.bf16 %v3629, %v3627
        %v3673 = vpack.c.bf16 %v3633, %v3631
        %v3674 = vpack.c.bf16 %v3637, %v3635
        %v3675 = vpack.c.bf16 %v3641, %v3639
        %v3676 = vpack.c.bf16 %v3645, %v3643
        %v3677 = vpack.c.bf16 %v3649, %v3647
        %v3678 = vpack.c.bf16 %v3653, %v3651
        %v3679 = vpack.c.bf16 %v3657, %v3655
        %v3680 = vpack.c.bf16 %v3661, %v3659
        %v3681 = vpack.c.bf16 %v3665, %v3663
        %s3682 = scalar_lea.vmem %s2, 40
        %v3683 = vld [vmem:[%s3682] sm:$0xf]
        %v3684 = vld [vmem:[%s3682 + $0x4] sm:$0xf]
        %v3687 = vunpack.c.l.b16 %v3683
        %v3688 = vunpack.c.l.b16 %v3684
        %v3689 = vpack.c.b16 %v3688, %v3687
        %v3692 = vsel %vm1718, %v3666, 0
        %v3695 = vsel %vm1718, %v3667, 0
        %v3698 = vsel %vm1718, %v3668, 0
        %v3701 = vsel %vm1718, %v3669, 0
        %v3704 = vsel %vm1718, %v3670, 0
        %v3707 = vsel %vm1718, %v3671, 0
        %v3710 = vsel %vm1718, %v3672, 0
        %v3713 = vsel %vm1718, %v3673, 0
        %v3716 = vsel %vm1718, %v3674, 0
        %v3719 = vsel %vm1718, %v3675, 0
        %v3722 = vsel %vm1718, %v3676, 0
        %v3725 = vsel %vm1718, %v3677, 0
        %v3728 = vsel %vm1718, %v3678, 0
        %v3731 = vsel %vm1718, %v3679, 0
        %v3734 = vsel %vm1718, %v3680, 0
        %v3737 = vsel %vm1718, %v3681, 0
        %3739 = vmatprep.subr.bf16.mxu0 0
        %3740 = vmatpush1.bf16.msra.mxu0 0
        %3741 = vmatprep.subr.bf16.mxu0 0
        %3742 = vmatpush1.bf16.msra.mxu0 0
        %3743 = vmatprep.subr.bf16.mxu0 0
        %3744 = vmatpush1.bf16.msra.mxu0 0
        %3745 = vmatprep.subr.bf16.mxu0 0
        %3746 = vmatpush1.bf16.msra.mxu0 0
        %3747 = vmatprep.subr.bf16.mxu0 0
        %3748 = vmatpush1.bf16.msra.mxu0 0
        %3749 = vmatprep.subr.bf16.mxu0 0
        %3750 = vmatpush1.bf16.msra.mxu0 0
        %3751 = vmatprep.subr.bf16.mxu0 0
        %3752 = vmatpush1.bf16.msra.mxu0 0
        %3753 = vmatprep.subr.bf16.mxu0 0
        %3754 = vmatpush1.bf16.msra.mxu0 %v3689
        %3755 = vmatprep.subr.bf16.mxu0 0
        %3756 = vmatpush2.bf16.msra.mxu0 0
        %3757 = vmatprep.subr.bf16.mxu0 0
        %3758 = vmatpush2.bf16.msra.mxu0 0
        %3759 = vmatprep.subr.bf16.mxu0 0
        %3760 = vmatpush2.bf16.msra.mxu0 0
        %3761 = vmatprep.subr.bf16.mxu0 0
        %3762 = vmatpush2.bf16.msra.mxu0 0
        %3763 = vmatprep.subr.bf16.mxu0 0
        %3764 = vmatpush2.bf16.msra.mxu0 0
        %3765 = vmatprep.subr.bf16.mxu0 0
        %3766 = vmatpush2.bf16.msra.mxu0 0
        %3767 = vmatprep.subr.bf16.mxu0 0
        %3768 = vmatpush2.bf16.msra.mxu0 0
        %3769 = vmatprep.subr.bf16.mxu0 0
        %3770 = vmatpush2.bf16.msra.mxu0 0
        %3771 = vmatprep.mubr.bf16.mxu0 0
        %3772 = vmatmul.mubr.bf16.gmra.mxu0 %v3692
        %v3773 = vpop.f32.mrf.mxu0
        %v3774 = vadd.f32 0.0, %v3773
        %v3775 = vpop.f32.mrf.mxu0
        %v3776 = vpop.f32.mrf.mxu0
        %v3777 = vadd.f32 0.0, %v3776
        %v3778 = vpop.f32.mrf.mxu0
        %3779 = vmatprep.mubr.bf16.mxu0 0
        %3780 = vmatmul.mubr.bf16.gmra.mxu0 %v3695
        %v3781 = vpop.f32.mrf.mxu0
        %v3782 = vadd.f32 0.0, %v3781
        %v3783 = vpop.f32.mrf.mxu0
        %v3784 = vpop.f32.mrf.mxu0
        %v3785 = vadd.f32 0.0, %v3784
        %v3786 = vpop.f32.mrf.mxu0
        %3787 = vmatprep.mubr.bf16.mxu0 0
        %3788 = vmatmul.mubr.bf16.gmra.mxu0 %v3698
        %v3789 = vpop.f32.mrf.mxu0
        %v3790 = vadd.f32 0.0, %v3789
        %v3791 = vpop.f32.mrf.mxu0
        %v3792 = vpop.f32.mrf.mxu0
        %v3793 = vadd.f32 0.0, %v3792
        %v3794 = vpop.f32.mrf.mxu0
        %3795 = vmatprep.mubr.bf16.mxu0 0
        %3796 = vmatmul.mubr.bf16.gmra.mxu0 %v3701
        %v3797 = vpop.f32.mrf.mxu0
        %v3798 = vadd.f32 0.0, %v3797
        %v3799 = vpop.f32.mrf.mxu0
        %v3800 = vpop.f32.mrf.mxu0
        %v3801 = vadd.f32 0.0, %v3800
        %v3802 = vpop.f32.mrf.mxu0
        %3803 = vmatprep.mubr.bf16.mxu0 0
        %3804 = vmatmul.mubr.bf16.gmra.mxu0 %v3704
        %v3805 = vpop.f32.mrf.mxu0
        %v3806 = vadd.f32 0.0, %v3805
        %v3807 = vpop.f32.mrf.mxu0
        %v3808 = vpop.f32.mrf.mxu0
        %v3809 = vadd.f32 0.0, %v3808
        %v3810 = vpop.f32.mrf.mxu0
        %3811 = vmatprep.mubr.bf16.mxu0 0
        %3812 = vmatmul.mubr.bf16.gmra.mxu0 %v3707
        %v3813 = vpop.f32.mrf.mxu0
        %v3814 = vadd.f32 0.0, %v3813
        %v3815 = vpop.f32.mrf.mxu0
        %v3816 = vpop.f32.mrf.mxu0
        %v3817 = vadd.f32 0.0, %v3816
        %v3818 = vpop.f32.mrf.mxu0
        %3819 = vmatprep.mubr.bf16.mxu0 0
        %3820 = vmatmul.mubr.bf16.gmra.mxu0 %v3710
        %v3821 = vpop.f32.mrf.mxu0
        %v3822 = vadd.f32 0.0, %v3821
        %v3823 = vpop.f32.mrf.mxu0
        %v3824 = vpop.f32.mrf.mxu0
        %v3825 = vadd.f32 0.0, %v3824
        %v3826 = vpop.f32.mrf.mxu0
        %3827 = vmatprep.mubr.bf16.mxu0 0
        %3828 = vmatmul.mubr.bf16.gmra.mxu0 %v3713
        %v3829 = vpop.f32.mrf.mxu0
        %v3830 = vadd.f32 0.0, %v3829
        %v3831 = vpop.f32.mrf.mxu0
        %v3832 = vpop.f32.mrf.mxu0
        %v3833 = vadd.f32 0.0, %v3832
        %v3834 = vpop.f32.mrf.mxu0
        %3835 = vmatprep.mubr.bf16.mxu0 0
        %3836 = vmatmul.mubr.bf16.gmra.mxu0 %v3716
        %v3837 = vpop.f32.mrf.mxu0
        %v3838 = vadd.f32 0.0, %v3837
        %v3839 = vpop.f32.mrf.mxu0
        %v3840 = vpop.f32.mrf.mxu0
        %v3841 = vadd.f32 0.0, %v3840
        %v3842 = vpop.f32.mrf.mxu0
        %3843 = vmatprep.mubr.bf16.mxu0 0
        %3844 = vmatmul.mubr.bf16.gmra.mxu0 %v3719
        %v3845 = vpop.f32.mrf.mxu0
        %v3846 = vadd.f32 0.0, %v3845
        %v3847 = vpop.f32.mrf.mxu0
        %v3848 = vpop.f32.mrf.mxu0
        %v3849 = vadd.f32 0.0, %v3848
        %v3850 = vpop.f32.mrf.mxu0
        %3851 = vmatprep.mubr.bf16.mxu0 0
        %3852 = vmatmul.mubr.bf16.gmra.mxu0 %v3722
        %v3853 = vpop.f32.mrf.mxu0
        %v3854 = vadd.f32 0.0, %v3853
        %v3855 = vpop.f32.mrf.mxu0
        %v3856 = vpop.f32.mrf.mxu0
        %v3857 = vadd.f32 0.0, %v3856
        %v3858 = vpop.f32.mrf.mxu0
        %3859 = vmatprep.mubr.bf16.mxu0 0
        %3860 = vmatmul.mubr.bf16.gmra.mxu0 %v3725
        %v3861 = vpop.f32.mrf.mxu0
        %v3862 = vadd.f32 0.0, %v3861
        %v3863 = vpop.f32.mrf.mxu0
        %v3864 = vpop.f32.mrf.mxu0
        %v3865 = vadd.f32 0.0, %v3864
        %v3866 = vpop.f32.mrf.mxu0
        %3867 = vmatprep.mubr.bf16.mxu0 0
        %3868 = vmatmul.mubr.bf16.gmra.mxu0 %v3728
        %v3869 = vpop.f32.mrf.mxu0
        %v3870 = vadd.f32 0.0, %v3869
        %v3871 = vpop.f32.mrf.mxu0
        %v3872 = vpop.f32.mrf.mxu0
        %v3873 = vadd.f32 0.0, %v3872
        %v3874 = vpop.f32.mrf.mxu0
        %3875 = vmatprep.mubr.bf16.mxu0 0
        %3876 = vmatmul.mubr.bf16.gmra.mxu0 %v3731
        %v3877 = vpop.f32.mrf.mxu0
        %v3878 = vadd.f32 0.0, %v3877
        %v3879 = vpop.f32.mrf.mxu0
        %v3880 = vpop.f32.mrf.mxu0
        %v3881 = vadd.f32 0.0, %v3880
        %v3882 = vpop.f32.mrf.mxu0
        %3883 = vmatprep.mubr.bf16.mxu0 0
        %3884 = vmatmul.mubr.bf16.gmra.mxu0 %v3734
        %v3885 = vpop.f32.mrf.mxu0
        %v3886 = vadd.f32 0.0, %v3885
        %v3887 = vpop.f32.mrf.mxu0
        %v3888 = vpop.f32.mrf.mxu0
        %v3889 = vadd.f32 0.0, %v3888
        %v3890 = vpop.f32.mrf.mxu0
        %3891 = vmatprep.mubr.bf16.mxu0 0
        %3892 = vmatmul.mubr.bf16.gmra.mxu0 %v3737
        %v3893 = vpop.f32.mrf.mxu0
        %v3894 = vadd.f32 0.0, %v3893
        %v3895 = vpop.f32.mrf.mxu0
        %v3896 = vpop.f32.mrf.mxu0
        %v3897 = vadd.f32 0.0, %v3896
        %v3898 = vpop.f32.mrf.mxu0
        %3899 = vdwg.mxu0
        %v3900 = vadd.f32 %v3570, %v3774
        %v3901 = vadd.f32 %v3571, %v3777
        %v3902 = vadd.f32 %v3572, %v3782
        %v3903 = vadd.f32 %v3573, %v3785
        %v3904 = vadd.f32 %v3574, %v3790
        %v3905 = vadd.f32 %v3575, %v3793
        %v3906 = vadd.f32 %v3576, %v3798
        %v3907 = vadd.f32 %v3577, %v3801
        %v3908 = vadd.f32 %v3578, %v3806
        %v3909 = vadd.f32 %v3579, %v3809
        %v3910 = vadd.f32 %v3580, %v3814
        %v3911 = vadd.f32 %v3581, %v3817
        %v3912 = vadd.f32 %v3582, %v3822
        %v3913 = vadd.f32 %v3583, %v3825
        %v3914 = vadd.f32 %v3584, %v3830
        %v3915 = vadd.f32 %v3585, %v3833
        %v3916 = vadd.f32 %v3586, %v3838
        %v3917 = vadd.f32 %v3587, %v3841
        %v3918 = vadd.f32 %v3588, %v3846
        %v3919 = vadd.f32 %v3589, %v3849
        %v3920 = vadd.f32 %v3590, %v3854
        %v3921 = vadd.f32 %v3591, %v3857
        %v3922 = vadd.f32 %v3592, %v3862
        %v3923 = vadd.f32 %v3593, %v3865
        %v3924 = vadd.f32 %v3594, %v3870
        %v3925 = vadd.f32 %v3595, %v3873
        %v3926 = vadd.f32 %v3596, %v3878
        %v3927 = vadd.f32 %v3597, %v3881
        %v3928 = vadd.f32 %v3598, %v3886
        %v3929 = vadd.f32 %v3599, %v3889
        %v3930 = vadd.f32 %v3600, %v3894
        %v3931 = vadd.f32 %v3601, %v3897
        %s3932 = scalar_lea.vmem [#allocation2], 48
        %v3933 = vld [vmem:[%s3932] ss:$2 sm:$0xff]
        %s3934 = scalar_lea.vmem %s3932, 48 [#allocation2]
        %v3935 = vld [vmem:[%s3934] ss:$2 sm:$0xff]
        %s3936 = scalar_lea.vmem %s3932, 96 [#allocation2]
        %v3937 = vld [vmem:[%s3936] ss:$2 sm:$0xff]
        %s3938 = scalar_lea.vmem %s3932, 144 [#allocation2]
        %v3939 = vld [vmem:[%s3938] ss:$2 sm:$0xff]
        %s3940 = scalar_lea.vmem %s3932, 192 [#allocation2]
        %v3941 = vld [vmem:[%s3940] ss:$2 sm:$0xff]
        %s3942 = scalar_lea.vmem %s3932, 240 [#allocation2]
        %v3943 = vld [vmem:[%s3942] ss:$2 sm:$0xff]
        %s3944 = scalar_lea.vmem %s3932, 288 [#allocation2]
        %v3945 = vld [vmem:[%s3944] ss:$2 sm:$0xff]
        %s3946 = scalar_lea.vmem %s3932, 336 [#allocation2]
        %v3947 = vld [vmem:[%s3946] ss:$2 sm:$0xff]
        %s3948 = scalar_lea.vmem %s3932, 432 [#allocation2]
        %v3949 = vld [vmem:[%s3948] ss:$2 sm:$0xff]
        %s3950 = scalar_lea.vmem %s3932, 480 [#allocation2]
        %v3951 = vld [vmem:[%s3950] ss:$2 sm:$0xff]
        %s3952 = scalar_lea.vmem %s3932, 528 [#allocation2]
        %v3953 = vld [vmem:[%s3952] ss:$2 sm:$0xff]
        %s3954 = scalar_lea.vmem %s3932, 576 [#allocation2]
        %v3955 = vld [vmem:[%s3954] ss:$2 sm:$0xff]
        %s3956 = scalar_lea.vmem %s3932, 624 [#allocation2]
        %v3957 = vld [vmem:[%s3956] ss:$2 sm:$0xff]
        %s3958 = scalar_lea.vmem %s3932, 672 [#allocation2]
        %v3959 = vld [vmem:[%s3958] ss:$2 sm:$0xff]
        %s3960 = scalar_lea.vmem %s3932, 720 [#allocation2]
        %v3961 = vld [vmem:[%s3960] ss:$2 sm:$0xff]
        %s3962 = scalar_lea.vmem %s3932, 768 [#allocation2]
        %v3963 = vld [vmem:[%s3962] ss:$2 sm:$0xff]
        %s3964 = scalar_lea.vmem %s3932, 864 [#allocation2]
        %v3965 = vld [vmem:[%s3964] ss:$2 sm:$0xff]
        %s3966 = scalar_lea.vmem %s3932, 912 [#allocation2]
        %v3967 = vld [vmem:[%s3966] ss:$2 sm:$0xff]
        %s3968 = scalar_lea.vmem %s3932, 960 [#allocation2]
        %v3969 = vld [vmem:[%s3968] ss:$2 sm:$0xff]
        %s3970 = scalar_lea.vmem %s3932, 1008 [#allocation2]
        %v3971 = vld [vmem:[%s3970] ss:$2 sm:$0xff]
        %s3972 = scalar_lea.vmem %s3932, 1056 [#allocation2]
        %v3973 = vld [vmem:[%s3972] ss:$2 sm:$0xff]
        %s3974 = scalar_lea.vmem %s3932, 1104 [#allocation2]
        %v3975 = vld [vmem:[%s3974] ss:$2 sm:$0xff]
        %s3976 = scalar_lea.vmem %s3932, 1152 [#allocation2]
        %v3977 = vld [vmem:[%s3976] ss:$2 sm:$0xff]
        %s3978 = scalar_lea.vmem %s3932, 1200 [#allocation2]
        %v3979 = vld [vmem:[%s3978] ss:$2 sm:$0xff]
        %s3980 = scalar_lea.vmem %s3932, 1296 [#allocation2]
        %v3981 = vld [vmem:[%s3980] ss:$2 sm:$0xff]
        %s3982 = scalar_lea.vmem %s3932, 1344 [#allocation2]
        %v3983 = vld [vmem:[%s3982] ss:$2 sm:$0xff]
        %s3984 = scalar_lea.vmem %s3932, 1392 [#allocation2]
        %v3985 = vld [vmem:[%s3984] ss:$2 sm:$0xff]
        %s3986 = scalar_lea.vmem %s3932, 1440 [#allocation2]
        %v3987 = vld [vmem:[%s3986] ss:$2 sm:$0xff]
        %s3988 = scalar_lea.vmem %s3932, 1488 [#allocation2]
        %v3989 = vld [vmem:[%s3988] ss:$2 sm:$0xff]
        %s3990 = scalar_lea.vmem %s3932, 1536 [#allocation2]
        %v3991 = vld [vmem:[%s3990] ss:$2 sm:$0xff]
        %s3992 = scalar_lea.vmem %s3932, 1584 [#allocation2]
        %v3993 = vld [vmem:[%s3992] ss:$2 sm:$0xff]
        %s3994 = scalar_lea.vmem %s3932, 1632 [#allocation2]
        %v3995 = vld [vmem:[%s3994] ss:$2 sm:$0xff]
        %v3996 = vpack.c.bf16 %v3935, %v3933
        %v3997 = vpack.c.bf16 %v3939, %v3937
        %v3998 = vpack.c.bf16 %v3943, %v3941
        %v3999 = vpack.c.bf16 %v3947, %v3945
        %v4000 = vpack.c.bf16 %v3951, %v3949
        %v4001 = vpack.c.bf16 %v3955, %v3953
        %v4002 = vpack.c.bf16 %v3959, %v3957
        %v4003 = vpack.c.bf16 %v3963, %v3961
        %v4004 = vpack.c.bf16 %v3967, %v3965
        %v4005 = vpack.c.bf16 %v3971, %v3969
        %v4006 = vpack.c.bf16 %v3975, %v3973
        %v4007 = vpack.c.bf16 %v3979, %v3977
        %v4008 = vpack.c.bf16 %v3983, %v3981
        %v4009 = vpack.c.bf16 %v3987, %v3985
        %v4010 = vpack.c.bf16 %v3991, %v3989
        %v4011 = vpack.c.bf16 %v3995, %v3993
        %s4012 = scalar_lea.vmem %s2, 48
        %v4013 = vld [vmem:[%s4012] sm:$0xf]
        %v4014 = vld [vmem:[%s4012 + $0x4] sm:$0xf]
        %v4017 = vunpack.c.l.b16 %v4013
        %v4018 = vunpack.c.l.b16 %v4014
        %v4019 = vpack.c.b16 %v4018, %v4017
        %v4022 = vsel %vm1718, %v3996, 0
        %v4025 = vsel %vm1718, %v3997, 0
        %v4028 = vsel %vm1718, %v3998, 0
        %v4031 = vsel %vm1718, %v3999, 0
        %v4034 = vsel %vm1718, %v4000, 0
        %v4037 = vsel %vm1718, %v4001, 0
        %v4040 = vsel %vm1718, %v4002, 0
        %v4043 = vsel %vm1718, %v4003, 0
        %v4046 = vsel %vm1718, %v4004, 0
        %v4049 = vsel %vm1718, %v4005, 0
        %v4052 = vsel %vm1718, %v4006, 0
        %v4055 = vsel %vm1718, %v4007, 0
        %v4058 = vsel %vm1718, %v4008, 0
        %v4061 = vsel %vm1718, %v4009, 0
        %v4064 = vsel %vm1718, %v4010, 0
        %v4067 = vsel %vm1718, %v4011, 0
        %4069 = vmatprep.subr.bf16.mxu0 0
        %4070 = vmatpush1.bf16.msra.mxu0 0
        %4071 = vmatprep.subr.bf16.mxu0 0
        %4072 = vmatpush1.bf16.msra.mxu0 0
        %4073 = vmatprep.subr.bf16.mxu0 0
        %4074 = vmatpush1.bf16.msra.mxu0 0
        %4075 = vmatprep.subr.bf16.mxu0 0
        %4076 = vmatpush1.bf16.msra.mxu0 0
        %4077 = vmatprep.subr.bf16.mxu0 0
        %4078 = vmatpush1.bf16.msra.mxu0 0
        %4079 = vmatprep.subr.bf16.mxu0 0
        %4080 = vmatpush1.bf16.msra.mxu0 0
        %4081 = vmatprep.subr.bf16.mxu0 0
        %4082 = vmatpush1.bf16.msra.mxu0 0
        %4083 = vmatprep.subr.bf16.mxu0 0
        %4084 = vmatpush1.bf16.msra.mxu0 %v4019
        %4085 = vmatprep.subr.bf16.mxu0 0
        %4086 = vmatpush2.bf16.msra.mxu0 0
        %4087 = vmatprep.subr.bf16.mxu0 0
        %4088 = vmatpush2.bf16.msra.mxu0 0
        %4089 = vmatprep.subr.bf16.mxu0 0
        %4090 = vmatpush2.bf16.msra.mxu0 0
        %4091 = vmatprep.subr.bf16.mxu0 0
        %4092 = vmatpush2.bf16.msra.mxu0 0
        %4093 = vmatprep.subr.bf16.mxu0 0
        %4094 = vmatpush2.bf16.msra.mxu0 0
        %4095 = vmatprep.subr.bf16.mxu0 0
        %4096 = vmatpush2.bf16.msra.mxu0 0
        %4097 = vmatprep.subr.bf16.mxu0 0
        %4098 = vmatpush2.bf16.msra.mxu0 0
        %4099 = vmatprep.subr.bf16.mxu0 0
        %4100 = vmatpush2.bf16.msra.mxu0 0
        %4101 = vmatprep.mubr.bf16.mxu0 0
        %4102 = vmatmul.mubr.bf16.gmra.mxu0 %v4022
        %v4103 = vpop.f32.mrf.mxu0
        %v4104 = vadd.f32 0.0, %v4103
        %v4105 = vpop.f32.mrf.mxu0
        %v4106 = vpop.f32.mrf.mxu0
        %v4107 = vadd.f32 0.0, %v4106
        %v4108 = vpop.f32.mrf.mxu0
        %4109 = vmatprep.mubr.bf16.mxu0 0
        %4110 = vmatmul.mubr.bf16.gmra.mxu0 %v4025
        %v4111 = vpop.f32.mrf.mxu0
        %v4112 = vadd.f32 0.0, %v4111
        %v4113 = vpop.f32.mrf.mxu0
        %v4114 = vpop.f32.mrf.mxu0
        %v4115 = vadd.f32 0.0, %v4114
        %v4116 = vpop.f32.mrf.mxu0
        %4117 = vmatprep.mubr.bf16.mxu0 0
        %4118 = vmatmul.mubr.bf16.gmra.mxu0 %v4028
        %v4119 = vpop.f32.mrf.mxu0
        %v4120 = vadd.f32 0.0, %v4119
        %v4121 = vpop.f32.mrf.mxu0
        %v4122 = vpop.f32.mrf.mxu0
        %v4123 = vadd.f32 0.0, %v4122
        %v4124 = vpop.f32.mrf.mxu0
        %4125 = vmatprep.mubr.bf16.mxu0 0
        %4126 = vmatmul.mubr.bf16.gmra.mxu0 %v4031
        %v4127 = vpop.f32.mrf.mxu0
        %v4128 = vadd.f32 0.0, %v4127
        %v4129 = vpop.f32.mrf.mxu0
        %v4130 = vpop.f32.mrf.mxu0
        %v4131 = vadd.f32 0.0, %v4130
        %v4132 = vpop.f32.mrf.mxu0
        %4133 = vmatprep.mubr.bf16.mxu0 0
        %4134 = vmatmul.mubr.bf16.gmra.mxu0 %v4034
        %v4135 = vpop.f32.mrf.mxu0
        %v4136 = vadd.f32 0.0, %v4135
        %v4137 = vpop.f32.mrf.mxu0
        %v4138 = vpop.f32.mrf.mxu0
        %v4139 = vadd.f32 0.0, %v4138
        %v4140 = vpop.f32.mrf.mxu0
        %4141 = vmatprep.mubr.bf16.mxu0 0
        %4142 = vmatmul.mubr.bf16.gmra.mxu0 %v4037
        %v4143 = vpop.f32.mrf.mxu0
        %v4144 = vadd.f32 0.0, %v4143
        %v4145 = vpop.f32.mrf.mxu0
        %v4146 = vpop.f32.mrf.mxu0
        %v4147 = vadd.f32 0.0, %v4146
        %v4148 = vpop.f32.mrf.mxu0
        %4149 = vmatprep.mubr.bf16.mxu0 0
        %4150 = vmatmul.mubr.bf16.gmra.mxu0 %v4040
        %v4151 = vpop.f32.mrf.mxu0
        %v4152 = vadd.f32 0.0, %v4151
        %v4153 = vpop.f32.mrf.mxu0
        %v4154 = vpop.f32.mrf.mxu0
        %v4155 = vadd.f32 0.0, %v4154
        %v4156 = vpop.f32.mrf.mxu0
        %4157 = vmatprep.mubr.bf16.mxu0 0
        %4158 = vmatmul.mubr.bf16.gmra.mxu0 %v4043
        %v4159 = vpop.f32.mrf.mxu0
        %v4160 = vadd.f32 0.0, %v4159
        %v4161 = vpop.f32.mrf.mxu0
        %v4162 = vpop.f32.mrf.mxu0
        %v4163 = vadd.f32 0.0, %v4162
        %v4164 = vpop.f32.mrf.mxu0
        %4165 = vmatprep.mubr.bf16.mxu0 0
        %4166 = vmatmul.mubr.bf16.gmra.mxu0 %v4046
        %v4167 = vpop.f32.mrf.mxu0
        %v4168 = vadd.f32 0.0, %v4167
        %v4169 = vpop.f32.mrf.mxu0
        %v4170 = vpop.f32.mrf.mxu0
        %v4171 = vadd.f32 0.0, %v4170
        %v4172 = vpop.f32.mrf.mxu0
        %4173 = vmatprep.mubr.bf16.mxu0 0
        %4174 = vmatmul.mubr.bf16.gmra.mxu0 %v4049
        %v4175 = vpop.f32.mrf.mxu0
        %v4176 = vadd.f32 0.0, %v4175
        %v4177 = vpop.f32.mrf.mxu0
        %v4178 = vpop.f32.mrf.mxu0
        %v4179 = vadd.f32 0.0, %v4178
        %v4180 = vpop.f32.mrf.mxu0
        %4181 = vmatprep.mubr.bf16.mxu0 0
        %4182 = vmatmul.mubr.bf16.gmra.mxu0 %v4052
        %v4183 = vpop.f32.mrf.mxu0
        %v4184 = vadd.f32 0.0, %v4183
        %v4185 = vpop.f32.mrf.mxu0
        %v4186 = vpop.f32.mrf.mxu0
        %v4187 = vadd.f32 0.0, %v4186
        %v4188 = vpop.f32.mrf.mxu0
        %4189 = vmatprep.mubr.bf16.mxu0 0
        %4190 = vmatmul.mubr.bf16.gmra.mxu0 %v4055
        %v4191 = vpop.f32.mrf.mxu0
        %v4192 = vadd.f32 0.0, %v4191
        %v4193 = vpop.f32.mrf.mxu0
        %v4194 = vpop.f32.mrf.mxu0
        %v4195 = vadd.f32 0.0, %v4194
        %v4196 = vpop.f32.mrf.mxu0
        %4197 = vmatprep.mubr.bf16.mxu0 0
        %4198 = vmatmul.mubr.bf16.gmra.mxu0 %v4058
        %v4199 = vpop.f32.mrf.mxu0
        %v4200 = vadd.f32 0.0, %v4199
        %v4201 = vpop.f32.mrf.mxu0
        %v4202 = vpop.f32.mrf.mxu0
        %v4203 = vadd.f32 0.0, %v4202
        %v4204 = vpop.f32.mrf.mxu0
        %4205 = vmatprep.mubr.bf16.mxu0 0
        %4206 = vmatmul.mubr.bf16.gmra.mxu0 %v4061
        %v4207 = vpop.f32.mrf.mxu0
        %v4208 = vadd.f32 0.0, %v4207
        %v4209 = vpop.f32.mrf.mxu0
        %v4210 = vpop.f32.mrf.mxu0
        %v4211 = vadd.f32 0.0, %v4210
        %v4212 = vpop.f32.mrf.mxu0
        %4213 = vmatprep.mubr.bf16.mxu0 0
        %4214 = vmatmul.mubr.bf16.gmra.mxu0 %v4064
        %v4215 = vpop.f32.mrf.mxu0
        %v4216 = vadd.f32 0.0, %v4215
        %v4217 = vpop.f32.mrf.mxu0
        %v4218 = vpop.f32.mrf.mxu0
        %v4219 = vadd.f32 0.0, %v4218
        %v4220 = vpop.f32.mrf.mxu0
        %4221 = vmatprep.mubr.bf16.mxu0 0
        %4222 = vmatmul.mubr.bf16.gmra.mxu0 %v4067
        %v4223 = vpop.f32.mrf.mxu0
        %v4224 = vadd.f32 0.0, %v4223
        %v4225 = vpop.f32.mrf.mxu0
        %v4226 = vpop.f32.mrf.mxu0
        %v4227 = vadd.f32 0.0, %v4226
        %v4228 = vpop.f32.mrf.mxu0
        %4229 = vdwg.mxu0
        %v4230 = vadd.f32 %v3900, %v4104
        %v4231 = vadd.f32 %v3901, %v4107
        %v4232 = vadd.f32 %v3902, %v4112
        %v4233 = vadd.f32 %v3903, %v4115
        %v4234 = vadd.f32 %v3904, %v4120
        %v4235 = vadd.f32 %v3905, %v4123
        %v4236 = vadd.f32 %v3906, %v4128
        %v4237 = vadd.f32 %v3907, %v4131
        %v4238 = vadd.f32 %v3908, %v4136
        %v4239 = vadd.f32 %v3909, %v4139
        %v4240 = vadd.f32 %v3910, %v4144
        %v4241 = vadd.f32 %v3911, %v4147
        %v4242 = vadd.f32 %v3912, %v4152
        %v4243 = vadd.f32 %v3913, %v4155
        %v4244 = vadd.f32 %v3914, %v4160
        %v4245 = vadd.f32 %v3915, %v4163
        %v4246 = vadd.f32 %v3916, %v4168
        %v4247 = vadd.f32 %v3917, %v4171
        %v4248 = vadd.f32 %v3918, %v4176
        %v4249 = vadd.f32 %v3919, %v4179
        %v4250 = vadd.f32 %v3920, %v4184
        %v4251 = vadd.f32 %v3921, %v4187
        %v4252 = vadd.f32 %v3922, %v4192
        %v4253 = vadd.f32 %v3923, %v4195
        %v4254 = vadd.f32 %v3924, %v4200
        %v4255 = vadd.f32 %v3925, %v4203
        %v4256 = vadd.f32 %v3926, %v4208
        %v4257 = vadd.f32 %v3927, %v4211
        %v4258 = vadd.f32 %v3928, %v4216
        %v4259 = vadd.f32 %v3929, %v4219
        %v4260 = vadd.f32 %v3930, %v4224
        %v4261 = vadd.f32 %v3931, %v4227
        %s4262 = scalar_lea.vmem %s3932, 1 [#allocation2]
        %v4263 = vld [vmem:[%s4262] ss:$2 sm:$0xff]
        %s4264 = scalar_lea.vmem %s3932, 49 [#allocation2]
        %v4265 = vld [vmem:[%s4264] ss:$2 sm:$0xff]
        %s4266 = scalar_lea.vmem %s3932, 97 [#allocation2]
        %v4267 = vld [vmem:[%s4266] ss:$2 sm:$0xff]
        %s4268 = scalar_lea.vmem %s3932, 145 [#allocation2]
        %v4269 = vld [vmem:[%s4268] ss:$2 sm:$0xff]
        %s4270 = scalar_lea.vmem %s3932, 193 [#allocation2]
        %v4271 = vld [vmem:[%s4270] ss:$2 sm:$0xff]
        %s4272 = scalar_lea.vmem %s3932, 241 [#allocation2]
        %v4273 = vld [vmem:[%s4272] ss:$2 sm:$0xff]
        %s4274 = scalar_lea.vmem %s3932, 289 [#allocation2]
        %v4275 = vld [vmem:[%s4274] ss:$2 sm:$0xff]
        %s4276 = scalar_lea.vmem %s3932, 337 [#allocation2]
        %v4277 = vld [vmem:[%s4276] ss:$2 sm:$0xff]
        %s4278 = scalar_lea.vmem %s3932, 433 [#allocation2]
        %v4279 = vld [vmem:[%s4278] ss:$2 sm:$0xff]
        %s4280 = scalar_lea.vmem %s3932, 481 [#allocation2]
        %v4281 = vld [vmem:[%s4280] ss:$2 sm:$0xff]
        %s4282 = scalar_lea.vmem %s3932, 529 [#allocation2]
        %v4283 = vld [vmem:[%s4282] ss:$2 sm:$0xff]
        %s4284 = scalar_lea.vmem %s3932, 577 [#allocation2]
        %v4285 = vld [vmem:[%s4284] ss:$2 sm:$0xff]
        %s4286 = scalar_lea.vmem %s3932, 625 [#allocation2]
        %v4287 = vld [vmem:[%s4286] ss:$2 sm:$0xff]
        %s4288 = scalar_lea.vmem %s3932, 673 [#allocation2]
        %v4289 = vld [vmem:[%s4288] ss:$2 sm:$0xff]
        %s4290 = scalar_lea.vmem %s3932, 721 [#allocation2]
        %v4291 = vld [vmem:[%s4290] ss:$2 sm:$0xff]
        %s4292 = scalar_lea.vmem %s3932, 769 [#allocation2]
        %v4293 = vld [vmem:[%s4292] ss:$2 sm:$0xff]
        %s4294 = scalar_lea.vmem %s3932, 865 [#allocation2]
        %v4295 = vld [vmem:[%s4294] ss:$2 sm:$0xff]
        %s4296 = scalar_lea.vmem %s3932, 913 [#allocation2]
        %v4297 = vld [vmem:[%s4296] ss:$2 sm:$0xff]
        %s4298 = scalar_lea.vmem %s3932, 961 [#allocation2]
        %v4299 = vld [vmem:[%s4298] ss:$2 sm:$0xff]
        %s4300 = scalar_lea.vmem %s3932, 1009 [#allocation2]
        %v4301 = vld [vmem:[%s4300] ss:$2 sm:$0xff]
        %s4302 = scalar_lea.vmem %s3932, 1057 [#allocation2]
        %v4303 = vld [vmem:[%s4302] ss:$2 sm:$0xff]
        %s4304 = scalar_lea.vmem %s3932, 1105 [#allocation2]
        %v4305 = vld [vmem:[%s4304] ss:$2 sm:$0xff]
        %s4306 = scalar_lea.vmem %s3932, 1153 [#allocation2]
        %v4307 = vld [vmem:[%s4306] ss:$2 sm:$0xff]
        %s4308 = scalar_lea.vmem %s3932, 1201 [#allocation2]
        %v4309 = vld [vmem:[%s4308] ss:$2 sm:$0xff]
        %s4310 = scalar_lea.vmem %s3932, 1297 [#allocation2]
        %v4311 = vld [vmem:[%s4310] ss:$2 sm:$0xff]
        %s4312 = scalar_lea.vmem %s3932, 1345 [#allocation2]
        %v4313 = vld [vmem:[%s4312] ss:$2 sm:$0xff]
        %s4314 = scalar_lea.vmem %s3932, 1393 [#allocation2]
        %v4315 = vld [vmem:[%s4314] ss:$2 sm:$0xff]
        %s4316 = scalar_lea.vmem %s3932, 1441 [#allocation2]
        %v4317 = vld [vmem:[%s4316] ss:$2 sm:$0xff]
        %s4318 = scalar_lea.vmem %s3932, 1489 [#allocation2]
        %v4319 = vld [vmem:[%s4318] ss:$2 sm:$0xff]
        %s4320 = scalar_lea.vmem %s3932, 1537 [#allocation2]
        %v4321 = vld [vmem:[%s4320] ss:$2 sm:$0xff]
        %s4322 = scalar_lea.vmem %s3932, 1585 [#allocation2]
        %v4323 = vld [vmem:[%s4322] ss:$2 sm:$0xff]
        %s4324 = scalar_lea.vmem %s3932, 1633 [#allocation2]
        %v4325 = vld [vmem:[%s4324] ss:$2 sm:$0xff]
        %v4326 = vpack.c.bf16 %v4265, %v4263
        %v4327 = vpack.c.bf16 %v4269, %v4267
        %v4328 = vpack.c.bf16 %v4273, %v4271
        %v4329 = vpack.c.bf16 %v4277, %v4275
        %v4330 = vpack.c.bf16 %v4281, %v4279
        %v4331 = vpack.c.bf16 %v4285, %v4283
        %v4332 = vpack.c.bf16 %v4289, %v4287
        %v4333 = vpack.c.bf16 %v4293, %v4291
        %v4334 = vpack.c.bf16 %v4297, %v4295
        %v4335 = vpack.c.bf16 %v4301, %v4299
        %v4336 = vpack.c.bf16 %v4305, %v4303
        %v4337 = vpack.c.bf16 %v4309, %v4307
        %v4338 = vpack.c.bf16 %v4313, %v4311
        %v4339 = vpack.c.bf16 %v4317, %v4315
        %v4340 = vpack.c.bf16 %v4321, %v4319
        %v4341 = vpack.c.bf16 %v4325, %v4323
        %s4342 = scalar_lea.vmem %s2, 56
        %v4343 = vld [vmem:[%s4342] sm:$0xf]
        %v4344 = vld [vmem:[%s4342 + $0x4] sm:$0xf]
        %v4347 = vunpack.c.l.b16 %v4343
        %v4348 = vunpack.c.l.b16 %v4344
        %v4349 = vpack.c.b16 %v4348, %v4347
        %v4352 = vsel %vm1718, %v4326, 0
        %v4355 = vsel %vm1718, %v4327, 0
        %v4358 = vsel %vm1718, %v4328, 0
        %v4361 = vsel %vm1718, %v4329, 0
        %v4364 = vsel %vm1718, %v4330, 0
        %v4367 = vsel %vm1718, %v4331, 0
        %v4370 = vsel %vm1718, %v4332, 0
        %v4373 = vsel %vm1718, %v4333, 0
        %v4376 = vsel %vm1718, %v4334, 0
        %v4379 = vsel %vm1718, %v4335, 0
        %v4382 = vsel %vm1718, %v4336, 0
        %v4385 = vsel %vm1718, %v4337, 0
        %v4388 = vsel %vm1718, %v4338, 0
        %v4391 = vsel %vm1718, %v4339, 0
        %v4394 = vsel %vm1718, %v4340, 0
        %v4397 = vsel %vm1718, %v4341, 0
        %4399 = vmatprep.subr.bf16.mxu0 0
        %4400 = vmatpush1.bf16.msra.mxu0 0
        %4401 = vmatprep.subr.bf16.mxu0 0
        %4402 = vmatpush1.bf16.msra.mxu0 0
        %4403 = vmatprep.subr.bf16.mxu0 0
        %4404 = vmatpush1.bf16.msra.mxu0 0
        %4405 = vmatprep.subr.bf16.mxu0 0
        %4406 = vmatpush1.bf16.msra.mxu0 0
        %4407 = vmatprep.subr.bf16.mxu0 0
        %4408 = vmatpush1.bf16.msra.mxu0 0
        %4409 = vmatprep.subr.bf16.mxu0 0
        %4410 = vmatpush1.bf16.msra.mxu0 0
        %4411 = vmatprep.subr.bf16.mxu0 0
        %4412 = vmatpush1.bf16.msra.mxu0 0
        %4413 = vmatprep.subr.bf16.mxu0 0
        %4414 = vmatpush1.bf16.msra.mxu0 %v4349
        %4415 = vmatprep.subr.bf16.mxu0 0
        %4416 = vmatpush2.bf16.msra.mxu0 0
        %4417 = vmatprep.subr.bf16.mxu0 0
        %4418 = vmatpush2.bf16.msra.mxu0 0
        %4419 = vmatprep.subr.bf16.mxu0 0
        %4420 = vmatpush2.bf16.msra.mxu0 0
        %4421 = vmatprep.subr.bf16.mxu0 0
        %4422 = vmatpush2.bf16.msra.mxu0 0
        %4423 = vmatprep.subr.bf16.mxu0 0
        %4424 = vmatpush2.bf16.msra.mxu0 0
        %4425 = vmatprep.subr.bf16.mxu0 0
        %4426 = vmatpush2.bf16.msra.mxu0 0
        %4427 = vmatprep.subr.bf16.mxu0 0
        %4428 = vmatpush2.bf16.msra.mxu0 0
        %4429 = vmatprep.subr.bf16.mxu0 0
        %4430 = vmatpush2.bf16.msra.mxu0 0
        %4431 = vmatprep.mubr.bf16.mxu0 0
        %4432 = vmatmul.mubr.bf16.gmra.mxu0 %v4352
        %v4433 = vpop.f32.mrf.mxu0
        %v4434 = vadd.f32 0.0, %v4433
        %v4435 = vpop.f32.mrf.mxu0
        %v4436 = vpop.f32.mrf.mxu0
        %v4437 = vadd.f32 0.0, %v4436
        %v4438 = vpop.f32.mrf.mxu0
        %4439 = vmatprep.mubr.bf16.mxu0 0
        %4440 = vmatmul.mubr.bf16.gmra.mxu0 %v4355
        %v4441 = vpop.f32.mrf.mxu0
        %v4442 = vadd.f32 0.0, %v4441
        %v4443 = vpop.f32.mrf.mxu0
        %v4444 = vpop.f32.mrf.mxu0
        %v4445 = vadd.f32 0.0, %v4444
        %v4446 = vpop.f32.mrf.mxu0
        %4447 = vmatprep.mubr.bf16.mxu0 0
        %4448 = vmatmul.mubr.bf16.gmra.mxu0 %v4358
        %v4449 = vpop.f32.mrf.mxu0
        %v4450 = vadd.f32 0.0, %v4449
        %v4451 = vpop.f32.mrf.mxu0
        %v4452 = vpop.f32.mrf.mxu0
        %v4453 = vadd.f32 0.0, %v4452
        %v4454 = vpop.f32.mrf.mxu0
        %4455 = vmatprep.mubr.bf16.mxu0 0
        %4456 = vmatmul.mubr.bf16.gmra.mxu0 %v4361
        %v4457 = vpop.f32.mrf.mxu0
        %v4458 = vadd.f32 0.0, %v4457
        %v4459 = vpop.f32.mrf.mxu0
        %v4460 = vpop.f32.mrf.mxu0
        %v4461 = vadd.f32 0.0, %v4460
        %v4462 = vpop.f32.mrf.mxu0
        %4463 = vmatprep.mubr.bf16.mxu0 0
        %4464 = vmatmul.mubr.bf16.gmra.mxu0 %v4364
        %v4465 = vpop.f32.mrf.mxu0
        %v4466 = vadd.f32 0.0, %v4465
        %v4467 = vpop.f32.mrf.mxu0
        %v4468 = vpop.f32.mrf.mxu0
        %v4469 = vadd.f32 0.0, %v4468
        %v4470 = vpop.f32.mrf.mxu0
        %4471 = vmatprep.mubr.bf16.mxu0 0
        %4472 = vmatmul.mubr.bf16.gmra.mxu0 %v4367
        %v4473 = vpop.f32.mrf.mxu0
        %v4474 = vadd.f32 0.0, %v4473
        %v4475 = vpop.f32.mrf.mxu0
        %v4476 = vpop.f32.mrf.mxu0
        %v4477 = vadd.f32 0.0, %v4476
        %v4478 = vpop.f32.mrf.mxu0
        %4479 = vmatprep.mubr.bf16.mxu0 0
        %4480 = vmatmul.mubr.bf16.gmra.mxu0 %v4370
        %v4481 = vpop.f32.mrf.mxu0
        %v4482 = vadd.f32 0.0, %v4481
        %v4483 = vpop.f32.mrf.mxu0
        %v4484 = vpop.f32.mrf.mxu0
        %v4485 = vadd.f32 0.0, %v4484
        %v4486 = vpop.f32.mrf.mxu0
        %4487 = vmatprep.mubr.bf16.mxu0 0
        %4488 = vmatmul.mubr.bf16.gmra.mxu0 %v4373
        %v4489 = vpop.f32.mrf.mxu0
        %v4490 = vadd.f32 0.0, %v4489
        %v4491 = vpop.f32.mrf.mxu0
        %v4492 = vpop.f32.mrf.mxu0
        %v4493 = vadd.f32 0.0, %v4492
        %v4494 = vpop.f32.mrf.mxu0
        %4495 = vmatprep.mubr.bf16.mxu0 0
        %4496 = vmatmul.mubr.bf16.gmra.mxu0 %v4376
        %v4497 = vpop.f32.mrf.mxu0
        %v4498 = vadd.f32 0.0, %v4497
        %v4499 = vpop.f32.mrf.mxu0
        %v4500 = vpop.f32.mrf.mxu0
        %v4501 = vadd.f32 0.0, %v4500
        %v4502 = vpop.f32.mrf.mxu0
        %4503 = vmatprep.mubr.bf16.mxu0 0
        %4504 = vmatmul.mubr.bf16.gmra.mxu0 %v4379
        %v4505 = vpop.f32.mrf.mxu0
        %v4506 = vadd.f32 0.0, %v4505
        %v4507 = vpop.f32.mrf.mxu0
        %v4508 = vpop.f32.mrf.mxu0
        %v4509 = vadd.f32 0.0, %v4508
        %v4510 = vpop.f32.mrf.mxu0
        %4511 = vmatprep.mubr.bf16.mxu0 0
        %4512 = vmatmul.mubr.bf16.gmra.mxu0 %v4382
        %v4513 = vpop.f32.mrf.mxu0
        %v4514 = vadd.f32 0.0, %v4513
        %v4515 = vpop.f32.mrf.mxu0
        %v4516 = vpop.f32.mrf.mxu0
        %v4517 = vadd.f32 0.0, %v4516
        %v4518 = vpop.f32.mrf.mxu0
        %4519 = vmatprep.mubr.bf16.mxu0 0
        %4520 = vmatmul.mubr.bf16.gmra.mxu0 %v4385
        %v4521 = vpop.f32.mrf.mxu0
        %v4522 = vadd.f32 0.0, %v4521
        %v4523 = vpop.f32.mrf.mxu0
        %v4524 = vpop.f32.mrf.mxu0
        %v4525 = vadd.f32 0.0, %v4524
        %v4526 = vpop.f32.mrf.mxu0
        %4527 = vmatprep.mubr.bf16.mxu0 0
        %4528 = vmatmul.mubr.bf16.gmra.mxu0 %v4388
        %v4529 = vpop.f32.mrf.mxu0
        %v4530 = vadd.f32 0.0, %v4529
        %v4531 = vpop.f32.mrf.mxu0
        %v4532 = vpop.f32.mrf.mxu0
        %v4533 = vadd.f32 0.0, %v4532
        %v4534 = vpop.f32.mrf.mxu0
        %4535 = vmatprep.mubr.bf16.mxu0 0
        %4536 = vmatmul.mubr.bf16.gmra.mxu0 %v4391
        %v4537 = vpop.f32.mrf.mxu0
        %v4538 = vadd.f32 0.0, %v4537
        %v4539 = vpop.f32.mrf.mxu0
        %v4540 = vpop.f32.mrf.mxu0
        %v4541 = vadd.f32 0.0, %v4540
        %v4542 = vpop.f32.mrf.mxu0
        %4543 = vmatprep.mubr.bf16.mxu0 0
        %4544 = vmatmul.mubr.bf16.gmra.mxu0 %v4394
        %v4545 = vpop.f32.mrf.mxu0
        %v4546 = vadd.f32 0.0, %v4545
        %v4547 = vpop.f32.mrf.mxu0
        %v4548 = vpop.f32.mrf.mxu0
        %v4549 = vadd.f32 0.0, %v4548
        %v4550 = vpop.f32.mrf.mxu0
        %4551 = vmatprep.mubr.bf16.mxu0 0
        %4552 = vmatmul.mubr.bf16.gmra.mxu0 %v4397
        %v4553 = vpop.f32.mrf.mxu0
        %v4554 = vadd.f32 0.0, %v4553
        %v4555 = vpop.f32.mrf.mxu0
        %v4556 = vpop.f32.mrf.mxu0
        %v4557 = vadd.f32 0.0, %v4556
        %v4558 = vpop.f32.mrf.mxu0
        %4559 = vdwg.mxu0
        %v4560 = vadd.f32 %v4230, %v4434
        %v4561 = vadd.f32 %v4231, %v4437
        %v4562 = vadd.f32 %v4232, %v4442
        %v4563 = vadd.f32 %v4233, %v4445
        %v4564 = vadd.f32 %v4234, %v4450
        %v4565 = vadd.f32 %v4235, %v4453
        %v4566 = vadd.f32 %v4236, %v4458
        %v4567 = vadd.f32 %v4237, %v4461
        %v4568 = vadd.f32 %v4238, %v4466
        %v4569 = vadd.f32 %v4239, %v4469
        %v4570 = vadd.f32 %v4240, %v4474
        %v4571 = vadd.f32 %v4241, %v4477
        %v4572 = vadd.f32 %v4242, %v4482
        %v4573 = vadd.f32 %v4243, %v4485
        %v4574 = vadd.f32 %v4244, %v4490
        %v4575 = vadd.f32 %v4245, %v4493
        %v4576 = vadd.f32 %v4246, %v4498
        %v4577 = vadd.f32 %v4247, %v4501
        %v4578 = vadd.f32 %v4248, %v4506
        %v4579 = vadd.f32 %v4249, %v4509
        %v4580 = vadd.f32 %v4250, %v4514
        %v4581 = vadd.f32 %v4251, %v4517
        %v4582 = vadd.f32 %v4252, %v4522
        %v4583 = vadd.f32 %v4253, %v4525
        %v4584 = vadd.f32 %v4254, %v4530
        %v4585 = vadd.f32 %v4255, %v4533
        %v4586 = vadd.f32 %v4256, %v4538
        %v4587 = vadd.f32 %v4257, %v4541
        %v4588 = vadd.f32 %v4258, %v4546
        %v4589 = vadd.f32 %v4259, %v4549
        %v4590 = vadd.f32 %v4260, %v4554
        %v4591 = vadd.f32 %v4261, %v4557
        %s4592 = scalar_lea.vmem %s3932, 2 [#allocation2]
        %v4593 = vld [vmem:[%s4592] ss:$2 sm:$0xff]
        %s4594 = scalar_lea.vmem %s3932, 50 [#allocation2]
        %v4595 = vld [vmem:[%s4594] ss:$2 sm:$0xff]
        %s4596 = scalar_lea.vmem %s3932, 98 [#allocation2]
        %v4597 = vld [vmem:[%s4596] ss:$2 sm:$0xff]
        %s4598 = scalar_lea.vmem %s3932, 146 [#allocation2]
        %v4599 = vld [vmem:[%s4598] ss:$2 sm:$0xff]
        %s4600 = scalar_lea.vmem %s3932, 194 [#allocation2]
        %v4601 = vld [vmem:[%s4600] ss:$2 sm:$0xff]
        %s4602 = scalar_lea.vmem %s3932, 242 [#allocation2]
        %v4603 = vld [vmem:[%s4602] ss:$2 sm:$0xff]
        %s4604 = scalar_lea.vmem %s3932, 290 [#allocation2]
        %v4605 = vld [vmem:[%s4604] ss:$2 sm:$0xff]
        %s4606 = scalar_lea.vmem %s3932, 338 [#allocation2]
        %v4607 = vld [vmem:[%s4606] ss:$2 sm:$0xff]
        %s4608 = scalar_lea.vmem %s3932, 434 [#allocation2]
        %v4609 = vld [vmem:[%s4608] ss:$2 sm:$0xff]
        %s4610 = scalar_lea.vmem %s3932, 482 [#allocation2]
        %v4611 = vld [vmem:[%s4610] ss:$2 sm:$0xff]
        %s4612 = scalar_lea.vmem %s3932, 530 [#allocation2]
        %v4613 = vld [vmem:[%s4612] ss:$2 sm:$0xff]
        %s4614 = scalar_lea.vmem %s3932, 578 [#allocation2]
        %v4615 = vld [vmem:[%s4614] ss:$2 sm:$0xff]
        %s4616 = scalar_lea.vmem %s3932, 626 [#allocation2]
        %v4617 = vld [vmem:[%s4616] ss:$2 sm:$0xff]
        %s4618 = scalar_lea.vmem %s3932, 674 [#allocation2]
        %v4619 = vld [vmem:[%s4618] ss:$2 sm:$0xff]
        %s4620 = scalar_lea.vmem %s3932, 722 [#allocation2]
        %v4621 = vld [vmem:[%s4620] ss:$2 sm:$0xff]
        %s4622 = scalar_lea.vmem %s3932, 770 [#allocation2]
        %v4623 = vld [vmem:[%s4622] ss:$2 sm:$0xff]
        %s4624 = scalar_lea.vmem %s3932, 866 [#allocation2]
        %v4625 = vld [vmem:[%s4624] ss:$2 sm:$0xff]
        %s4626 = scalar_lea.vmem %s3932, 914 [#allocation2]
        %v4627 = vld [vmem:[%s4626] ss:$2 sm:$0xff]
        %s4628 = scalar_lea.vmem %s3932, 962 [#allocation2]
        %v4629 = vld [vmem:[%s4628] ss:$2 sm:$0xff]
        %s4630 = scalar_lea.vmem %s3932, 1010 [#allocation2]
        %v4631 = vld [vmem:[%s4630] ss:$2 sm:$0xff]
        %s4632 = scalar_lea.vmem %s3932, 1058 [#allocation2]
        %v4633 = vld [vmem:[%s4632] ss:$2 sm:$0xff]
        %s4634 = scalar_lea.vmem %s3932, 1106 [#allocation2]
        %v4635 = vld [vmem:[%s4634] ss:$2 sm:$0xff]
        %s4636 = scalar_lea.vmem %s3932, 1154 [#allocation2]
        %v4637 = vld [vmem:[%s4636] ss:$2 sm:$0xff]
        %s4638 = scalar_lea.vmem %s3932, 1202 [#allocation2]
        %v4639 = vld [vmem:[%s4638] ss:$2 sm:$0xff]
        %s4640 = scalar_lea.vmem %s3932, 1298 [#allocation2]
        %v4641 = vld [vmem:[%s4640] ss:$2 sm:$0xff]
        %s4642 = scalar_lea.vmem %s3932, 1346 [#allocation2]
        %v4643 = vld [vmem:[%s4642] ss:$2 sm:$0xff]
        %s4644 = scalar_lea.vmem %s3932, 1394 [#allocation2]
        %v4645 = vld [vmem:[%s4644] ss:$2 sm:$0xff]
        %s4646 = scalar_lea.vmem %s3932, 1442 [#allocation2]
        %v4647 = vld [vmem:[%s4646] ss:$2 sm:$0xff]
        %s4648 = scalar_lea.vmem %s3932, 1490 [#allocation2]
        %v4649 = vld [vmem:[%s4648] ss:$2 sm:$0xff]
        %s4650 = scalar_lea.vmem %s3932, 1538 [#allocation2]
        %v4651 = vld [vmem:[%s4650] ss:$2 sm:$0xff]
        %s4652 = scalar_lea.vmem %s3932, 1586 [#allocation2]
        %v4653 = vld [vmem:[%s4652] ss:$2 sm:$0xff]
        %s4654 = scalar_lea.vmem %s3932, 1634 [#allocation2]
        %v4655 = vld [vmem:[%s4654] ss:$2 sm:$0xff]
        %v4656 = vpack.c.bf16 %v4595, %v4593
        %v4657 = vpack.c.bf16 %v4599, %v4597
        %v4658 = vpack.c.bf16 %v4603, %v4601
        %v4659 = vpack.c.bf16 %v4607, %v4605
        %v4660 = vpack.c.bf16 %v4611, %v4609
        %v4661 = vpack.c.bf16 %v4615, %v4613
        %v4662 = vpack.c.bf16 %v4619, %v4617
        %v4663 = vpack.c.bf16 %v4623, %v4621
        %v4664 = vpack.c.bf16 %v4627, %v4625
        %v4665 = vpack.c.bf16 %v4631, %v4629
        %v4666 = vpack.c.bf16 %v4635, %v4633
        %v4667 = vpack.c.bf16 %v4639, %v4637
        %v4668 = vpack.c.bf16 %v4643, %v4641
        %v4669 = vpack.c.bf16 %v4647, %v4645
        %v4670 = vpack.c.bf16 %v4651, %v4649
        %v4671 = vpack.c.bf16 %v4655, %v4653
        %s4672 = scalar_lea.vmem %s2, 64
        %v4673 = vld [vmem:[%s4672] sm:$0xf]
        %v4674 = vld [vmem:[%s4672 + $0x4] sm:$0xf]
        %v4677 = vunpack.c.l.b16 %v4673
        %v4678 = vunpack.c.l.b16 %v4674
        %v4679 = vpack.c.b16 %v4678, %v4677
        %v4682 = vsel %vm1718, %v4656, 0
        %v4685 = vsel %vm1718, %v4657, 0
        %v4688 = vsel %vm1718, %v4658, 0
        %v4691 = vsel %vm1718, %v4659, 0
        %v4694 = vsel %vm1718, %v4660, 0
        %v4697 = vsel %vm1718, %v4661, 0
        %v4700 = vsel %vm1718, %v4662, 0
        %v4703 = vsel %vm1718, %v4663, 0
        %v4706 = vsel %vm1718, %v4664, 0
        %v4709 = vsel %vm1718, %v4665, 0
        %v4712 = vsel %vm1718, %v4666, 0
        %v4715 = vsel %vm1718, %v4667, 0
        %v4718 = vsel %vm1718, %v4668, 0
        %v4721 = vsel %vm1718, %v4669, 0
        %v4724 = vsel %vm1718, %v4670, 0
        %v4727 = vsel %vm1718, %v4671, 0
        %4729 = vmatprep.subr.bf16.mxu0 0
        %4730 = vmatpush1.bf16.msra.mxu0 0
        %4731 = vmatprep.subr.bf16.mxu0 0
        %4732 = vmatpush1.bf16.msra.mxu0 0
        %4733 = vmatprep.subr.bf16.mxu0 0
        %4734 = vmatpush1.bf16.msra.mxu0 0
        %4735 = vmatprep.subr.bf16.mxu0 0
        %4736 = vmatpush1.bf16.msra.mxu0 0
        %4737 = vmatprep.subr.bf16.mxu0 0
        %4738 = vmatpush1.bf16.msra.mxu0 0
        %4739 = vmatprep.subr.bf16.mxu0 0
        %4740 = vmatpush1.bf16.msra.mxu0 0
        %4741 = vmatprep.subr.bf16.mxu0 0
        %4742 = vmatpush1.bf16.msra.mxu0 0
        %4743 = vmatprep.subr.bf16.mxu0 0
        %4744 = vmatpush1.bf16.msra.mxu0 %v4679
        %4745 = vmatprep.subr.bf16.mxu0 0
        %4746 = vmatpush2.bf16.msra.mxu0 0
        %4747 = vmatprep.subr.bf16.mxu0 0
        %4748 = vmatpush2.bf16.msra.mxu0 0
        %4749 = vmatprep.subr.bf16.mxu0 0
        %4750 = vmatpush2.bf16.msra.mxu0 0
        %4751 = vmatprep.subr.bf16.mxu0 0
        %4752 = vmatpush2.bf16.msra.mxu0 0
        %4753 = vmatprep.subr.bf16.mxu0 0
        %4754 = vmatpush2.bf16.msra.mxu0 0
        %4755 = vmatprep.subr.bf16.mxu0 0
        %4756 = vmatpush2.bf16.msra.mxu0 0
        %4757 = vmatprep.subr.bf16.mxu0 0
        %4758 = vmatpush2.bf16.msra.mxu0 0
        %4759 = vmatprep.subr.bf16.mxu0 0
        %4760 = vmatpush2.bf16.msra.mxu0 0
        %4761 = vmatprep.mubr.bf16.mxu0 0
        %4762 = vmatmul.mubr.bf16.gmra.mxu0 %v4682
        %v4763 = vpop.f32.mrf.mxu0
        %v4764 = vadd.f32 0.0, %v4763
        %v4765 = vpop.f32.mrf.mxu0
        %v4766 = vpop.f32.mrf.mxu0
        %v4767 = vadd.f32 0.0, %v4766
        %v4768 = vpop.f32.mrf.mxu0
        %4769 = vmatprep.mubr.bf16.mxu0 0
        %4770 = vmatmul.mubr.bf16.gmra.mxu0 %v4685
        %v4771 = vpop.f32.mrf.mxu0
        %v4772 = vadd.f32 0.0, %v4771
        %v4773 = vpop.f32.mrf.mxu0
        %v4774 = vpop.f32.mrf.mxu0
        %v4775 = vadd.f32 0.0, %v4774
        %v4776 = vpop.f32.mrf.mxu0
        %4777 = vmatprep.mubr.bf16.mxu0 0
        %4778 = vmatmul.mubr.bf16.gmra.mxu0 %v4688
        %v4779 = vpop.f32.mrf.mxu0
        %v4780 = vadd.f32 0.0, %v4779
        %v4781 = vpop.f32.mrf.mxu0
        %v4782 = vpop.f32.mrf.mxu0
        %v4783 = vadd.f32 0.0, %v4782
        %v4784 = vpop.f32.mrf.mxu0
        %4785 = vmatprep.mubr.bf16.mxu0 0
        %4786 = vmatmul.mubr.bf16.gmra.mxu0 %v4691
        %v4787 = vpop.f32.mrf.mxu0
        %v4788 = vadd.f32 0.0, %v4787
        %v4789 = vpop.f32.mrf.mxu0
        %v4790 = vpop.f32.mrf.mxu0
        %v4791 = vadd.f32 0.0, %v4790
        %v4792 = vpop.f32.mrf.mxu0
        %4793 = vmatprep.mubr.bf16.mxu0 0
        %4794 = vmatmul.mubr.bf16.gmra.mxu0 %v4694
        %v4795 = vpop.f32.mrf.mxu0
        %v4796 = vadd.f32 0.0, %v4795
        %v4797 = vpop.f32.mrf.mxu0
        %v4798 = vpop.f32.mrf.mxu0
        %v4799 = vadd.f32 0.0, %v4798
        %v4800 = vpop.f32.mrf.mxu0
        %4801 = vmatprep.mubr.bf16.mxu0 0
        %4802 = vmatmul.mubr.bf16.gmra.mxu0 %v4697
        %v4803 = vpop.f32.mrf.mxu0
        %v4804 = vadd.f32 0.0, %v4803
        %v4805 = vpop.f32.mrf.mxu0
        %v4806 = vpop.f32.mrf.mxu0
        %v4807 = vadd.f32 0.0, %v4806
        %v4808 = vpop.f32.mrf.mxu0
        %4809 = vmatprep.mubr.bf16.mxu0 0
        %4810 = vmatmul.mubr.bf16.gmra.mxu0 %v4700
        %v4811 = vpop.f32.mrf.mxu0
        %v4812 = vadd.f32 0.0, %v4811
        %v4813 = vpop.f32.mrf.mxu0
        %v4814 = vpop.f32.mrf.mxu0
        %v4815 = vadd.f32 0.0, %v4814
        %v4816 = vpop.f32.mrf.mxu0
        %4817 = vmatprep.mubr.bf16.mxu0 0
        %4818 = vmatmul.mubr.bf16.gmra.mxu0 %v4703
        %v4819 = vpop.f32.mrf.mxu0
        %v4820 = vadd.f32 0.0, %v4819
        %v4821 = vpop.f32.mrf.mxu0
        %v4822 = vpop.f32.mrf.mxu0
        %v4823 = vadd.f32 0.0, %v4822
        %v4824 = vpop.f32.mrf.mxu0
        %4825 = vmatprep.mubr.bf16.mxu0 0
        %4826 = vmatmul.mubr.bf16.gmra.mxu0 %v4706
        %v4827 = vpop.f32.mrf.mxu0
        %v4828 = vadd.f32 0.0, %v4827
        %v4829 = vpop.f32.mrf.mxu0
        %v4830 = vpop.f32.mrf.mxu0
        %v4831 = vadd.f32 0.0, %v4830
        %v4832 = vpop.f32.mrf.mxu0
        %4833 = vmatprep.mubr.bf16.mxu0 0
        %4834 = vmatmul.mubr.bf16.gmra.mxu0 %v4709
        %v4835 = vpop.f32.mrf.mxu0
        %v4836 = vadd.f32 0.0, %v4835
        %v4837 = vpop.f32.mrf.mxu0
        %v4838 = vpop.f32.mrf.mxu0
        %v4839 = vadd.f32 0.0, %v4838
        %v4840 = vpop.f32.mrf.mxu0
        %4841 = vmatprep.mubr.bf16.mxu0 0
        %4842 = vmatmul.mubr.bf16.gmra.mxu0 %v4712
        %v4843 = vpop.f32.mrf.mxu0
        %v4844 = vadd.f32 0.0, %v4843
        %v4845 = vpop.f32.mrf.mxu0
        %v4846 = vpop.f32.mrf.mxu0
        %v4847 = vadd.f32 0.0, %v4846
        %v4848 = vpop.f32.mrf.mxu0
        %4849 = vmatprep.mubr.bf16.mxu0 0
        %4850 = vmatmul.mubr.bf16.gmra.mxu0 %v4715
        %v4851 = vpop.f32.mrf.mxu0
        %v4852 = vadd.f32 0.0, %v4851
        %v4853 = vpop.f32.mrf.mxu0
        %v4854 = vpop.f32.mrf.mxu0
        %v4855 = vadd.f32 0.0, %v4854
        %v4856 = vpop.f32.mrf.mxu0
        %4857 = vmatprep.mubr.bf16.mxu0 0
        %4858 = vmatmul.mubr.bf16.gmra.mxu0 %v4718
        %v4859 = vpop.f32.mrf.mxu0
        %v4860 = vadd.f32 0.0, %v4859
        %v4861 = vpop.f32.mrf.mxu0
        %v4862 = vpop.f32.mrf.mxu0
        %v4863 = vadd.f32 0.0, %v4862
        %v4864 = vpop.f32.mrf.mxu0
        %4865 = vmatprep.mubr.bf16.mxu0 0
        %4866 = vmatmul.mubr.bf16.gmra.mxu0 %v4721
        %v4867 = vpop.f32.mrf.mxu0
        %v4868 = vadd.f32 0.0, %v4867
        %v4869 = vpop.f32.mrf.mxu0
        %v4870 = vpop.f32.mrf.mxu0
        %v4871 = vadd.f32 0.0, %v4870
        %v4872 = vpop.f32.mrf.mxu0
        %4873 = vmatprep.mubr.bf16.mxu0 0
        %4874 = vmatmul.mubr.bf16.gmra.mxu0 %v4724
        %v4875 = vpop.f32.mrf.mxu0
        %v4876 = vadd.f32 0.0, %v4875
        %v4877 = vpop.f32.mrf.mxu0
        %v4878 = vpop.f32.mrf.mxu0
        %v4879 = vadd.f32 0.0, %v4878
        %v4880 = vpop.f32.mrf.mxu0
        %4881 = vmatprep.mubr.bf16.mxu0 0
        %4882 = vmatmul.mubr.bf16.gmra.mxu0 %v4727
        %v4883 = vpop.f32.mrf.mxu0
        %v4884 = vadd.f32 0.0, %v4883
        %v4885 = vpop.f32.mrf.mxu0
        %v4886 = vpop.f32.mrf.mxu0
        %v4887 = vadd.f32 0.0, %v4886
        %v4888 = vpop.f32.mrf.mxu0
        %4889 = vdwg.mxu0
        %v4890 = vadd.f32 %v4560, %v4764
        %v4891 = vadd.f32 %v4561, %v4767
        %v4892 = vadd.f32 %v4562, %v4772
        %v4893 = vadd.f32 %v4563, %v4775
        %v4894 = vadd.f32 %v4564, %v4780
        %v4895 = vadd.f32 %v4565, %v4783
        %v4896 = vadd.f32 %v4566, %v4788
        %v4897 = vadd.f32 %v4567, %v4791
        %v4898 = vadd.f32 %v4568, %v4796
        %v4899 = vadd.f32 %v4569, %v4799
        %v4900 = vadd.f32 %v4570, %v4804
        %v4901 = vadd.f32 %v4571, %v4807
        %v4902 = vadd.f32 %v4572, %v4812
        %v4903 = vadd.f32 %v4573, %v4815
        %v4904 = vadd.f32 %v4574, %v4820
        %v4905 = vadd.f32 %v4575, %v4823
        %v4906 = vadd.f32 %v4576, %v4828
        %v4907 = vadd.f32 %v4577, %v4831
        %v4908 = vadd.f32 %v4578, %v4836
        %v4909 = vadd.f32 %v4579, %v4839
        %v4910 = vadd.f32 %v4580, %v4844
        %v4911 = vadd.f32 %v4581, %v4847
        %v4912 = vadd.f32 %v4582, %v4852
        %v4913 = vadd.f32 %v4583, %v4855
        %v4914 = vadd.f32 %v4584, %v4860
        %v4915 = vadd.f32 %v4585, %v4863
        %v4916 = vadd.f32 %v4586, %v4868
        %v4917 = vadd.f32 %v4587, %v4871
        %v4918 = vadd.f32 %v4588, %v4876
        %v4919 = vadd.f32 %v4589, %v4879
        %v4920 = vadd.f32 %v4590, %v4884
        %v4921 = vadd.f32 %v4591, %v4887
        %v4922 = vld [vmem:[%s5] sm:$0x1]
        %v4924 = vlaneseq
        %v4925 = vshrl.u32 %v4924, 7
        %v4926 = vsub.s32 0, %v4925
        %v4927 = vrot.slane %v4922, %v4926
        %v4929 = vadd.f32 %v4890, %v4927
        %v4930 = vadd.f32 %v4891, %v4927
        %v4931 = vadd.f32 %v4892, %v4927
        %v4932 = vadd.f32 %v4893, %v4927
        %v4933 = vadd.f32 %v4894, %v4927
        %v4934 = vadd.f32 %v4895, %v4927
        %v4935 = vadd.f32 %v4896, %v4927
        %v4936 = vadd.f32 %v4897, %v4927
        %v4937 = vadd.f32 %v4898, %v4927
        %v4938 = vadd.f32 %v4899, %v4927
        %v4939 = vadd.f32 %v4900, %v4927
        %v4940 = vadd.f32 %v4901, %v4927
        %v4941 = vadd.f32 %v4902, %v4927
        %v4942 = vadd.f32 %v4903, %v4927
        %v4943 = vadd.f32 %v4904, %v4927
        %v4944 = vadd.f32 %v4905, %v4927
        %v4945 = vadd.f32 %v4906, %v4927
        %v4946 = vadd.f32 %v4907, %v4927
        %v4947 = vadd.f32 %v4908, %v4927
        %v4948 = vadd.f32 %v4909, %v4927
        %v4949 = vadd.f32 %v4910, %v4927
        %v4950 = vadd.f32 %v4911, %v4927
        %v4951 = vadd.f32 %v4912, %v4927
        %v4952 = vadd.f32 %v4913, %v4927
        %v4953 = vadd.f32 %v4914, %v4927
        %v4954 = vadd.f32 %v4915, %v4927
        %v4955 = vadd.f32 %v4916, %v4927
        %v4956 = vadd.f32 %v4917, %v4927
        %v4957 = vadd.f32 %v4918, %v4927
        %v4958 = vadd.f32 %v4919, %v4927
        %v4959 = vadd.f32 %v4920, %v4927
        %v4960 = vadd.f32 %v4921, %v4927
        %v4961 = vmax.f32 %v4929, 0.0
        %v4962 = vmax.f32 %v4930, 0.0
        %v4963 = vmax.f32 %v4931, 0.0
        %v4964 = vmax.f32 %v4932, 0.0
        %v4965 = vmax.f32 %v4933, 0.0
        %v4966 = vmax.f32 %v4934, 0.0
        %v4967 = vmax.f32 %v4935, 0.0
        %v4968 = vmax.f32 %v4936, 0.0
        %v4969 = vmax.f32 %v4937, 0.0
        %v4970 = vmax.f32 %v4938, 0.0
        %v4971 = vmax.f32 %v4939, 0.0
        %v4972 = vmax.f32 %v4940, 0.0
        %v4973 = vmax.f32 %v4941, 0.0
        %v4974 = vmax.f32 %v4942, 0.0
        %v4975 = vmax.f32 %v4943, 0.0
        %v4976 = vmax.f32 %v4944, 0.0
        %v4977 = vmax.f32 %v4945, 0.0
        %v4978 = vmax.f32 %v4946, 0.0
        %v4979 = vmax.f32 %v4947, 0.0
        %v4980 = vmax.f32 %v4948, 0.0
        %v4981 = vmax.f32 %v4949, 0.0
        %v4982 = vmax.f32 %v4950, 0.0
        %v4983 = vmax.f32 %v4951, 0.0
        %v4984 = vmax.f32 %v4952, 0.0
        %v4985 = vmax.f32 %v4953, 0.0
        %v4986 = vmax.f32 %v4954, 0.0
        %v4987 = vmax.f32 %v4955, 0.0
        %v4988 = vmax.f32 %v4956, 0.0
        %v4989 = vmax.f32 %v4957, 0.0
        %v4990 = vmax.f32 %v4958, 0.0
        %v4991 = vmax.f32 %v4959, 0.0
        %v4992 = vmax.f32 %v4960, 0.0
        %v4993 = vsel %vm1718, %v4961, 0.0
        %v4994 = vsel %vm1718, %v4962, 0.0
        %v4995 = vadd.f32 %v4993, %v4994
        %v4996 = vsel %vm1718, %v4963, 0.0
        %v4997 = vadd.f32 %v4995, %v4996
        %v4998 = vsel %vm1718, %v4964, 0.0
        %v4999 = vadd.f32 %v4997, %v4998
        %v5000 = vsel %vm1718, %v4965, 0.0
        %v5001 = vadd.f32 %v4999, %v5000
        %v5002 = vsel %vm1718, %v4966, 0.0
        %v5003 = vadd.f32 %v5001, %v5002
        %v5004 = vsel %vm1718, %v4967, 0.0
        %v5005 = vadd.f32 %v5003, %v5004
        %v5006 = vsel %vm1718, %v4968, 0.0
        %v5007 = vadd.f32 %v5005, %v5006
        %v5008 = vrot.slane %v5007, 4
        %v5009 = vadd.f32 %v5007, %v5008
        %v5010 = vrot.slane %v5009, 2
        %v5011 = vadd.f32 %v5009, %v5010
        %v5012 = vrot.slane %v5011, 1
        %v5013 = vadd.f32 %v5011, %v5012
        %v5014 = vsel %vm1718, %v4969, 0.0
        %v5015 = vsel %vm1718, %v4970, 0.0
        %v5016 = vadd.f32 %v5014, %v5015
        %v5017 = vsel %vm1718, %v4971, 0.0
        %v5018 = vadd.f32 %v5016, %v5017
        %v5019 = vsel %vm1718, %v4972, 0.0
        %v5020 = vadd.f32 %v5018, %v5019
        %v5021 = vsel %vm1718, %v4973, 0.0
        %v5022 = vadd.f32 %v5020, %v5021
        %v5023 = vsel %vm1718, %v4974, 0.0
        %v5024 = vadd.f32 %v5022, %v5023
        %v5025 = vsel %vm1718, %v4975, 0.0
        %v5026 = vadd.f32 %v5024, %v5025
        %v5027 = vsel %vm1718, %v4976, 0.0
        %v5028 = vadd.f32 %v5026, %v5027
        %v5029 = vrot.slane %v5028, 4
        %v5030 = vadd.f32 %v5028, %v5029
        %v5031 = vrot.slane %v5030, 2
        %v5032 = vadd.f32 %v5030, %v5031
        %v5033 = vrot.slane %v5032, 1
        %v5034 = vadd.f32 %v5032, %v5033
        %v5035 = vsel %vm1718, %v4977, 0.0
        %v5036 = vsel %vm1718, %v4978, 0.0
        %v5037 = vadd.f32 %v5035, %v5036
        %v5038 = vsel %vm1718, %v4979, 0.0
        %v5039 = vadd.f32 %v5037, %v5038
        %v5040 = vsel %vm1718, %v4980, 0.0
        %v5041 = vadd.f32 %v5039, %v5040
        %v5042 = vsel %vm1718, %v4981, 0.0
        %v5043 = vadd.f32 %v5041, %v5042
        %v5044 = vsel %vm1718, %v4982, 0.0
        %v5045 = vadd.f32 %v5043, %v5044
        %v5046 = vsel %vm1718, %v4983, 0.0
        %v5047 = vadd.f32 %v5045, %v5046
        %v5048 = vsel %vm1718, %v4984, 0.0
        %v5049 = vadd.f32 %v5047, %v5048
        %v5050 = vrot.slane %v5049, 4
        %v5051 = vadd.f32 %v5049, %v5050
        %v5052 = vrot.slane %v5051, 2
        %v5053 = vadd.f32 %v5051, %v5052
        %v5054 = vrot.slane %v5053, 1
        %v5055 = vadd.f32 %v5053, %v5054
        %v5056 = vsel %vm1718, %v4985, 0.0
        %v5057 = vsel %vm1718, %v4986, 0.0
        %v5058 = vadd.f32 %v5056, %v5057
        %v5059 = vsel %vm1718, %v4987, 0.0
        %v5060 = vadd.f32 %v5058, %v5059
        %v5061 = vsel %vm1718, %v4988, 0.0
        %v5062 = vadd.f32 %v5060, %v5061
        %v5063 = vsel %vm1718, %v4989, 0.0
        %v5064 = vadd.f32 %v5062, %v5063
        %v5065 = vsel %vm1718, %v4990, 0.0
        %v5066 = vadd.f32 %v5064, %v5065
        %v5067 = vsel %vm1718, %v4991, 0.0
        %v5068 = vadd.f32 %v5066, %v5067
        %v5069 = vsel %vm1718, %v4992, 0.0
        %v5070 = vadd.f32 %v5068, %v5069
        %v5071 = vrot.slane %v5070, 4
        %v5072 = vadd.f32 %v5070, %v5071
        %v5073 = vrot.slane %v5072, 2
        %v5074 = vadd.f32 %v5072, %v5073
        %v5075 = vrot.slane %v5074, 1
        %v5076 = vadd.f32 %v5074, %v5075
        %v5077 = vrcp.pop 64.0
        %v5078 = vmul.f32 %v5013, %v5077
        %v5079 = vmul.f32 %v5034, %v5077
        %v5080 = vmul.f32 %v5055, %v5077
        %v5081 = vmul.f32 %v5076, %v5077
        %v5082 = vld [vmem:[%s7] sm:$0x3]
        %v5083 = vmul.f32 %v5078, %v5082
        %v5084 = vmul.f32 %v5079, %v5082
        %v5085 = vmul.f32 %v5080, %v5082
        %v5086 = vmul.f32 %v5081, %v5082
        %v5087 = vsel %vm1721, %v5083, 0.0
        %5088 = vadd.xlane.f32.xlu0 %v5087
        %v5089 = vpop.xlane.xlu0 %5088
        %v5090 = vsel %vm1721, %v5084, 0.0
        %5091 = vadd.xlane.f32.xlu0 %v5090
        %v5092 = vpop.xlane.xlu0 %5091
        %v5093 = vsel %vm1721, %v5085, 0.0
        %5094 = vadd.xlane.f32.xlu0 %v5093
        %v5095 = vpop.xlane.xlu0 %5094
        %v5096 = vsel %vm1721, %v5086, 0.0
        %5097 = vadd.xlane.f32.xlu0 %v5096
        %v5098 = vpop.xlane.xlu0 %5097
        %v5099 = vld [vmem:[%s8] sm:$0x1]
        %v5101 = vlaneseq
        %v5102 = vshrl.u32 %v5101, 7
        %v5103 = vsub.s32 0, %v5102
        %v5104 = vrot.slane %v5099, %v5103
        %5106 = vbcast.lane.b32.xlu0 %v5104, 256
        %v5107 = vpop.permute.xlu0 %5106
        %v5109 = vadd.f32 %v5089, %v5107
        %v5110 = vadd.f32 %v5092, %v5107
        %v5111 = vadd.f32 %v5095, %v5107
        %v5112 = vadd.f32 %v5098, %v5107
        %v5113 = vmax.f32 %v5109, 0.0
        %v5114 = vmax.f32 %v5110, 0.0
        %v5115 = vmax.f32 %v5111, 0.0
        %v5116 = vmax.f32 %v5112, 0.0
        %v5117 = vld [vmem:[%s9] sm:$0x3]
        %5119 = vset.pattern.permute.xlu0 0
        %5120 = vperm.xlu0 %5119, %v5113
        %v5121 = vpop.permute.xlu0 %5120
        %5124 = vset.pattern.permute.xlu0 0
        %5125 = vperm.xlu0 %5124, %v5114
        %v5126 = vpop.permute.xlu0 %5125
        %5129 = vset.pattern.permute.xlu0 0
        %5130 = vperm.xlu0 %5129, %v5115
        %v5131 = vpop.permute.xlu0 %5130
        %5134 = vset.pattern.permute.xlu0 0
        %5135 = vperm.xlu0 %5134, %v5116
        %v5136 = vpop.permute.xlu0 %5135
        %v5138 = vmul.f32 %v5121, %v5117
        %v5139 = vmul.f32 %v5126, %v5117
        %v5140 = vmul.f32 %v5131, %v5117
        %v5141 = vmul.f32 %v5136, %v5117
        %v5142 = vsel %vm1721, %v5138, 0.0
        %v5143 = vrot.slane %v5142, 4
        %v5144 = vadd.f32 %v5142, %v5143
        %v5145 = vrot.slane %v5144, 2
        %v5146 = vadd.f32 %v5144, %v5145
        %v5147 = vrot.slane %v5146, 1
        %v5148 = vadd.f32 %v5146, %v5147
        %v5149 = vsel %vm1721, %v5139, 0.0
        %v5150 = vrot.slane %v5149, 4
        %v5151 = vadd.f32 %v5149, %v5150
        %v5152 = vrot.slane %v5151, 2
        %v5153 = vadd.f32 %v5151, %v5152
        %v5154 = vrot.slane %v5153, 1
        %v5155 = vadd.f32 %v5153, %v5154
        %v5156 = vsel %vm1721, %v5140, 0.0
        %v5157 = vrot.slane %v5156, 4
        %v5158 = vadd.f32 %v5156, %v5157
        %v5159 = vrot.slane %v5158, 2
        %v5160 = vadd.f32 %v5158, %v5159
        %v5161 = vrot.slane %v5160, 1
        %v5162 = vadd.f32 %v5160, %v5161
        %v5163 = vsel %vm1721, %v5141, 0.0
        %v5164 = vrot.slane %v5163, 4
        %v5165 = vadd.f32 %v5163, %v5164
        %v5166 = vrot.slane %v5165, 2
        %v5167 = vadd.f32 %v5165, %v5166
        %v5168 = vrot.slane %v5167, 1
        %v5169 = vadd.f32 %v5167, %v5168
        %v5170 = vld [vmem:[%s10] sm:$0x1]
        %v5172 = vlaneseq
        %v5173 = vshrl.u32 %v5172, 7
        %v5174 = vsub.s32 0, %v5173
        %v5175 = vrot.slane %v5170, %v5174
        %v5177 = vadd.f32 %v5148, %v5175
        %v5178 = vadd.f32 %v5155, %v5175
        %v5179 = vadd.f32 %v5162, %v5175
        %v5180 = vadd.f32 %v5169, %v5175
        %v5181 = vsub.f32 0.0, %v5177
        %v5182 = vsub.f32 0.0, %v5178
        %v5183 = vsub.f32 0.0, %v5179
        %v5184 = vsub.f32 0.0, %v5180
        %v5185 = vmul.f32 %v5181, 1.442695
        %v5186 = vpow.pop %v5185
        %v5187 = vmul.f32 %v5182, 1.442695
        %v5188 = vpow.pop %v5187
        %v5189 = vmul.f32 %v5183, 1.442695
        %v5190 = vpow.pop %v5189
        %v5191 = vmul.f32 %v5184, 1.442695
        %v5192 = vpow.pop %v5191
        %v5193 = vadd.f32 %v5186, 1.0
        %v5194 = vadd.f32 %v5188, 1.0
        %v5195 = vadd.f32 %v5190, 1.0
        %v5196 = vadd.f32 %v5192, 1.0
        %v5197 = vrcp.pop %v5193
        %v5198 = vmul.f32 1.0, %v5197
        %v5199 = vrcp.pop %v5194
        %v5200 = vmul.f32 1.0, %v5199
        %v5201 = vrcp.pop %v5195
        %v5202 = vmul.f32 1.0, %v5201
        %v5203 = vrcp.pop %v5196
        %v5204 = vmul.f32 1.0, %v5203
        %v5205 = vlaneseq
        %v5206 = vshrl.u32 %v5205, 7
        %v5207 = vsub.s32 0, %v5206
        %v5208 = vrot.slane %v5198, %v5207
        %v5209 = vlaneseq
        %v5210 = vshrl.u32 %v5209, 7
        %v5211 = vsub.s32 0, %v5210
        %v5212 = vrot.slane %v5200, %v5211
        %v5213 = vlaneseq
        %v5214 = vshrl.u32 %v5213, 7
        %v5215 = vsub.s32 0, %v5214
        %v5216 = vrot.slane %v5202, %v5215
        %v5217 = vlaneseq
        %v5218 = vshrl.u32 %v5217, 7
        %v5219 = vsub.s32 0, %v5218
        %v5220 = vrot.slane %v5204, %v5219
        %v5221 = vmul.f32 %v4961, %v5208
        %v5222 = vmul.f32 %v4962, %v5208
        %v5223 = vmul.f32 %v4963, %v5208
        %v5224 = vmul.f32 %v4964, %v5208
        %v5225 = vmul.f32 %v4965, %v5208
        %v5226 = vmul.f32 %v4966, %v5208
        %v5227 = vmul.f32 %v4967, %v5208
        %v5228 = vmul.f32 %v4968, %v5208
        %v5229 = vmul.f32 %v4969, %v5212
        %v5230 = vmul.f32 %v4970, %v5212
        %v5231 = vmul.f32 %v4971, %v5212
        %v5232 = vmul.f32 %v4972, %v5212
        %v5233 = vmul.f32 %v4973, %v5212
        %v5234 = vmul.f32 %v4974, %v5212
        %v5235 = vmul.f32 %v4975, %v5212
        %v5236 = vmul.f32 %v4976, %v5212
        %v5237 = vmul.f32 %v4977, %v5216
        %v5238 = vmul.f32 %v4978, %v5216
        %v5239 = vmul.f32 %v4979, %v5216
        %v5240 = vmul.f32 %v4980, %v5216
        %v5241 = vmul.f32 %v4981, %v5216
        %v5242 = vmul.f32 %v4982, %v5216
        %v5243 = vmul.f32 %v4983, %v5216
        %v5244 = vmul.f32 %v4984, %v5216
        %v5245 = vmul.f32 %v4985, %v5220
        %v5246 = vmul.f32 %v4986, %v5220
        %v5247 = vmul.f32 %v4987, %v5220
        %v5248 = vmul.f32 %v4988, %v5220
        %v5249 = vmul.f32 %v4989, %v5220
        %v5250 = vmul.f32 %v4990, %v5220
        %v5251 = vmul.f32 %v4991, %v5220
        %v5252 = vmul.f32 %v4992, %v5220
        %v5253 = vpack.c.bf16 %v5222, %v5221
        %v5254 = vpack.c.bf16 %v5224, %v5223
        %v5255 = vpack.c.bf16 %v5226, %v5225
        %v5256 = vpack.c.bf16 %v5228, %v5227
        %v5257 = vpack.c.bf16 %v5230, %v5229
        %v5258 = vpack.c.bf16 %v5232, %v5231
        %v5259 = vpack.c.bf16 %v5234, %v5233
        %v5260 = vpack.c.bf16 %v5236, %v5235
        %v5261 = vpack.c.bf16 %v5238, %v5237
        %v5262 = vpack.c.bf16 %v5240, %v5239
        %v5263 = vpack.c.bf16 %v5242, %v5241
        %v5264 = vpack.c.bf16 %v5244, %v5243
        %v5265 = vpack.c.bf16 %v5246, %v5245
        %v5266 = vpack.c.bf16 %v5248, %v5247
        %v5267 = vpack.c.bf16 %v5250, %v5249
        %v5268 = vpack.c.bf16 %v5252, %v5251
        %v5269 = vld [vmem:[%s3] sm:$0xf]
        %v5270 = vld [vmem:[%s3 + $0x4] sm:$0xf]
        %v5271 = vld [vmem:[%s6] sm:$0x1]
        %v5273 = vlaneseq
        %v5274 = vshrl.u32 %v5273, 7
        %v5275 = vsub.s32 0, %v5274
        %v5276 = vrot.slane %v5271, %v5275
        %v5280 = vunpack.c.l.b16 %v5269
        %v5281 = vunpack.c.l.b16 %v5270
        %v5282 = vpack.c.b16 %v5281, %v5280
        %v5285 = vsel %vm1718, %v5253, 0
        %v5288 = vsel %vm1718, %v5254, 0
        %v5291 = vsel %vm1718, %v5255, 0
        %v5294 = vsel %vm1718, %v5256, 0
        %v5297 = vsel %vm1718, %v5257, 0
        %v5300 = vsel %vm1718, %v5258, 0
        %v5303 = vsel %vm1718, %v5259, 0
        %v5306 = vsel %vm1718, %v5260, 0
        %v5309 = vsel %vm1718, %v5261, 0
        %v5312 = vsel %vm1718, %v5262, 0
        %v5315 = vsel %vm1718, %v5263, 0
        %v5318 = vsel %vm1718, %v5264, 0
        %v5321 = vsel %vm1718, %v5265, 0
        %v5324 = vsel %vm1718, %v5266, 0
        %v5327 = vsel %vm1718, %v5267, 0
        %v5330 = vsel %vm1718, %v5268, 0
        %5332 = vmatprep.subr.bf16.mxu0 0
        %5333 = vmatpush1.bf16.msra.mxu0 0
        %5334 = vmatprep.subr.bf16.mxu0 0
        %5335 = vmatpush1.bf16.msra.mxu0 0
        %5336 = vmatprep.subr.bf16.mxu0 0
        %5337 = vmatpush1.bf16.msra.mxu0 0
        %5338 = vmatprep.subr.bf16.mxu0 0
        %5339 = vmatpush1.bf16.msra.mxu0 0
        %5340 = vmatprep.subr.bf16.mxu0 0
        %5341 = vmatpush1.bf16.msra.mxu0 0
        %5342 = vmatprep.subr.bf16.mxu0 0
        %5343 = vmatpush1.bf16.msra.mxu0 0
        %5344 = vmatprep.subr.bf16.mxu0 0
        %5345 = vmatpush1.bf16.msra.mxu0 0
        %5346 = vmatprep.subr.bf16.mxu0 0
        %5347 = vmatpush1.bf16.msra.mxu0 %v5282
        %5348 = vmatprep.subr.bf16.mxu0 0
        %5349 = vmatpush2.bf16.msra.mxu0 0
        %5350 = vmatprep.subr.bf16.mxu0 0
        %5351 = vmatpush2.bf16.msra.mxu0 0
        %5352 = vmatprep.subr.bf16.mxu0 0
        %5353 = vmatpush2.bf16.msra.mxu0 0
        %5354 = vmatprep.subr.bf16.mxu0 0
        %5355 = vmatpush2.bf16.msra.mxu0 0
        %5356 = vmatprep.subr.bf16.mxu0 0
        %5357 = vmatpush2.bf16.msra.mxu0 0
        %5358 = vmatprep.subr.bf16.mxu0 0
        %5359 = vmatpush2.bf16.msra.mxu0 0
        %5360 = vmatprep.subr.bf16.mxu0 0
        %5361 = vmatpush2.bf16.msra.mxu0 0
        %5362 = vmatprep.subr.bf16.mxu0 0
        %5363 = vmatpush2.bf16.msra.mxu0 0
        %5364 = vmatprep.mubr.bf16.mxu0 0
        %5365 = vmatmul.mubr.bf16.gmra.mxu0 %v5285
        %v5366 = vpop.f32.mrf.mxu0
        %v5367 = vadd.f32 %v5276, %v5366
        %v5368 = vpop.f32.mrf.mxu0
        %v5369 = vpop.f32.mrf.mxu0
        %v5370 = vadd.f32 %v5276, %v5369
        %v5371 = vpop.f32.mrf.mxu0
        %5372 = vmatprep.mubr.bf16.mxu0 0
        %5373 = vmatmul.mubr.bf16.gmra.mxu0 %v5288
        %v5374 = vpop.f32.mrf.mxu0
        %v5375 = vadd.f32 %v5276, %v5374
        %v5376 = vpop.f32.mrf.mxu0
        %v5377 = vpop.f32.mrf.mxu0
        %v5378 = vadd.f32 %v5276, %v5377
        %v5379 = vpop.f32.mrf.mxu0
        %5380 = vmatprep.mubr.bf16.mxu0 0
        %5381 = vmatmul.mubr.bf16.gmra.mxu0 %v5291
        %v5382 = vpop.f32.mrf.mxu0
        %v5383 = vadd.f32 %v5276, %v5382
        %v5384 = vpop.f32.mrf.mxu0
        %v5385 = vpop.f32.mrf.mxu0
        %v5386 = vadd.f32 %v5276, %v5385
        %v5387 = vpop.f32.mrf.mxu0
        %5388 = vmatprep.mubr.bf16.mxu0 0
        %5389 = vmatmul.mubr.bf16.gmra.mxu0 %v5294
        %v5390 = vpop.f32.mrf.mxu0
        %v5391 = vadd.f32 %v5276, %v5390
        %v5392 = vpop.f32.mrf.mxu0
        %v5393 = vpop.f32.mrf.mxu0
        %v5394 = vadd.f32 %v5276, %v5393
        %v5395 = vpop.f32.mrf.mxu0
        %5396 = vmatprep.mubr.bf16.mxu0 0
        %5397 = vmatmul.mubr.bf16.gmra.mxu0 %v5297
        %v5398 = vpop.f32.mrf.mxu0
        %v5399 = vadd.f32 %v5276, %v5398
        %v5400 = vpop.f32.mrf.mxu0
        %v5401 = vpop.f32.mrf.mxu0
        %v5402 = vadd.f32 %v5276, %v5401
        %v5403 = vpop.f32.mrf.mxu0
        %5404 = vmatprep.mubr.bf16.mxu0 0
        %5405 = vmatmul.mubr.bf16.gmra.mxu0 %v5300
        %v5406 = vpop.f32.mrf.mxu0
        %v5407 = vadd.f32 %v5276, %v5406
        %v5408 = vpop.f32.mrf.mxu0
        %v5409 = vpop.f32.mrf.mxu0
        %v5410 = vadd.f32 %v5276, %v5409
        %v5411 = vpop.f32.mrf.mxu0
        %5412 = vmatprep.mubr.bf16.mxu0 0
        %5413 = vmatmul.mubr.bf16.gmra.mxu0 %v5303
        %v5414 = vpop.f32.mrf.mxu0
        %v5415 = vadd.f32 %v5276, %v5414
        %v5416 = vpop.f32.mrf.mxu0
        %v5417 = vpop.f32.mrf.mxu0
        %v5418 = vadd.f32 %v5276, %v5417
        %v5419 = vpop.f32.mrf.mxu0
        %5420 = vmatprep.mubr.bf16.mxu0 0
        %5421 = vmatmul.mubr.bf16.gmra.mxu0 %v5306
        %v5422 = vpop.f32.mrf.mxu0
        %v5423 = vadd.f32 %v5276, %v5422
        %v5424 = vpop.f32.mrf.mxu0
        %v5425 = vpop.f32.mrf.mxu0
        %v5426 = vadd.f32 %v5276, %v5425
        %v5427 = vpop.f32.mrf.mxu0
        %5428 = vmatprep.mubr.bf16.mxu0 0
        %5429 = vmatmul.mubr.bf16.gmra.mxu0 %v5309
        %v5430 = vpop.f32.mrf.mxu0
        %v5431 = vadd.f32 %v5276, %v5430
        %v5432 = vpop.f32.mrf.mxu0
        %v5433 = vpop.f32.mrf.mxu0
        %v5434 = vadd.f32 %v5276, %v5433
        %v5435 = vpop.f32.mrf.mxu0
        %5436 = vmatprep.mubr.bf16.mxu0 0
        %5437 = vmatmul.mubr.bf16.gmra.mxu0 %v5312
        %v5438 = vpop.f32.mrf.mxu0
        %v5439 = vadd.f32 %v5276, %v5438
        %v5440 = vpop.f32.mrf.mxu0
        %v5441 = vpop.f32.mrf.mxu0
        %v5442 = vadd.f32 %v5276, %v5441
        %v5443 = vpop.f32.mrf.mxu0
        %5444 = vmatprep.mubr.bf16.mxu0 0
        %5445 = vmatmul.mubr.bf16.gmra.mxu0 %v5315
        %v5446 = vpop.f32.mrf.mxu0
        %v5447 = vadd.f32 %v5276, %v5446
        %v5448 = vpop.f32.mrf.mxu0
        %v5449 = vpop.f32.mrf.mxu0
        %v5450 = vadd.f32 %v5276, %v5449
        %v5451 = vpop.f32.mrf.mxu0
        %5452 = vmatprep.mubr.bf16.mxu0 0
        %5453 = vmatmul.mubr.bf16.gmra.mxu0 %v5318
        %v5454 = vpop.f32.mrf.mxu0
        %v5455 = vadd.f32 %v5276, %v5454
        %v5456 = vpop.f32.mrf.mxu0
        %v5457 = vpop.f32.mrf.mxu0
        %v5458 = vadd.f32 %v5276, %v5457
        %v5459 = vpop.f32.mrf.mxu0
        %5460 = vmatprep.mubr.bf16.mxu0 0
        %5461 = vmatmul.mubr.bf16.gmra.mxu0 %v5321
        %v5462 = vpop.f32.mrf.mxu0
        %v5463 = vadd.f32 %v5276, %v5462
        %v5464 = vpop.f32.mrf.mxu0
        %v5465 = vpop.f32.mrf.mxu0
        %v5466 = vadd.f32 %v5276, %v5465
        %v5467 = vpop.f32.mrf.mxu0
        %5468 = vmatprep.mubr.bf16.mxu0 0
        %5469 = vmatmul.mubr.bf16.gmra.mxu0 %v5324
        %v5470 = vpop.f32.mrf.mxu0
        %v5471 = vadd.f32 %v5276, %v5470
        %v5472 = vpop.f32.mrf.mxu0
        %v5473 = vpop.f32.mrf.mxu0
        %v5474 = vadd.f32 %v5276, %v5473
        %v5475 = vpop.f32.mrf.mxu0
        %5476 = vmatprep.mubr.bf16.mxu0 0
        %5477 = vmatmul.mubr.bf16.gmra.mxu0 %v5327
        %v5478 = vpop.f32.mrf.mxu0
        %v5479 = vadd.f32 %v5276, %v5478
        %v5480 = vpop.f32.mrf.mxu0
        %v5481 = vpop.f32.mrf.mxu0
        %v5482 = vadd.f32 %v5276, %v5481
        %v5483 = vpop.f32.mrf.mxu0
        %5484 = vmatprep.mubr.bf16.mxu0 0
        %5485 = vmatmul.mubr.bf16.gmra.mxu0 %v5330
        %v5486 = vpop.f32.mrf.mxu0
        %v5487 = vadd.f32 %v5276, %v5486
        %v5488 = vpop.f32.mrf.mxu0
        %v5489 = vpop.f32.mrf.mxu0
        %v5490 = vadd.f32 %v5276, %v5489
        %v5491 = vpop.f32.mrf.mxu0
        %5492 = vdwg.mxu0
        %5493 = vst.msk [vmem:[%s382] sm:$0xff] %vm1718, %v5367
        %5494 = vst.msk [vmem:[%s382 + $0x8] sm:$0xff] %vm1718, %v5370
        %5495 = vst.msk [vmem:[%s382 + $0x10] sm:$0xff] %vm1718, %v5375
        %5496 = vst.msk [vmem:[%s382 + $0x18] sm:$0xff] %vm1718, %v5378
        %5497 = vst.msk [vmem:[%s382 + $0x20] sm:$0xff] %vm1718, %v5383
        %5498 = vst.msk [vmem:[%s382 + $0x28] sm:$0xff] %vm1718, %v5386
        %5499 = vst.msk [vmem:[%s382 + $0x30] sm:$0xff] %vm1718, %v5391
        %5500 = vst.msk [vmem:[%s382 + $0x38] sm:$0xff] %vm1718, %v5394
        %5501 = vst.msk [vmem:[%s382 + $0x40] sm:$0xff] %vm1718, %v5399
        %5502 = vst.msk [vmem:[%s382 + $0x48] sm:$0xff] %vm1718, %v5402
        %5503 = vst.msk [vmem:[%s382 + $0x50] sm:$0xff] %vm1718, %v5407
        %5504 = vst.msk [vmem:[%s382 + $0x58] sm:$0xff] %vm1718, %v5410
        %5505 = vst.msk [vmem:[%s382 + $0x60] sm:$0xff] %vm1718, %v5415
        %5506 = vst.msk [vmem:[%s382 + $0x68] sm:$0xff] %vm1718, %v5418
        %5507 = vst.msk [vmem:[%s382 + $0x70] sm:$0xff] %vm1718, %v5423
        %5508 = vst.msk [vmem:[%s382 + $0x78] sm:$0xff] %vm1718, %v5426
        %5509 = vst.msk [vmem:[%s382 + $0x80] sm:$0xff] %vm1718, %v5431
        %5510 = vst.msk [vmem:[%s382 + $0x88] sm:$0xff] %vm1718, %v5434
        %5511 = vst.msk [vmem:[%s382 + $0x90] sm:$0xff] %vm1718, %v5439
        %5512 = vst.msk [vmem:[%s382 + $0x98] sm:$0xff] %vm1718, %v5442
        %5513 = vst.msk [vmem:[%s382 + $0xa0] sm:$0xff] %vm1718, %v5447
        %5514 = vst.msk [vmem:[%s382 + $0xa8] sm:$0xff] %vm1718, %v5450
        %5515 = vst.msk [vmem:[%s382 + $0xb0] sm:$0xff] %vm1718, %v5455
        %5516 = vst.msk [vmem:[%s382 + $0xb8] sm:$0xff] %vm1718, %v5458
        %5517 = vst.msk [vmem:[%s382 + $0xc0] sm:$0xff] %vm1718, %v5463
        %5518 = vst.msk [vmem:[%s382 + $0xc8] sm:$0xff] %vm1718, %v5466
        %5519 = vst.msk [vmem:[%s382 + $0xd0] sm:$0xff] %vm1718, %v5471
        %5520 = vst.msk [vmem:[%s382 + $0xd8] sm:$0xff] %vm1718, %v5474
        %5521 = vst.msk [vmem:[%s382 + $0xe0] sm:$0xff] %vm1718, %v5479
        %5522 = vst.msk [vmem:[%s382 + $0xe8] sm:$0xff] %vm1718, %v5482
        %5523 = vst.msk [vmem:[%s382 + $0xf0] sm:$0xff] %vm1718, %v5487
        %5524 = vst.msk [vmem:[%s382 + $0xf8] sm:$0xff] %vm1718, %v5490
        %s5525 = sand.u32 %s269, 1
        %s5526 = scalar_lea.sflag [#allocation4], %s5525
        %s5527 = sand.u32 %s269, 1
        %s5528 = smul.addr %s5527, 256
        %s5529 = scalar_lea.vmem [#allocation3], %s5528
        // Predicated region
        $region65: #{tpu_custom_call.1} parent=63 // pred_check
          %p5530 = pneg %p279
        $region66: #{tpu_custom_call.1} parent=63 // pred_check_branch
          %5532 = sbr.rel (%p5530) target = $region68
        $region67: #{tpu_custom_call.1} parent=63 // pred_region
          %s5533 = smul.u32 4, %s25
          %s5535 = ssub.s32 4096, 4096
          %5536 = vsyncadd %s5526, %s5535
          %s5537 = smul.addr %s5533, 8
          %s5538 = smul.addr %s5537, 128
          %s5539 = scalar_lea.hbm %s11, %s5538
          %s5540 = sshll.u32 %s5529, 4
          %s5541 = int_to_ptr.vmem [resolvable:$true] %s5540
          %5546 = dma.vmem_to_hbm [thread:$0]  %s5541, 4096, %s5539, %s5526, 128, 128, 8
        $region68: #{tpu_custom_call.1} parent=63 // pred_fallthru
          _
      $region64: #{tpu_custom_call.1} parent=5 // pred_fallthru
        _
      %p5547 = scmp.le.s32.totalorder 2, %s20
      // Predicated region
      $region69: #{tpu_custom_call.1} parent=5 // pred_check
        %p5548 = pneg %p5547
      $region70: #{tpu_custom_call.1} parent=5 // pred_check_branch
        %5550 = sbr.rel (%p5548) target = $region72
      $region71: #{tpu_custom_call.1} parent=5 // pred_region
        %s5551 = ssub.s32 %s20, 2
        // Predicated region
        $region73: #{tpu_custom_call.1} parent=71 // pred_check
          %p5552 = pneg %p285
        $region74: #{tpu_custom_call.1} parent=71 // pred_check_branch
          %5554 = sbr.rel (%p5552) target = $region76
        $region75: #{tpu_custom_call.1} parent=71 // pred_region
          %s5555 = sand.u32 %s270, 1
          %s5556 = scalar_lea.sflag [#allocation4], %s5555
          %s5557 = sand.u32 %s270, 1
          %s5558 = smul.addr %s5557, 256
          %s5559 = scalar_lea.vmem [#allocation3], %s5558
          %5560 = dma.done %s5556, 4096
        $region76: #{tpu_custom_call.1} parent=71 // pred_fallthru
          _
      $region72: #{tpu_custom_call.1} parent=5 // pred_fallthru
        _
    $region6: #{tpu_custom_call.1} parent=1 // loop_footer
      %s24 = sadd.s32 1, %s20
    $region7: #{tpu_custom_call.1} parent=1 // loop_footer_branch
      %19 = sbr.rel target = $region3
    $region8: #{tpu_custom_call.1} parent=1 // loop_exit
      _
    %5561 = vsyncpa [#allocation4], 1
    %s5562 = scalar_lea.sflag [#allocation4], 1
    %5563 = vsyncpa %s5562, 1

</llo_original>
